<compile_context>
chip_gen: v6e
topology: v6e:2x2x1
jax: 0.10.0
libtpu: 0.0.40
codegen_flags: <defaults>
</compile_context>

<pallas_src>
import functools
import math

import jax
import jax.numpy as jnp
from jax import lax
from jax.experimental import pallas as pl
from jax.experimental.pallas import tpu as pltpu


# ----------------------------------------------------------------------------
# Pallas kernel: one (batch sample, query tile) step of the OA forward
# ----------------------------------------------------------------------------
def oa_kernel(x_ref, wqk_ref, wv_ref, bv_ref, wt_ref, bt_ref, o_ref,
              xt_sc, qk_sc, s_sc, col_sc, *, tq):
    """x_ref: (1, C, N) channels-first block  ->  o_ref: (1, C, N)."""
    q = pl.program_id(1)
    n_q = pl.num_programs(1)

    # ---- per-sample init (q-tile 0): transpose x to channels-last once, project the
    #      shared Q/K for ALL rows (keys == queries weight), zero the accumulators.
    @pl.when(q == 0)
    def _init():
        x_nc = jnp.transpose(x_ref[0], (1, 0))                        # (N, C) f32, XLU
        xt_sc[...] = x_nc
        qk_sc[...] = jnp.dot(x_nc.astype(jnp.bfloat16), wqk_ref[...],
                             preferred_element_type=jnp.float32
                             ).astype(jnp.bfloat16)                   # (N, C/4) bf16
        s_sc[...] = jnp.zeros_like(s_sc)
        col_sc[...] = jnp.zeros_like(col_sc)

    # ---- this step's query rows (queries reuse the cached shared projection).
    row0 = pl.multiple_of(q * tq, tq)
    q_t = qk_sc[pl.ds(row0, tq), :]                                    # (tq, C/4) bf16
    x_rows = xt_sc[pl.ds(row0, tq), :]                                 # (tq, C)  f32

    # energy[i, j] = q_i . k_j  -- rhs-transposed matmul, no materialised qk.T.
    energy = lax.dot_general(q_t, qk_sc[...], (((1,), (1,)), ((), ())),
                             preferred_element_type=jnp.float32)       # (tq, N) f32

    # Row-softmax over keys.  Keep e un-normalised; fold 1/rowsum into V instead of an
    # N^2 VPU pass.  (On v6e/v7x the exp could also be done in bf16 for 2x EUP throughput;
    # kept f32 so the kernel lowers cleanly on v5e too, which has no bf16 EUP.)
    m = jnp.max(energy, axis=-1, keepdims=True)
    e = jnp.exp(energy - m)                                            # (tq, N) f32, EUP
    recip_r = pl.reciprocal(jnp.sum(e, axis=-1, keepdims=True), approx=True)  # (tq, 1)
    e16 = e.astype(jnp.bfloat16)

    # V projection for these rows, pre-scaled by 1/rowsum (softmax denominator folded in).
    v_t = jnp.dot(x_rows.astype(jnp.bfloat16), wv_ref[...],
                  preferred_element_type=jnp.float32) + bv_ref[...]    # (tq, C) f32
    v16 = (v_t * recip_r).astype(jnp.bfloat16)

    # Accumulate (lhs-transposed matmuls, contraction over the query rows of this tile):
    #   s[j, c]   += sum_i e[i, j] * (v[i, c] / rowsum_i)
    #   col[j, 0] += sum_i e[i, j] * (1 / rowsum_i)          (attention column sums)
    s_sc[...] += lax.dot_general(e16, v16, (((0,), (0,)), ((), ())),
                                 preferred_element_type=jnp.float32)   # (N, C)
    col_sc[...] += lax.dot_general(e16, recip_r.astype(jnp.bfloat16),
                                   (((0,), (0,)), ((), ())),
                                   preferred_element_type=jnp.float32)  # (N, 1)

    # ---- finalize on the last query tile: column-normalise, trans_conv (eval-mode BN
    #      folded into wt/bt), ReLU, residual, transpose back to (C, N), store.
    @pl.when(q == n_q - 1)
    def _fin():
        x_nc = xt_sc[...]                                              # (N, C) f32
        xr = s_sc[...] / (1e-9 + col_sc[...])                          # exact div, (N, C)
        z = (x_nc - xr).astype(jnp.bfloat16)
        t = jnp.dot(z, wt_ref[...], preferred_element_type=jnp.float32) + bt_ref[...]
        out_nc = x_nc + jnp.maximum(t, 0.0)
        o_ref[0] = jnp.transpose(out_nc, (1, 0)).astype(o_ref.dtype)   # (C, N)


@functools.partial(jax.jit, static_argnames=("tq",))
def oa_forward(x_ncw, params, *, tq=128):
    """x_ncw: [B, C, N] (PyTorch NCW).  Returns [B, C, N]."""
    B, C, N = x_ncw.shape
    c4 = C // 4
    assert C % 4 == 0 and N % tq == 0, (C, N, tq)
    n_q = N // tq

    full = lambda r, c: pl.BlockSpec((r, c), lambda b, q: (0, 0))

    # Advisory cost estimate (projections + Gram + accumulation matmuls; exps).
    flops = 2 * B * (N * C * (c4 + 2 * C) + N * N * (c4 + C + 1))
    transcendentals = B * N * N
    bytes_accessed = B * 2 * C * N * 4 + (C * c4 + 2 * C * C) * 2 + 4 * C * 4

    # VMEM budget: double-buffered x/out blocks + scratch + transient (tq, N) slabs.
    vmem_est = (4 * C * N * 4              # x + out blocks (double-buffered)
                + N * C * 4                # xt_sc
                + N * c4 * 2               # qk_sc
                + N * C * 4                # s_sc
                + N * 128 * 4              # col_sc (lane-padded)
                + 2 * ((C * c4 + 2 * C * C) * 2 + 4 * C * 4)   # weights + biases
                + 6 * tq * N * 4           # energy / e / e16 transients headroom
                + (4 << 20))               # margin
    vmem_limit = int(min(max(vmem_est, 32 << 20), 64 << 20))

    kernel = functools.partial(oa_kernel, tq=tq)
    return pl.pallas_call(
        kernel,
        out_shape=jax.ShapeDtypeStruct((B, C, N), jnp.float32),
        grid=(B, n_q),
        in_specs=[
            pl.BlockSpec((1, C, N), lambda b, q: (b, 0, 0)),   # x: one sample, resident over q
            full(C, c4),                                       # shared Q/K weight (bf16)
            full(C, C), full(1, C),                            # V weight (bf16) / bias (f32)
            full(C, C), full(1, C),                            # trans weight (bf16, BN folded) / bias
        ],
        out_specs=pl.BlockSpec((1, C, N), lambda b, q: (b, 0, 0)),
        scratch_shapes=[
            pltpu.VMEM((N, C), jnp.float32),        # xt_sc: channels-last x
            pltpu.VMEM((N, c4), jnp.bfloat16),      # qk_sc: shared Q/K projection (all rows)
            pltpu.VMEM((N, C), jnp.float32),        # s_sc: un-normalised x_r accumulator
            pltpu.VMEM((N, 1), jnp.float32),        # col_sc: attention column sums
        ],
        compiler_params=pltpu.CompilerParams(
            dimension_semantics=("parallel", "arbitrary"),      # batch megacore; q carries acc
            vmem_limit_bytes=vmem_limit),
        cost_estimate=pl.CostEstimate(flops=flops,
                                      transcendentals=transcendentals,
                                      bytes_accessed=bytes_accessed),
    )(x_ncw, params["wqk"], params["wv"], params["bv"], params["wt"], params["bt"])


# ----------------------------------------------------------------------------
# Pure-JAX reference (same math, f32, for a sanity check)
# ----------------------------------------------------------------------------
def oa_reference(x_ncw, params):
    hp = jax.lax.Precision.HIGHEST
    f32 = lambda a: a.astype(jnp.float32)
    x = jnp.transpose(x_ncw, (0, 2, 1))                               # (B, N, C)
    qk = jnp.einsum("bnc,cd->bnd", x, f32(params["wqk"]), precision=hp)
    energy = jnp.einsum("bnd,bmd->bnm", qk, qk, precision=hp)
    attn = jax.nn.softmax(energy, axis=-1)
    attn = attn / (1e-9 + jnp.sum(attn, axis=1, keepdims=True))
    v = jnp.einsum("bnc,cd->bnd", x, f32(params["wv"]), precision=hp) + params["bv"]
    xr = jnp.einsum("bnm,bnc->bmc", attn, v, precision=hp)
    t = jnp.einsum("bnc,cd->bnd", x - xr, f32(params["wt"]), precision=hp) + params["bt"]
    out = x + jnp.maximum(t, 0.0)
    return jnp.transpose(out, (0, 2, 1))


# ----------------------------------------------------------------------------
# Deterministic parameter init (PyTorch-style conv init; eval-mode BN folded; bf16 weights)
# ----------------------------------------------------------------------------
def init_params(key, channels):
    C, c4 = channels, channels // 4
    k1, k2, k3, k4, k5, kbn = jax.random.split(key, 6)
    b = 1.0 / math.sqrt(C)
    # weights stored channels-last: [C_in, C_out] (transpose of PyTorch [C_out, C_in, 1])
    wqk = jax.random.uniform(k1, (C, c4), jnp.float32, -b, b)         # shared q/k weight
    wv = jax.random.uniform(k2, (C, C), jnp.float32, -b, b)
    bv = jax.random.uniform(k3, (1, C), jnp.float32, -b, b)
    wt = jax.random.uniform(k4, (C, C), jnp.float32, -b, b)
    bt = jax.random.uniform(k5, (1, C), jnp.float32, -b, b)
    # eval-mode BatchNorm1d after trans_conv, folded into wt / bt.
    # TODO(synk): training-mode BN (batch statistics) is not implemented.
    g1, g2, g3, g4 = jax.random.split(kbn, 4)
    gamma = jax.random.uniform(g1, (C,), jnp.float32, 0.5, 1.5)
    beta = jax.random.uniform(g2, (C,), jnp.float32, -0.5, 0.5)
    mean = jax.random.uniform(g3, (C,), jnp.float32, -0.5, 0.5)
    var = jax.random.uniform(g4, (C,), jnp.float32, 0.5, 1.5)
    scale = gamma / jnp.sqrt(var + 1e-5)
    shift = beta - mean * scale
    wt_f = wt * scale[None, :]
    bt_f = bt * scale[None, :] + shift[None, :]
    return {"wqk": wqk.astype(jnp.bfloat16),            # bf16 weights: MXU-native operands,
            "wv": wv.astype(jnp.bfloat16),              # half the weight DMA / VMEM
            "bv": bv,
            "wt": wt_f.astype(jnp.bfloat16),
            "bt": bt_f}


# ----------------------------------------------------------------------------
if __name__ == "__main__":
    key = jax.random.PRNGKey(0)
    kx, kp = jax.random.split(key)

    # Small but representative: C multiple of 128 (lane-dense), N = 2 query tiles so the
    # flash-style accumulation path is exercised; B even keeps both megacore TCs busy.
    B, C, N = 2, 128, 256
    x = jax.random.normal(kx, (B, C, N), jnp.float32)
    params = init_params(kp, C)

    out = jax.block_until_ready(oa_forward(x, params, tq=128))
    ref = jax.block_until_ready(oa_reference(x, params))

    assert out.shape == (B, C, N), out.shape
    assert bool(jnp.all(jnp.isfinite(out)))
    err = float(jnp.max(jnp.abs(out - ref)))
    assert err < 1e-1, err
    print("KERNEL_OK")
</pallas_src>

<mosaic_0001>
module attributes {stable_mosaic.version = 11 : i64} {
  func.func @oa_kernel(%arg0: i32, %arg1: i32, %arg2: memref<1x128x256xf32, #tpu.memory_space<vmem>>, %arg3: memref<128x32xbf16, #tpu.memory_space<vmem>>, %arg4: memref<128x128xbf16, #tpu.memory_space<vmem>>, %arg5: memref<1x128xf32, #tpu.memory_space<vmem>>, %arg6: memref<128x128xbf16, #tpu.memory_space<vmem>>, %arg7: memref<1x128xf32, #tpu.memory_space<vmem>>, %arg8: memref<1x128x256xf32, #tpu.memory_space<vmem>>, %arg9: memref<256x128xf32, #tpu.memory_space<vmem>>, %arg10: memref<256x32xbf16, #tpu.memory_space<vmem>>, %arg11: memref<256x128xf32, #tpu.memory_space<vmem>>, %arg12: memref<256x1xf32, #tpu.memory_space<vmem>>) attributes {dimension_semantics = [#tpu.dimension_semantics<parallel>, #tpu.dimension_semantics<arbitrary>], iteration_bounds = array<i64: 2, 2>, scalar_prefetch = 0 : i64, scratch_operands = 4 : i64, tpu.core_type = #tpu.core_type<tc>, window_params = [{transform_indices = @transform_0, window_bounds = array<i64: 1, 128, 256>}, {pipeline_mode = #tpu.pipeline_mode<synchronous>, transform_indices = @transform_1, window_bounds = array<i64: 128, 32>}, {pipeline_mode = #tpu.pipeline_mode<synchronous>, transform_indices = @transform_2, window_bounds = array<i64: 128, 128>}, {pipeline_mode = #tpu.pipeline_mode<synchronous>, transform_indices = @transform_3, window_bounds = array<i64: 1, 128>}, {pipeline_mode = #tpu.pipeline_mode<synchronous>, transform_indices = @transform_4, window_bounds = array<i64: 128, 128>}, {pipeline_mode = #tpu.pipeline_mode<synchronous>, transform_indices = @transform_5, window_bounds = array<i64: 1, 128>}, {transform_indices = @transform_6, window_bounds = array<i64: 1, 128, 256>}]} {
    %c0_i32 = arith.constant 0 : i32
    %0 = arith.cmpi eq, %arg1, %c0_i32 : i32
    %1 = arith.extui %0 : i1 to i32
    %c0_i32_0 = arith.constant 0 : i32
    %2 = arith.cmpi ne, %1, %c0_i32_0 : i32
    scf.if %2 {
      %c0_22 = arith.constant 0 : index
      %c0_23 = arith.constant 0 : index
      %c0_24 = arith.constant 0 : index
      %41 = vector.load %arg2[%c0_22, %c0_23, %c0_24] : memref<1x128x256xf32, #tpu.memory_space<vmem>>, vector<1x128x256xf32>
      %42 = vector.shape_cast %41 : vector<1x128x256xf32> to vector<128x256xf32>
      %43 = tpu.transpose %42, [1, 0] : vector<128x256xf32> -> vector<256x128xf32>
      %c0_25 = arith.constant 0 : index
      %c0_26 = arith.constant 0 : index
      %44 = vector.load %arg9[%c0_25, %c0_26] : memref<256x128xf32, #tpu.memory_space<vmem>>, vector<256x128xf32>
      tpu.vector_store %arg9[%c0_25, %c0_26], %43 {strides = array<i32>} : memref<256x128xf32, #tpu.memory_space<vmem>>, vector<256x128xf32>,
      %45 = arith.truncf %43 : vector<256x128xf32> to vector<256x128xbf16>
      %c0_27 = arith.constant 0 : index
      %c0_28 = arith.constant 0 : index
      %46 = vector.load %arg3[%c0_27, %c0_28] : memref<128x32xbf16, #tpu.memory_space<vmem>>, vector<128x32xbf16>
      %cst_29 = arith.constant dense<0.000000e+00> : vector<256x32xf32>
      %47 = tpu.matmul %45, %46, %cst_29 {dimension_numbers = #tpu.dot_dimension_numbers<[1], [0], [0], [1], [0, 0, 1, 1], [], []>} : vector<256x128xbf16>, vector<128x32xbf16>, vector<256x32xf32> -> vector<256x32xf32>
      %48 = arith.truncf %47 : vector<256x32xf32> to vector<256x32xbf16>
      %c0_30 = arith.constant 0 : index
      %c0_31 = arith.constant 0 : index
      %49 = vector.load %arg10[%c0_30, %c0_31] : memref<256x32xbf16, #tpu.memory_space<vmem>>, vector<256x32xbf16>
      tpu.vector_store %arg10[%c0_30, %c0_31], %48 {strides = array<i32>} : memref<256x32xbf16, #tpu.memory_space<vmem>>, vector<256x32xbf16>,
      %cst_32 = arith.constant 0.000000e+00 : f32
      %50 = vector.broadcast %cst_32 : f32 to vector<256x128xf32>
      %c0_33 = arith.constant 0 : index
      %c0_34 = arith.constant 0 : index
      %51 = vector.load %arg11[%c0_33, %c0_34] : memref<256x128xf32, #tpu.memory_space<vmem>>, vector<256x128xf32>
      tpu.vector_store %arg11[%c0_33, %c0_34], %50 {strides = array<i32>} : memref<256x128xf32, #tpu.memory_space<vmem>>, vector<256x128xf32>,
      %cst_35 = arith.constant 0.000000e+00 : f32
      %52 = vector.broadcast %cst_35 : f32 to vector<256x1xf32>
      %c0_36 = arith.constant 0 : index
      %c0_37 = arith.constant 0 : index
      %53 = vector.load %arg12[%c0_36, %c0_37] : memref<256x1xf32, #tpu.memory_space<vmem>>, vector<256x1xf32>
      tpu.vector_store %arg12[%c0_36, %c0_37], %52 {strides = array<i32>} : memref<256x1xf32, #tpu.memory_space<vmem>>, vector<256x1xf32>,
    } else {
    }
    %c128_i32 = arith.constant 128 : i32
    %3 = arith.muli %arg1, %c128_i32 : i32
    %4 = tpu.assume_multiple %3, 128 : i32
    %5 = arith.index_cast %4 : i32 to index
    %c0 = arith.constant 0 : index
    %6 = vector.load %arg10[%5, %c0] : memref<256x32xbf16, #tpu.memory_space<vmem>>, vector<128x32xbf16>
    %7 = arith.index_cast %4 : i32 to index
    %c0_1 = arith.constant 0 : index
    %8 = vector.load %arg9[%7, %c0_1] : memref<256x128xf32, #tpu.memory_space<vmem>>, vector<128x128xf32>
    %c0_2 = arith.constant 0 : index
    %c0_3 = arith.constant 0 : index
    %9 = vector.load %arg10[%c0_2, %c0_3] : memref<256x32xbf16, #tpu.memory_space<vmem>>, vector<256x32xbf16>
    %cst = arith.constant dense<0.000000e+00> : vector<128x256xf32>
    %10 = tpu.matmul %6, %9, %cst {dimension_numbers = #tpu.dot_dimension_numbers<[1], [1], [0], [0], [0, 0, 1, 0], [], []>} : vector<128x32xbf16>, vector<256x32xbf16>, vector<128x256xf32> -> vector<128x256xf32>
    %cst_4 = arith.constant dense<0xFF800000> : vector<128xf32>
    %11 = vector.multi_reduction <maximumf>, %10, %cst_4 [1] : vector<128x256xf32> to vector<128xf32>
    %12 = vector.shape_cast %11 : vector<128xf32> to vector<128x1xf32>
    %13 = vector.broadcast %12 : vector<128x1xf32> to vector<128x256xf32>
    %14 = arith.subf %10, %13 : vector<128x256xf32>
    %15 = math.exp %14 : vector<128x256xf32>
    %cst_5 = arith.constant dense<0.000000e+00> : vector<128xf32>
    %16 = vector.multi_reduction <add>, %15, %cst_5 [1] : vector<128x256xf32> to vector<128xf32>
    %17 = vector.shape_cast %16 : vector<128xf32> to vector<128x1xf32>
    %18 = tpu.reciprocal %17 {approx = true} : vector<128x1xf32> -> vector<128x1xf32>
    %19 = arith.truncf %15 : vector<128x256xf32> to vector<128x256xbf16>
    %20 = arith.truncf %8 : vector<128x128xf32> to vector<128x128xbf16>
    %c0_6 = arith.constant 0 : index
    %c0_7 = arith.constant 0 : index
    %21 = vector.load %arg4[%c0_6, %c0_7] : memref<128x128xbf16, #tpu.memory_space<vmem>>, vector<128x128xbf16>
    %cst_8 = arith.constant dense<0.000000e+00> : vector<128x128xf32>
    %22 = tpu.matmul %20, %21, %cst_8 {dimension_numbers = #tpu.dot_dimension_numbers<[1], [0], [0], [1], [0, 0, 1, 1], [], []>} : vector<128x128xbf16>, vector<128x128xbf16>, vector<128x128xf32> -> vector<128x128xf32>
    %c0_9 = arith.constant 0 : index
    %c0_10 = arith.constant 0 : index
    %23 = vector.load %arg5[%c0_9, %c0_10] : memref<1x128xf32, #tpu.memory_space<vmem>>, vector<1x128xf32>
    %24 = vector.broadcast %23 : vector<1x128xf32> to vector<128x128xf32>
    %25 = arith.addf %22, %24 : vector<128x128xf32>
    %26 = vector.broadcast %18 : vector<128x1xf32> to vector<128x128xf32>
    %27 = arith.mulf %25, %26 : vector<128x128xf32>
    %28 = arith.truncf %27 : vector<128x128xf32> to vector<128x128xbf16>
    %c0_11 = arith.constant 0 : index
    %c0_12 = arith.constant 0 : index
    %29 = vector.load %arg11[%c0_11, %c0_12] : memref<256x128xf32, #tpu.memory_space<vmem>>, vector<256x128xf32>
    %cst_13 = arith.constant dense<0.000000e+00> : vector<256x128xf32>
    %30 = tpu.matmul %19, %28, %cst_13 {dimension_numbers = #tpu.dot_dimension_numbers<[0], [0], [1], [1], [0, 1, 1, 1], [], []>} : vector<128x256xbf16>, vector<128x128xbf16>, vector<256x128xf32> -> vector<256x128xf32>
    %31 = arith.addf %29, %30 : vector<256x128xf32>
    %c0_14 = arith.constant 0 : index
    %c0_15 = arith.constant 0 : index
    %32 = vector.load %arg11[%c0_14, %c0_15] : memref<256x128xf32, #tpu.memory_space<vmem>>, vector<256x128xf32>
    tpu.vector_store %arg11[%c0_14, %c0_15], %31 {strides = array<i32>} : memref<256x128xf32, #tpu.memory_space<vmem>>, vector<256x128xf32>,
    %c0_16 = arith.constant 0 : index
    %c0_17 = arith.constant 0 : index
    %33 = vector.load %arg12[%c0_16, %c0_17] : memref<256x1xf32, #tpu.memory_space<vmem>>, vector<256x1xf32>
    %34 = arith.truncf %18 : vector<128x1xf32> to vector<128x1xbf16>
    %cst_18 = arith.constant dense<0.000000e+00> : vector<256x1xf32>
    %35 = tpu.matmul %19, %34, %cst_18 {dimension_numbers = #tpu.dot_dimension_numbers<[0], [0], [1], [1], [0, 1, 1, 1], [], []>} : vector<128x256xbf16>, vector<128x1xbf16>, vector<256x1xf32> -> vector<256x1xf32>
    %36 = arith.addf %33, %35 : vector<256x1xf32>
    %c0_19 = arith.constant 0 : index
    %c0_20 = arith.constant 0 : index
    %37 = vector.load %arg12[%c0_19, %c0_20] : memref<256x1xf32, #tpu.memory_space<vmem>>, vector<256x1xf32>
    tpu.vector_store %arg12[%c0_19, %c0_20], %36 {strides = array<i32>} : memref<256x1xf32, #tpu.memory_space<vmem>>, vector<256x1xf32>,
    %c1_i32 = arith.constant 1 : i32
    %38 = arith.cmpi eq, %arg1, %c1_i32 : i32
    %39 = arith.extui %38 : i1 to i32
    %c0_i32_21 = arith.constant 0 : i32
    %40 = arith.cmpi ne, %39, %c0_i32_21 : i32
    scf.if %40 {
      %c0_22 = arith.constant 0 : index
      %c0_23 = arith.constant 0 : index
      %41 = vector.load %arg9[%c0_22, %c0_23] : memref<256x128xf32, #tpu.memory_space<vmem>>, vector<256x128xf32>
      %c0_24 = arith.constant 0 : index
      %c0_25 = arith.constant 0 : index
      %42 = vector.load %arg11[%c0_24, %c0_25] : memref<256x128xf32, #tpu.memory_space<vmem>>, vector<256x128xf32>
      %c0_26 = arith.constant 0 : index
      %c0_27 = arith.constant 0 : index
      %43 = vector.load %arg12[%c0_26, %c0_27] : memref<256x1xf32, #tpu.memory_space<vmem>>, vector<256x1xf32>
      %cst_28 = arith.constant 9.99999971E-10 : f32
      %44 = vector.broadcast %cst_28 : f32 to vector<256x1xf32>
      %45 = arith.addf %44, %43 : vector<256x1xf32>
      %46 = vector.broadcast %45 : vector<256x1xf32> to vector<256x128xf32>
      %47 = arith.divf %42, %46 : vector<256x128xf32>
      %48 = arith.subf %41, %47 : vector<256x128xf32>
      %49 = arith.truncf %48 : vector<256x128xf32> to vector<256x128xbf16>
      %c0_29 = arith.constant 0 : index
      %c0_30 = arith.constant 0 : index
      %50 = vector.load %arg6[%c0_29, %c0_30] : memref<128x128xbf16, #tpu.memory_space<vmem>>, vector<128x128xbf16>
      %cst_31 = arith.constant dense<0.000000e+00> : vector<256x128xf32>
      %51 = tpu.matmul %49, %50, %cst_31 {dimension_numbers = #tpu.dot_dimension_numbers<[1], [0], [0], [1], [0, 0, 1, 1], [], []>} : vector<256x128xbf16>, vector<128x128xbf16>, vector<256x128xf32> -> vector<256x128xf32>
      %c0_32 = arith.constant 0 : index
      %c0_33 = arith.constant 0 : index
      %52 = vector.load %arg7[%c0_32, %c0_33] : memref<1x128xf32, #tpu.memory_space<vmem>>, vector<1x128xf32>
      %53 = vector.broadcast %52 : vector<1x128xf32> to vector<256x128xf32>
      %54 = arith.addf %51, %53 : vector<256x128xf32>
      %cst_34 = arith.constant 0.000000e+00 : f32
      %55 = vector.broadcast %cst_34 : f32 to vector<256x128xf32>
      %56 = arith.maximumf %54, %55 : vector<256x128xf32>
      %57 = arith.addf %41, %56 : vector<256x128xf32>
      %58 = tpu.transpose %57, [1, 0] : vector<256x128xf32> -> vector<128x256xf32>
      %c0_35 = arith.constant 0 : index
      %c0_36 = arith.constant 0 : index
      %c0_37 = arith.constant 0 : index
      %59 = vector.load %arg8[%c0_35, %c0_36, %c0_37] : memref<1x128x256xf32, #tpu.memory_space<vmem>>, vector<1x128x256xf32>
      %60 = vector.shape_cast %59 : vector<1x128x256xf32> to vector<128x256xf32>
      %61 = vector.shape_cast %58 : vector<128x256xf32> to vector<1x128x256xf32>
      tpu.vector_store %arg8[%c0_35, %c0_36, %c0_37], %61 {strides = array<i32>} : memref<1x128x256xf32, #tpu.memory_space<vmem>>, vector<1x128x256xf32>,
    } else {
    }
    return
  }
  func.func @transform_0(%arg0: i32, %arg1: i32) -> (i32, i32, i32) {
    %c0_i32 = arith.constant 0 : i32
    %c0_i32_0 = arith.constant 0 : i32
    %c0_i32_1 = arith.constant 0 : i32
    return %arg0, %c0_i32, %c0_i32_0 : i32, i32, i32
  }
  func.func @transform_1(%arg0: i32, %arg1: i32) -> (i32, i32) {
    %c0_i32 = arith.constant 0 : i32
    %c0_i32_0 = arith.constant 0 : i32
    %c0_i32_1 = arith.constant 0 : i32
    return %c0_i32, %c0_i32_0 : i32, i32
  }
  func.func @transform_2(%arg0: i32, %arg1: i32) -> (i32, i32) {
    %c0_i32 = arith.constant 0 : i32
    %c0_i32_0 = arith.constant 0 : i32
    %c0_i32_1 = arith.constant 0 : i32
    return %c0_i32, %c0_i32_0 : i32, i32
  }
  func.func @transform_3(%arg0: i32, %arg1: i32) -> (i32, i32) {
    %c0_i32 = arith.constant 0 : i32
    %c0_i32_0 = arith.constant 0 : i32
    %c0_i32_1 = arith.constant 0 : i32
    return %c0_i32, %c0_i32_0 : i32, i32
  }
  func.func @transform_4(%arg0: i32, %arg1: i32) -> (i32, i32) {
    %c0_i32 = arith.constant 0 : i32
    %c0_i32_0 = arith.constant 0 : i32
    %c0_i32_1 = arith.constant 0 : i32
    return %c0_i32, %c0_i32_0 : i32, i32
  }
  func.func @transform_5(%arg0: i32, %arg1: i32) -> (i32, i32) {
    %c0_i32 = arith.constant 0 : i32
    %c0_i32_0 = arith.constant 0 : i32
    %c0_i32_1 = arith.constant 0 : i32
    return %c0_i32, %c0_i32_0 : i32, i32
  }
  func.func @transform_6(%arg0: i32, %arg1: i32) -> (i32, i32, i32) {
    %c0_i32 = arith.constant 0 : i32
    %c0_i32_0 = arith.constant 0 : i32
    %c0_i32_1 = arith.constant 0 : i32
    return %arg0, %c0_i32, %c0_i32_0 : i32, i32, i32
  }
}

</mosaic_0001>

<llo_original>
// kernel: oa_forward.1
$region0: #{oa_forward.1}
  #allocation0 [shape = 'u32[]', space=smem, size = 0x4, offset = 0x4, fixed_abs, tag = 'smem constant byte address 0x4 - core index']
  #allocation1 [shape = 'u32[144,128]{1,0:T(1,128)}', space=vmem, size = 0x12000, scoped, tag = 'internal scratch']
  #allocation2 [shape = 'f32[256,128]{1,0:T(8,128)}', space=vmem, size = 0x20000, scoped, tag = 'scratch operand']
  #allocation3 [shape = 'bf16[256,32]{1,0:T(8,128)(2,1)}', space=vmem, size = 0x10000, scoped, tag = 'scratch operand']
  #allocation4 [shape = 'f32[256,128]{1,0:T(8,128)}', space=vmem, size = 0x20000, scoped, tag = 'scratch operand']
  #allocation5 [shape = 'f32[256,1]{1,0:T(8,128)}', space=vmem, size = 0x20000, scoped, tag = 'scratch operand']
  %s0 = inlined_call_operand.hbm [shape: f32[2,128,256], index: 0, kind: input, shape index: {}]
  %s1 = inlined_call_operand.vmem [shape: bf16[128,32], index: 1, kind: input, shape index: {}]
  %s2 = inlined_call_operand.vmem [shape: bf16[128,128], index: 2, kind: input, shape index: {}]
  %s3 = inlined_call_operand.vmem [shape: f32[1,128], index: 3, kind: input, shape index: {}]
  %s4 = inlined_call_operand.hbm [shape: bf16[128,128], index: 4, kind: input, shape index: {}]
  %s5 = inlined_call_operand.vmem [shape: f32[1,128], index: 5, kind: input, shape index: {}]
  %s6 = inlined_call_operand.hbm [shape: f32[2,128,256], index: 6, kind: output, shape index: {}]
  %s7 = sld [smem:[#allocation0]]
  $region73: #{oa_forward.1} parent=0
    _
  %s9 = ssub.s32 1, %s7
  %s10 = scalar_select 0, %s9, %s7
  $region1: #{oa_forward.1} parent=0
    #allocation6 [shape = 'u8[262144]{0}', space=vmem, size = 0x40000, scoped, tag = 'input window, operand 0']
    #allocation7 [shape = 's32[2]{0}', space=sflag, size = 0x8, scoped, tag = 'scoped memory for oa_forward.1']
    #allocation8 [shape = 's32[2]{0}', space=sflag, size = 0x8, scoped, tag = 'scoped memory for oa_forward.1']
    #allocation9 [shape = 'u8[32768]{0}', space=vmem, size = 0x8000, scoped, tag = 'input window, operand 4, single buffered']
    #allocation10 [shape = 's32[1]{0}', space=sflag, size = 0x4, scoped, tag = 'scoped memory for oa_forward.1']
    #allocation11 [shape = 'u8[262144]{0}', space=vmem, size = 0x40000, scoped, tag = 'output window, operand 0']
    %11 = vsyncpa [#allocation7], 0
    %s12 = scalar_lea.sflag [#allocation7], 1
    %13 = vsyncpa %s12, 0
    %14 = vsyncpa [#allocation10], 0
    %15 = vsyncpa [#allocation8], 0
    %s16 = scalar_lea.sflag [#allocation8], 1
    %17 = vsyncpa %s16, 0
    loop: start=0, step=1, limit=6
    $region2: #{oa_forward.1} parent=1 // loop_pre_header
      _
    $region3: #{oa_forward.1} parent=1 // loop_header
      %s19 = sphi 0, %s23
      %p20 = scmp.ge.s32.totalorder %s19, 6
      %s26 = sphi 0, %s38
      %s27 = sphi 0, %s34
      %s28 = sphi 0, %s26
      %s29 = sphi 0, %s27
      %s30 = sphi 0, %s28
      %s31 = sphi 0, %s29
      %s41 = sphi 0, %s43
      %s44 = sphi 0, %s41
      %s45 = sphi 0, %s44
      %s61 = sphi 0, %s45
      %s65 = sphi 0, %s65
      %s67 = sphi 0, %s65
      %s68 = sphi 0, %s67
      %s82 = sphi 0, %s68
      %s86 = sphi 0, %s86
      %s88 = sphi 0, %s86
      %s89 = sphi 0, %s88
      %s103 = sphi 0, %s89
      %s107 = sphi 0, %s107
      %s109 = sphi 0, %s107
      %s110 = sphi 0, %s109
      %s124 = sphi 0, %s110
      %s128 = sphi 0, %s128
      %s130 = sphi 0, %s128
      %s131 = sphi 0, %s130
      %s145 = sphi 0, %s131
      %s149 = sphi 0, %s149
      %s151 = sphi 0, %s149
      %s152 = sphi 0, %s151
      %s166 = sphi 0, %s152
      %s172 = sphi 0, %s174
      %s175 = sphi 0, %s172
      %s176 = sphi 0, %s175
      %s192 = sphi 0, %s176
    $region4: #{oa_forward.1} parent=1 // loop_header_branch
      %22 = sbr.rel (%p20) target = $region8
    $region5: #{oa_forward.1} parent=1 // loop_body
      %s24 = ssub.s32 %s19, 1
      %s25 = ssub.s32 %s19, 2
      %s32 = sadd.s32 1, %s27
      %p33 = scmp.ge.s32.totalorder %s32, 2
      %s34 = scalar_select %p33, 0, %s32
      %s35 = sadd.s32 1, %s26
      %s36 = scalar_select %p33, %s35, %s26
      %p37 = scmp.ge.s32.totalorder %s36, 2
      %s38 = scalar_select %p37, 0, %s36
      %s39 = ssub.s32 %s26, %s38
      %p40 = scmp.eq.s32.totalorder %s39, 0
      %s42 = sadd.s32 %s41, 1
      %s43 = scalar_select %p40, %s41, %s42
      %p46 = pneg %p40
      %p47 = scmp.eq.s32.totalorder %s19, 3
      %p48 = por %p46, %p47
      %p49 = scmp.ne.s32.totalorder %s41, %s44
      %p50 = scmp.eq.s32.totalorder %s19, 0
      %p51 = por %p49, %p50
      %p52 = scmp.ne.s32.totalorder %s41, %s44
      %p53 = scmp.eq.s32.totalorder %s24, 3
      %p54 = por %p52, %p53
      %p55 = scmp.ne.s32.totalorder %s44, %s45
      %p56 = scmp.eq.s32.totalorder %s24, 0
      %p57 = por %p55, %p56
      %p58 = scmp.ne.s32.totalorder %s44, %s45
      %p59 = scmp.eq.s32.totalorder %s25, 3
      %p60 = por %p58, %p59
      %p62 = scmp.ne.s32.totalorder %s45, %s61
      %p63 = scmp.eq.s32.totalorder %s25, 0
      %p64 = por %p62, %p63
      %s66 = sadd.s32 %s65, 1
      %p69 = scmp.eq.s32.totalorder %s19, 3
      %p70 = scmp.ne.s32.totalorder %s65, %s67
      %p71 = scmp.eq.s32.totalorder %s19, 0
      %p72 = por %p70, %p71
      %p73 = scmp.ne.s32.totalorder %s65, %s67
      %p74 = scmp.eq.s32.totalorder %s24, 3
      %p75 = por %p73, %p74
      %p76 = scmp.ne.s32.totalorder %s67, %s68
      %p77 = scmp.eq.s32.totalorder %s24, 0
      %p78 = por %p76, %p77
      %p79 = scmp.ne.s32.totalorder %s67, %s68
      %p80 = scmp.eq.s32.totalorder %s25, 3
      %p81 = por %p79, %p80
      %p83 = scmp.ne.s32.totalorder %s68, %s82
      %p84 = scmp.eq.s32.totalorder %s25, 0
      %p85 = por %p83, %p84
      %s87 = sadd.s32 %s86, 1
      %p90 = scmp.eq.s32.totalorder %s19, 3
      %p91 = scmp.ne.s32.totalorder %s86, %s88
      %p92 = scmp.eq.s32.totalorder %s19, 0
      %p93 = por %p91, %p92
      %p94 = scmp.ne.s32.totalorder %s86, %s88
      %p95 = scmp.eq.s32.totalorder %s24, 3
      %p96 = por %p94, %p95
      %p97 = scmp.ne.s32.totalorder %s88, %s89
      %p98 = scmp.eq.s32.totalorder %s24, 0
      %p99 = por %p97, %p98
      %p100 = scmp.ne.s32.totalorder %s88, %s89
      %p101 = scmp.eq.s32.totalorder %s25, 3
      %p102 = por %p100, %p101
      %p104 = scmp.ne.s32.totalorder %s89, %s103
      %p105 = scmp.eq.s32.totalorder %s25, 0
      %p106 = por %p104, %p105
      %s108 = sadd.s32 %s107, 1
      %p111 = scmp.eq.s32.totalorder %s19, 3
      %p112 = scmp.ne.s32.totalorder %s107, %s109
      %p113 = scmp.eq.s32.totalorder %s19, 0
      %p114 = por %p112, %p113
      %p115 = scmp.ne.s32.totalorder %s107, %s109
      %p116 = scmp.eq.s32.totalorder %s24, 3
      %p117 = por %p115, %p116
      %p118 = scmp.ne.s32.totalorder %s109, %s110
      %p119 = scmp.eq.s32.totalorder %s24, 0
      %p120 = por %p118, %p119
      %p121 = scmp.ne.s32.totalorder %s109, %s110
      %p122 = scmp.eq.s32.totalorder %s25, 3
      %p123 = por %p121, %p122
      %p125 = scmp.ne.s32.totalorder %s110, %s124
      %p126 = scmp.eq.s32.totalorder %s25, 0
      %p127 = por %p125, %p126
      %s129 = sadd.s32 %s128, 1
      %p132 = scmp.eq.s32.totalorder %s19, 3
      %p133 = scmp.ne.s32.totalorder %s128, %s130
      %p134 = scmp.eq.s32.totalorder %s19, 0
      %p135 = por %p133, %p134
      %p136 = scmp.ne.s32.totalorder %s128, %s130
      %p137 = scmp.eq.s32.totalorder %s24, 3
      %p138 = por %p136, %p137
      %p139 = scmp.ne.s32.totalorder %s130, %s131
      %p140 = scmp.eq.s32.totalorder %s24, 0
      %p141 = por %p139, %p140
      %p142 = scmp.ne.s32.totalorder %s130, %s131
      %p143 = scmp.eq.s32.totalorder %s25, 3
      %p144 = por %p142, %p143
      %p146 = scmp.ne.s32.totalorder %s131, %s145
      %p147 = scmp.eq.s32.totalorder %s25, 0
      %p148 = por %p146, %p147
      %s150 = sadd.s32 %s149, 1
      %p153 = scmp.eq.s32.totalorder %s19, 3
      %p154 = scmp.ne.s32.totalorder %s149, %s151
      %p155 = scmp.eq.s32.totalorder %s19, 0
      %p156 = por %p154, %p155
      %p157 = scmp.ne.s32.totalorder %s149, %s151
      %p158 = scmp.eq.s32.totalorder %s24, 3
      %p159 = por %p157, %p158
      %p160 = scmp.ne.s32.totalorder %s151, %s152
      %p161 = scmp.eq.s32.totalorder %s24, 0
      %p162 = por %p160, %p161
      %p163 = scmp.ne.s32.totalorder %s151, %s152
      %p164 = scmp.eq.s32.totalorder %s25, 3
      %p165 = por %p163, %p164
      %p167 = scmp.ne.s32.totalorder %s152, %s166
      %p168 = scmp.eq.s32.totalorder %s25, 0
      %p169 = por %p167, %p168
      %s170 = ssub.s32 %s26, %s38
      %p171 = scmp.eq.s32.totalorder %s170, 0
      %s173 = sadd.s32 %s172, 1
      %s174 = scalar_select %p171, %s172, %s173
      %p177 = pneg %p171
      %p178 = scmp.eq.s32.totalorder %s19, 3
      %p179 = por %p177, %p178
      %p180 = scmp.ne.s32.totalorder %s172, %s175
      %p181 = scmp.eq.s32.totalorder %s19, 0
      %p182 = por %p180, %p181
      %p183 = scmp.ne.s32.totalorder %s172, %s175
      %p184 = scmp.eq.s32.totalorder %s24, 3
      %p185 = por %p183, %p184
      %p186 = scmp.ne.s32.totalorder %s175, %s176
      %p187 = scmp.eq.s32.totalorder %s24, 0
      %p188 = por %p186, %p187
      %p189 = scmp.ne.s32.totalorder %s175, %s176
      %p190 = scmp.eq.s32.totalorder %s25, 3
      %p191 = por %p189, %p190
      %p193 = scmp.ne.s32.totalorder %s176, %s192
      %p194 = scmp.eq.s32.totalorder %s25, 0
      %p195 = por %p193, %p194
      %p196 = scmp.le.s32.totalorder 1, %s19
      %p197 = scmp.lt.s32.totalorder %s19, 5
      %p198 = pnand %p196, %p197
      %p199 = pneg %p198
      // Predicated region
      $region9: #{oa_forward.1} parent=5 // pred_check
        _
      $region10: #{oa_forward.1} parent=5 // pred_check_branch
        %201 = sbr.rel (%p198) target = $region12
      $region11: #{oa_forward.1} parent=5 // pred_region
        %s202 = ssub.s32 %s19, 1
        // Predicated region
        $region13: #{oa_forward.1} parent=11 // pred_check
          %p203 = pneg %p78
        $region14: #{oa_forward.1} parent=11 // pred_check_branch
          %205 = sbr.rel (%p203) target = $region16
        $region15: #{oa_forward.1} parent=11 // pred_region
          _
        $region16: #{oa_forward.1} parent=11 // pred_fallthru
          _
        // Predicated region
        $region17: #{oa_forward.1} parent=11 // pred_check
          %p206 = pneg %p99
        $region18: #{oa_forward.1} parent=11 // pred_check_branch
          %208 = sbr.rel (%p206) target = $region20
        $region19: #{oa_forward.1} parent=11 // pred_region
          _
        $region20: #{oa_forward.1} parent=11 // pred_fallthru
          _
        // Predicated region
        $region21: #{oa_forward.1} parent=11 // pred_check
          %p209 = pneg %p120
        $region22: #{oa_forward.1} parent=11 // pred_check_branch
          %211 = sbr.rel (%p209) target = $region24
        $region23: #{oa_forward.1} parent=11 // pred_region
          _
        $region24: #{oa_forward.1} parent=11 // pred_fallthru
          _
        // Predicated region
        $region25: #{oa_forward.1} parent=11 // pred_check
          %p212 = pneg %p141
        $region26: #{oa_forward.1} parent=11 // pred_check_branch
          %214 = sbr.rel (%p212) target = $region28
        $region27: #{oa_forward.1} parent=11 // pred_region
          %s216 = ssub.s32 1024, 1024
          %217 = vsyncadd [#allocation10], %s216
          %s218 = sshll.u32 [#allocation9], 4
          %s219 = int_to_ptr.vmem [resolvable:$true] %s218
          %224 = dma.hbm_to_vmem [thread:$0]  %s4, 1024, %s219, [#allocation10], 64, 64, 4
        $region28: #{oa_forward.1} parent=11 // pred_fallthru
          _
        // Predicated region
        $region29: #{oa_forward.1} parent=11 // pred_check
          %p225 = pneg %p162
        $region30: #{oa_forward.1} parent=11 // pred_check_branch
          %227 = sbr.rel (%p225) target = $region32
        $region31: #{oa_forward.1} parent=11 // pred_region
          _
        $region32: #{oa_forward.1} parent=11 // pred_fallthru
          _
      $region12: #{oa_forward.1} parent=5 // pred_fallthru
        _
      %p228 = scmp.lt.s32.totalorder %s19, 4
      // Predicated region
      $region33: #{oa_forward.1} parent=5 // pred_check
        %p229 = pneg %p228
      $region34: #{oa_forward.1} parent=5 // pred_check_branch
        %231 = sbr.rel (%p229) target = $region36
      $region35: #{oa_forward.1} parent=5 // pred_region
        // Predicated region
        $region37: #{oa_forward.1} parent=35 // pred_check
          %p232 = pneg %p51
        $region38: #{oa_forward.1} parent=35 // pred_check_branch
          %234 = sbr.rel (%p232) target = $region40
        $region39: #{oa_forward.1} parent=35 // pred_region
          %s235 = sand.u32 %s41, 1
          %s236 = scalar_lea.sflag [#allocation7], %s235
          %s237 = sand.u32 %s41, 1
          %s238 = smul.addr %s237, 256
          %s239 = scalar_lea.vmem [#allocation6], %s238
          %s241 = ssub.s32 4096, 4096
          %242 = vsyncadd %s236, %s241
          %s243 = smul.addr %s26, 32
          %s244 = smul.addr %s243, 128
          %s245 = scalar_lea.hbm %s0, %s244
          %s246 = sshll.u32 %s239, 4
          %s247 = int_to_ptr.vmem [resolvable:$true] %s246
          %252 = dma.hbm_to_vmem [thread:$0]  %s245, 4096, %s247, %s236, 256, 256, 16
        $region40: #{oa_forward.1} parent=35 // pred_fallthru
          _
      $region36: #{oa_forward.1} parent=5 // pred_fallthru
        _
      %p253 = scmp.le.s32.totalorder 1, %s19
      %p254 = scmp.lt.s32.totalorder %s19, 5
      %p255 = pnand %p253, %p254
      %p256 = pneg %p255
      // Predicated region
      $region41: #{oa_forward.1} parent=5 // pred_check
        _
      $region42: #{oa_forward.1} parent=5 // pred_check_branch
        %258 = sbr.rel (%p255) target = $region44
      $region43: #{oa_forward.1} parent=5 // pred_region
        %s259 = ssub.s32 %s19, 1
        %s260 = sand.u32 %s44, 1
        %s261 = scalar_lea.sflag [#allocation7], %s260
        %s262 = sand.u32 %s44, 1
        %s263 = smul.addr %s262, 256
        %s264 = scalar_lea.vmem [#allocation6], %s263
        // Predicated region
        $region45: #{oa_forward.1} parent=43 // pred_check
          %p265 = pneg %p57
        $region46: #{oa_forward.1} parent=43 // pred_check_branch
          %267 = sbr.rel (%p265) target = $region48
        $region47: #{oa_forward.1} parent=43 // pred_region
          %268 = dma.done %s261, 4096
        $region48: #{oa_forward.1} parent=43 // pred_fallthru
          _
        // Predicated region
        $region49: #{oa_forward.1} parent=43 // pred_check
          %p269 = pneg %p141
        $region50: #{oa_forward.1} parent=43 // pred_check_branch
          %271 = sbr.rel (%p269) target = $region52
        $region51: #{oa_forward.1} parent=43 // pred_region
          %272 = dma.done [#allocation10], 1024
        $region52: #{oa_forward.1} parent=43 // pred_fallthru
          _
        %s273 = sand.u32 %s44, 1
        %s274 = scalar_lea.sflag [#allocation7], %s273
        %s275 = sand.u32 %s44, 1
        %s276 = smul.addr %s275, 256
        %s277 = scalar_lea.vmem [#allocation6], %s276
        %p278 = pneg %p57
        %p279 = pneg %p54
        %p280 = pneg %p78
        %p281 = pneg %p75
        %p282 = pneg %p99
        %p283 = pneg %p96
        %p284 = pneg %p120
        %p285 = pneg %p117
        %p286 = pneg %p141
        %p287 = pneg %p138
        %p288 = pneg %p162
        %p289 = pneg %p159
        %p290 = pneg %p188
        %p291 = pneg %p185
        %s292 = sand.u32 %s175, 1
        %s293 = scalar_lea.sflag [#allocation8], %s292
        %s294 = sand.u32 %s175, 1
        %s295 = smul.addr %s294, 256
        %s296 = scalar_lea.vmem [#allocation11], %s295
        %p298 = scmp.eq.s32.totalorder %s29, 0
        // Predicated region
        $region53: #{oa_forward.1} parent=43 // pred_check
          %p299 = pneg %p298
        $region54: #{oa_forward.1} parent=43 // pred_check_branch
          %301 = sbr.rel (%p299) target = $region56
        $region55: #{oa_forward.1} parent=43 // pred_region
          %v302 = vld [vmem:[%s264] sm:$0xff]
          %v303 = vld [vmem:[%s264 + $0x8] sm:$0xff]
          %v304 = vld [vmem:[%s264 + $0x10] sm:$0xff]
          %v305 = vld [vmem:[%s264 + $0x18] sm:$0xff]
          %v306 = vld [vmem:[%s264 + $0x20] sm:$0xff]
          %v307 = vld [vmem:[%s264 + $0x28] sm:$0xff]
          %v308 = vld [vmem:[%s264 + $0x30] sm:$0xff]
          %v309 = vld [vmem:[%s264 + $0x38] sm:$0xff]
          %v310 = vld [vmem:[%s264 + $0x40] sm:$0xff]
          %v311 = vld [vmem:[%s264 + $0x48] sm:$0xff]
          %v312 = vld [vmem:[%s264 + $0x50] sm:$0xff]
          %v313 = vld [vmem:[%s264 + $0x58] sm:$0xff]
          %v314 = vld [vmem:[%s264 + $0x60] sm:$0xff]
          %v315 = vld [vmem:[%s264 + $0x68] sm:$0xff]
          %v316 = vld [vmem:[%s264 + $0x70] sm:$0xff]
          %v317 = vld [vmem:[%s264 + $0x78] sm:$0xff]
          %v318 = vld [vmem:[%s264 + $0x80] sm:$0xff]
          %v319 = vld [vmem:[%s264 + $0x88] sm:$0xff]
          %v320 = vld [vmem:[%s264 + $0x90] sm:$0xff]
          %v321 = vld [vmem:[%s264 + $0x98] sm:$0xff]
          %v322 = vld [vmem:[%s264 + $0xa0] sm:$0xff]
          %v323 = vld [vmem:[%s264 + $0xa8] sm:$0xff]
          %v324 = vld [vmem:[%s264 + $0xb0] sm:$0xff]
          %v325 = vld [vmem:[%s264 + $0xb8] sm:$0xff]
          %v326 = vld [vmem:[%s264 + $0xc0] sm:$0xff]
          %v327 = vld [vmem:[%s264 + $0xc8] sm:$0xff]
          %v328 = vld [vmem:[%s264 + $0xd0] sm:$0xff]
          %v329 = vld [vmem:[%s264 + $0xd8] sm:$0xff]
          %v330 = vld [vmem:[%s264 + $0xe0] sm:$0xff]
          %v331 = vld [vmem:[%s264 + $0xe8] sm:$0xff]
          %v332 = vld [vmem:[%s264 + $0xf0] sm:$0xff]
          %v333 = vld [vmem:[%s264 + $0xf8] sm:$0xff]
          %334 = vxpose.xlu0.b32.start [1/16] %v302, 128
          %335 = vxpose.xlu0.b32.cont [2/16] %v304, 128
          %336 = vxpose.xlu0.b32.cont [3/16] %v306, 128
          %337 = vxpose.xlu0.b32.cont [4/16] %v308, 128
          %338 = vxpose.xlu0.b32.cont [5/16] %v310, 128
          %339 = vxpose.xlu0.b32.cont [6/16] %v312, 128
          %340 = vxpose.xlu0.b32.cont [7/16] %v314, 128
          %341 = vxpose.xlu0.b32.cont [8/16] %v316, 128
          %342 = vxpose.xlu0.b32.cont [9/16] %v318, 128
          %343 = vxpose.xlu0.b32.cont [10/16] %v320, 128
          %344 = vxpose.xlu0.b32.cont [11/16] %v322, 128
          %345 = vxpose.xlu0.b32.cont [12/16] %v324, 128
          %346 = vxpose.xlu0.b32.cont [13/16] %v326, 128
          %347 = vxpose.xlu0.b32.cont [14/16] %v328, 128
          %348 = vxpose.xlu0.b32.cont [15/16] %v330, 128
          %349 = vxpose.xlu0.b32.end [16/16] %v332, 128
          %v350 = vpop.trf.xlu0
          %v351 = vpop.trf.xlu0
          %v352 = vpop.trf.xlu0
          %v353 = vpop.trf.xlu0
          %v354 = vpop.trf.xlu0
          %v355 = vpop.trf.xlu0
          %v356 = vpop.trf.xlu0
          %v357 = vpop.trf.xlu0
          %v358 = vpop.trf.xlu0
          %v359 = vpop.trf.xlu0
          %v360 = vpop.trf.xlu0
          %v361 = vpop.trf.xlu0
          %v362 = vpop.trf.xlu0
          %v363 = vpop.trf.xlu0
          %v364 = vpop.trf.xlu0
          %v365 = vpop.trf.xlu0
          %366 = vxpose.xlu0.b32.start [1/16] %v303, 128
          %367 = vxpose.xlu0.b32.cont [2/16] %v305, 128
          %368 = vxpose.xlu0.b32.cont [3/16] %v307, 128
          %369 = vxpose.xlu0.b32.cont [4/16] %v309, 128
          %370 = vxpose.xlu0.b32.cont [5/16] %v311, 128
          %371 = vxpose.xlu0.b32.cont [6/16] %v313, 128
          %372 = vxpose.xlu0.b32.cont [7/16] %v315, 128
          %373 = vxpose.xlu0.b32.cont [8/16] %v317, 128
          %374 = vxpose.xlu0.b32.cont [9/16] %v319, 128
          %375 = vxpose.xlu0.b32.cont [10/16] %v321, 128
          %376 = vxpose.xlu0.b32.cont [11/16] %v323, 128
          %377 = vxpose.xlu0.b32.cont [12/16] %v325, 128
          %378 = vxpose.xlu0.b32.cont [13/16] %v327, 128
          %379 = vxpose.xlu0.b32.cont [14/16] %v329, 128
          %380 = vxpose.xlu0.b32.cont [15/16] %v331, 128
          %381 = vxpose.xlu0.b32.end [16/16] %v333, 128
          %v382 = vpop.trf.xlu0
          %v383 = vpop.trf.xlu0
          %v384 = vpop.trf.xlu0
          %v385 = vpop.trf.xlu0
          %v386 = vpop.trf.xlu0
          %v387 = vpop.trf.xlu0
          %v388 = vpop.trf.xlu0
          %v389 = vpop.trf.xlu0
          %v390 = vpop.trf.xlu0
          %v391 = vpop.trf.xlu0
          %v392 = vpop.trf.xlu0
          %v393 = vpop.trf.xlu0
          %v394 = vpop.trf.xlu0
          %v395 = vpop.trf.xlu0
          %v396 = vpop.trf.xlu0
          %v397 = vpop.trf.xlu0
          %398 = vst [vmem:[#allocation2] sm:$0xff] %v350
          %399 = vst [vmem:[#allocation2 + $0x8] sm:$0xff] %v351
          %400 = vst [vmem:[#allocation2 + $0x10] sm:$0xff] %v352
          %401 = vst [vmem:[#allocation2 + $0x18] sm:$0xff] %v353
          %402 = vst [vmem:[#allocation2 + $0x20] sm:$0xff] %v354
          %403 = vst [vmem:[#allocation2 + $0x28] sm:$0xff] %v355
          %404 = vst [vmem:[#allocation2 + $0x30] sm:$0xff] %v356
          %405 = vst [vmem:[#allocation2 + $0x38] sm:$0xff] %v357
          %406 = vst [vmem:[#allocation2 + $0x40] sm:$0xff] %v358
          %407 = vst [vmem:[#allocation2 + $0x48] sm:$0xff] %v359
          %408 = vst [vmem:[#allocation2 + $0x50] sm:$0xff] %v360
          %409 = vst [vmem:[#allocation2 + $0x58] sm:$0xff] %v361
          %410 = vst [vmem:[#allocation2 + $0x60] sm:$0xff] %v362
          %411 = vst [vmem:[#allocation2 + $0x68] sm:$0xff] %v363
          %412 = vst [vmem:[#allocation2 + $0x70] sm:$0xff] %v364
          %413 = vst [vmem:[#allocation2 + $0x78] sm:$0xff] %v365
          %414 = vst [vmem:[#allocation2 + $0x80] sm:$0xff] %v382
          %415 = vst [vmem:[#allocation2 + $0x88] sm:$0xff] %v383
          %416 = vst [vmem:[#allocation2 + $0x90] sm:$0xff] %v384
          %417 = vst [vmem:[#allocation2 + $0x98] sm:$0xff] %v385
          %418 = vst [vmem:[#allocation2 + $0xa0] sm:$0xff] %v386
          %419 = vst [vmem:[#allocation2 + $0xa8] sm:$0xff] %v387
          %420 = vst [vmem:[#allocation2 + $0xb0] sm:$0xff] %v388
          %421 = vst [vmem:[#allocation2 + $0xb8] sm:$0xff] %v389
          %422 = vst [vmem:[#allocation2 + $0xc0] sm:$0xff] %v390
          %423 = vst [vmem:[#allocation2 + $0xc8] sm:$0xff] %v391
          %424 = vst [vmem:[#allocation2 + $0xd0] sm:$0xff] %v392
          %425 = vst [vmem:[#allocation2 + $0xd8] sm:$0xff] %v393
          %426 = vst [vmem:[#allocation2 + $0xe0] sm:$0xff] %v394
          %427 = vst [vmem:[#allocation2 + $0xe8] sm:$0xff] %v395
          %428 = vst [vmem:[#allocation2 + $0xf0] sm:$0xff] %v396
          %429 = vst [vmem:[#allocation2 + $0xf8] sm:$0xff] %v397
          %v430 = vpack.c.bf16 %v351, %v350
          %v431 = vpack.c.bf16 %v353, %v352
          %v432 = vpack.c.bf16 %v355, %v354
          %v433 = vpack.c.bf16 %v357, %v356
          %v434 = vpack.c.bf16 %v359, %v358
          %v435 = vpack.c.bf16 %v361, %v360
          %v436 = vpack.c.bf16 %v363, %v362
          %v437 = vpack.c.bf16 %v365, %v364
          %v438 = vpack.c.bf16 %v383, %v382
          %v439 = vpack.c.bf16 %v385, %v384
          %v440 = vpack.c.bf16 %v387, %v386
          %v441 = vpack.c.bf16 %v389, %v388
          %v442 = vpack.c.bf16 %v391, %v390
          %v443 = vpack.c.bf16 %v393, %v392
          %v444 = vpack.c.bf16 %v395, %v394
          %v445 = vpack.c.bf16 %v397, %v396
          %v446 = vld [vmem:[%s1] sm:$0xf]
          %v447 = vld [vmem:[%s1 + $0x4] sm:$0xf]
          %v448 = vld [vmem:[%s1 + $0x8] sm:$0xf]
          %v449 = vld [vmem:[%s1 + $0xc] sm:$0xf]
          %v450 = vld [vmem:[%s1 + $0x10] sm:$0xf]
          %v451 = vld [vmem:[%s1 + $0x14] sm:$0xf]
          %v452 = vld [vmem:[%s1 + $0x18] sm:$0xf]
          %v453 = vld [vmem:[%s1 + $0x1c] sm:$0xf]
          %v454 = vld [vmem:[%s1 + $0x20] sm:$0xf]
          %v455 = vld [vmem:[%s1 + $0x24] sm:$0xf]
          %v456 = vld [vmem:[%s1 + $0x28] sm:$0xf]
          %v457 = vld [vmem:[%s1 + $0x2c] sm:$0xf]
          %v458 = vld [vmem:[%s1 + $0x30] sm:$0xf]
          %v459 = vld [vmem:[%s1 + $0x34] sm:$0xf]
          %v460 = vld [vmem:[%s1 + $0x38] sm:$0xf]
          %v461 = vld [vmem:[%s1 + $0x3c] sm:$0xf]
          %v478 = vunpack.c.l.b16 %v446
          %v479 = vunpack.c.l.b16 %v447
          %v480 = vunpack.c.l.b16 %v448
          %v481 = vunpack.c.l.b16 %v449
          %v482 = vunpack.c.l.b16 %v450
          %v483 = vunpack.c.l.b16 %v451
          %v484 = vunpack.c.l.b16 %v452
          %v485 = vunpack.c.l.b16 %v453
          %v486 = vunpack.c.l.b16 %v454
          %v487 = vunpack.c.l.b16 %v455
          %v488 = vunpack.c.l.b16 %v456
          %v489 = vunpack.c.l.b16 %v457
          %v490 = vunpack.c.l.b16 %v458
          %v491 = vunpack.c.l.b16 %v459
          %v492 = vunpack.c.l.b16 %v460
          %v493 = vunpack.c.l.b16 %v461
          %v494 = vpack.c.b16 %v479, %v478
          %v495 = vpack.c.b16 %v481, %v480
          %v496 = vpack.c.b16 %v483, %v482
          %v497 = vpack.c.b16 %v485, %v484
          %v498 = vpack.c.b16 %v487, %v486
          %v499 = vpack.c.b16 %v489, %v488
          %v500 = vpack.c.b16 %v491, %v490
          %v501 = vpack.c.b16 %v493, %v492
          %510 = vmatprep.subr.bf16.mxu0 0
          %511 = vmatpush1.bf16.msra.mxu0 %v501
          %512 = vmatprep.subr.bf16.mxu0 0
          %513 = vmatpush1.bf16.msra.mxu0 %v500
          %514 = vmatprep.subr.bf16.mxu0 0
          %515 = vmatpush1.bf16.msra.mxu0 %v499
          %516 = vmatprep.subr.bf16.mxu0 0
          %517 = vmatpush1.bf16.msra.mxu0 %v498
          %518 = vmatprep.subr.bf16.mxu0 0
          %519 = vmatpush1.bf16.msra.mxu0 %v497
          %520 = vmatprep.subr.bf16.mxu0 0
          %521 = vmatpush1.bf16.msra.mxu0 %v496
          %522 = vmatprep.subr.bf16.mxu0 0
          %523 = vmatpush1.bf16.msra.mxu0 %v495
          %524 = vmatprep.subr.bf16.mxu0 0
          %525 = vmatpush1.bf16.msra.mxu0 %v494
          %526 = vmatprep.subr.bf16.mxu0 0
          %527 = vmatpush2.bf16.msra.mxu0 0
          %528 = vmatprep.subr.bf16.mxu0 0
          %529 = vmatpush2.bf16.msra.mxu0 0
          %530 = vmatprep.subr.bf16.mxu0 0
          %531 = vmatpush2.bf16.msra.mxu0 0
          %532 = vmatprep.subr.bf16.mxu0 0
          %533 = vmatpush2.bf16.msra.mxu0 0
          %534 = vmatprep.subr.bf16.mxu0 0
          %535 = vmatpush2.bf16.msra.mxu0 0
          %536 = vmatprep.subr.bf16.mxu0 0
          %537 = vmatpush2.bf16.msra.mxu0 0
          %538 = vmatprep.subr.bf16.mxu0 0
          %539 = vmatpush2.bf16.msra.mxu0 0
          %540 = vmatprep.subr.bf16.mxu0 0
          %541 = vmatpush2.bf16.msra.mxu0 0
          %542 = vmatprep.mubr.bf16.mxu0 0
          %543 = vmatmul.mubr.bf16.gmra.mxu0 %v430
          %v544 = vpop.f32.mrf.mxu0
          %v545 = vadd.f32 0.0, %v544
          %v546 = vpop.f32.mrf.mxu0
          %v547 = vpop.f32.mrf.mxu0
          %v548 = vadd.f32 0.0, %v547
          %v549 = vpop.f32.mrf.mxu0
          %550 = vmatprep.mubr.bf16.mxu0 0
          %551 = vmatmul.mubr.bf16.gmra.mxu0 %v431
          %v552 = vpop.f32.mrf.mxu0
          %v553 = vadd.f32 0.0, %v552
          %v554 = vpop.f32.mrf.mxu0
          %v555 = vpop.f32.mrf.mxu0
          %v556 = vadd.f32 0.0, %v555
          %v557 = vpop.f32.mrf.mxu0
          %558 = vmatprep.mubr.bf16.mxu0 0
          %559 = vmatmul.mubr.bf16.gmra.mxu0 %v432
          %v560 = vpop.f32.mrf.mxu0
          %v561 = vadd.f32 0.0, %v560
          %v562 = vpop.f32.mrf.mxu0
          %v563 = vpop.f32.mrf.mxu0
          %v564 = vadd.f32 0.0, %v563
          %v565 = vpop.f32.mrf.mxu0
          %566 = vmatprep.mubr.bf16.mxu0 0
          %567 = vmatmul.mubr.bf16.gmra.mxu0 %v433
          %v568 = vpop.f32.mrf.mxu0
          %v569 = vadd.f32 0.0, %v568
          %v570 = vpop.f32.mrf.mxu0
          %v571 = vpop.f32.mrf.mxu0
          %v572 = vadd.f32 0.0, %v571
          %v573 = vpop.f32.mrf.mxu0
          %574 = vmatprep.mubr.bf16.mxu0 0
          %575 = vmatmul.mubr.bf16.gmra.mxu0 %v434
          %v576 = vpop.f32.mrf.mxu0
          %v577 = vadd.f32 0.0, %v576
          %v578 = vpop.f32.mrf.mxu0
          %v579 = vpop.f32.mrf.mxu0
          %v580 = vadd.f32 0.0, %v579
          %v581 = vpop.f32.mrf.mxu0
          %582 = vmatprep.mubr.bf16.mxu0 0
          %583 = vmatmul.mubr.bf16.gmra.mxu0 %v435
          %v584 = vpop.f32.mrf.mxu0
          %v585 = vadd.f32 0.0, %v584
          %v586 = vpop.f32.mrf.mxu0
          %v587 = vpop.f32.mrf.mxu0
          %v588 = vadd.f32 0.0, %v587
          %v589 = vpop.f32.mrf.mxu0
          %590 = vmatprep.mubr.bf16.mxu0 0
          %591 = vmatmul.mubr.bf16.gmra.mxu0 %v436
          %v592 = vpop.f32.mrf.mxu0
          %v593 = vadd.f32 0.0, %v592
          %v594 = vpop.f32.mrf.mxu0
          %v595 = vpop.f32.mrf.mxu0
          %v596 = vadd.f32 0.0, %v595
          %v597 = vpop.f32.mrf.mxu0
          %598 = vmatprep.mubr.bf16.mxu0 0
          %599 = vmatmul.mubr.bf16.gmra.mxu0 %v437
          %v600 = vpop.f32.mrf.mxu0
          %v601 = vadd.f32 0.0, %v600
          %v602 = vpop.f32.mrf.mxu0
          %v603 = vpop.f32.mrf.mxu0
          %v604 = vadd.f32 0.0, %v603
          %v605 = vpop.f32.mrf.mxu0
          %606 = vmatprep.mubr.bf16.mxu0 0
          %607 = vmatmul.mubr.bf16.gmra.mxu0 %v438
          %v608 = vpop.f32.mrf.mxu0
          %v609 = vadd.f32 0.0, %v608
          %v610 = vpop.f32.mrf.mxu0
          %v611 = vpop.f32.mrf.mxu0
          %v612 = vadd.f32 0.0, %v611
          %v613 = vpop.f32.mrf.mxu0
          %614 = vmatprep.mubr.bf16.mxu0 0
          %615 = vmatmul.mubr.bf16.gmra.mxu0 %v439
          %v616 = vpop.f32.mrf.mxu0
          %v617 = vadd.f32 0.0, %v616
          %v618 = vpop.f32.mrf.mxu0
          %v619 = vpop.f32.mrf.mxu0
          %v620 = vadd.f32 0.0, %v619
          %v621 = vpop.f32.mrf.mxu0
          %622 = vmatprep.mubr.bf16.mxu0 0
          %623 = vmatmul.mubr.bf16.gmra.mxu0 %v440
          %v624 = vpop.f32.mrf.mxu0
          %v625 = vadd.f32 0.0, %v624
          %v626 = vpop.f32.mrf.mxu0
          %v627 = vpop.f32.mrf.mxu0
          %v628 = vadd.f32 0.0, %v627
          %v629 = vpop.f32.mrf.mxu0
          %630 = vmatprep.mubr.bf16.mxu0 0
          %631 = vmatmul.mubr.bf16.gmra.mxu0 %v441
          %v632 = vpop.f32.mrf.mxu0
          %v633 = vadd.f32 0.0, %v632
          %v634 = vpop.f32.mrf.mxu0
          %v635 = vpop.f32.mrf.mxu0
          %v636 = vadd.f32 0.0, %v635
          %v637 = vpop.f32.mrf.mxu0
          %638 = vmatprep.mubr.bf16.mxu0 0
          %639 = vmatmul.mubr.bf16.gmra.mxu0 %v442
          %v640 = vpop.f32.mrf.mxu0
          %v641 = vadd.f32 0.0, %v640
          %v642 = vpop.f32.mrf.mxu0
          %v643 = vpop.f32.mrf.mxu0
          %v644 = vadd.f32 0.0, %v643
          %v645 = vpop.f32.mrf.mxu0
          %646 = vmatprep.mubr.bf16.mxu0 0
          %647 = vmatmul.mubr.bf16.gmra.mxu0 %v443
          %v648 = vpop.f32.mrf.mxu0
          %v649 = vadd.f32 0.0, %v648
          %v650 = vpop.f32.mrf.mxu0
          %v651 = vpop.f32.mrf.mxu0
          %v652 = vadd.f32 0.0, %v651
          %v653 = vpop.f32.mrf.mxu0
          %654 = vmatprep.mubr.bf16.mxu0 0
          %655 = vmatmul.mubr.bf16.gmra.mxu0 %v444
          %v656 = vpop.f32.mrf.mxu0
          %v657 = vadd.f32 0.0, %v656
          %v658 = vpop.f32.mrf.mxu0
          %v659 = vpop.f32.mrf.mxu0
          %v660 = vadd.f32 0.0, %v659
          %v661 = vpop.f32.mrf.mxu0
          %662 = vmatprep.mubr.bf16.mxu0 0
          %663 = vmatmul.mubr.bf16.gmra.mxu0 %v445
          %v664 = vpop.f32.mrf.mxu0
          %v665 = vadd.f32 0.0, %v664
          %v666 = vpop.f32.mrf.mxu0
          %v667 = vpop.f32.mrf.mxu0
          %v668 = vadd.f32 0.0, %v667
          %v669 = vpop.f32.mrf.mxu0
          %670 = vdwg.mxu0
          %v671 = vpack.c.bf16 %v548, %v545
          %v672 = vpack.c.bf16 %v556, %v553
          %v673 = vpack.c.bf16 %v564, %v561
          %v674 = vpack.c.bf16 %v572, %v569
          %v675 = vpack.c.bf16 %v580, %v577
          %v676 = vpack.c.bf16 %v588, %v585
          %v677 = vpack.c.bf16 %v596, %v593
          %v678 = vpack.c.bf16 %v604, %v601
          %v679 = vpack.c.bf16 %v612, %v609
          %v680 = vpack.c.bf16 %v620, %v617
          %v681 = vpack.c.bf16 %v628, %v625
          %v682 = vpack.c.bf16 %v636, %v633
          %v683 = vpack.c.bf16 %v644, %v641
          %v684 = vpack.c.bf16 %v652, %v649
          %v685 = vpack.c.bf16 %v660, %v657
          %v686 = vpack.c.bf16 %v668, %v665
          %v703 = vunpack.c.l.b16 %v671
          %v704 = vunpack.c.h.b16 %v671
          %v705 = vunpack.c.l.b16 %v672
          %v706 = vunpack.c.h.b16 %v672
          %v707 = vunpack.c.l.b16 %v673
          %v708 = vunpack.c.h.b16 %v673
          %v709 = vunpack.c.l.b16 %v674
          %v710 = vunpack.c.h.b16 %v674
          %v711 = vunpack.c.l.b16 %v675
          %v712 = vunpack.c.h.b16 %v675
          %v713 = vunpack.c.l.b16 %v676
          %v714 = vunpack.c.h.b16 %v676
          %v715 = vunpack.c.l.b16 %v677
          %v716 = vunpack.c.h.b16 %v677
          %v717 = vunpack.c.l.b16 %v678
          %v718 = vunpack.c.h.b16 %v678
          %v719 = vunpack.c.l.b16 %v679
          %v720 = vunpack.c.h.b16 %v679
          %v721 = vunpack.c.l.b16 %v680
          %v722 = vunpack.c.h.b16 %v680
          %v723 = vunpack.c.l.b16 %v681
          %v724 = vunpack.c.h.b16 %v681
          %v725 = vunpack.c.l.b16 %v682
          %v726 = vunpack.c.h.b16 %v682
          %v727 = vunpack.c.l.b16 %v683
          %v728 = vunpack.c.h.b16 %v683
          %v729 = vunpack.c.l.b16 %v684
          %v730 = vunpack.c.h.b16 %v684
          %v731 = vunpack.c.l.b16 %v685
          %v732 = vunpack.c.h.b16 %v685
          %v733 = vunpack.c.l.b16 %v686
          %v734 = vunpack.c.h.b16 %v686
          %v735 = vpack.c.b16 %v703, %v703
          %v736 = vpack.c.b16 %v704, %v704
          %v737 = vpack.c.b16 %v705, %v705
          %v738 = vpack.c.b16 %v706, %v706
          %v739 = vpack.c.b16 %v707, %v707
          %v740 = vpack.c.b16 %v708, %v708
          %v741 = vpack.c.b16 %v709, %v709
          %v742 = vpack.c.b16 %v710, %v710
          %v743 = vpack.c.b16 %v711, %v711
          %v744 = vpack.c.b16 %v712, %v712
          %v745 = vpack.c.b16 %v713, %v713
          %v746 = vpack.c.b16 %v714, %v714
          %v747 = vpack.c.b16 %v715, %v715
          %v748 = vpack.c.b16 %v716, %v716
          %v749 = vpack.c.b16 %v717, %v717
          %v750 = vpack.c.b16 %v718, %v718
          %v751 = vpack.c.b16 %v719, %v719
          %v752 = vpack.c.b16 %v720, %v720
          %v753 = vpack.c.b16 %v721, %v721
          %v754 = vpack.c.b16 %v722, %v722
          %v755 = vpack.c.b16 %v723, %v723
          %v756 = vpack.c.b16 %v724, %v724
          %v757 = vpack.c.b16 %v725, %v725
          %v758 = vpack.c.b16 %v726, %v726
          %v759 = vpack.c.b16 %v727, %v727
          %v760 = vpack.c.b16 %v728, %v728
          %v761 = vpack.c.b16 %v729, %v729
          %v762 = vpack.c.b16 %v730, %v730
          %v763 = vpack.c.b16 %v731, %v731
          %v764 = vpack.c.b16 %v732, %v732
          %v765 = vpack.c.b16 %v733, %v733
          %v766 = vpack.c.b16 %v734, %v734
          %vm799 = vcmask 257024
          %800 = vst.msk [vmem:[#allocation3] sm:$0xf] %vm799, %v735
          %801 = vst.msk [vmem:[#allocation3 + $0x4] sm:$0xf] %vm799, %v736
          %802 = vst.msk [vmem:[#allocation3 + $0x8] sm:$0xf] %vm799, %v737
          %803 = vst.msk [vmem:[#allocation3 + $0xc] sm:$0xf] %vm799, %v738
          %804 = vst.msk [vmem:[#allocation3 + $0x10] sm:$0xf] %vm799, %v739
          %805 = vst.msk [vmem:[#allocation3 + $0x14] sm:$0xf] %vm799, %v740
          %806 = vst.msk [vmem:[#allocation3 + $0x18] sm:$0xf] %vm799, %v741
          %807 = vst.msk [vmem:[#allocation3 + $0x1c] sm:$0xf] %vm799, %v742
          %808 = vst.msk [vmem:[#allocation3 + $0x20] sm:$0xf] %vm799, %v743
          %809 = vst.msk [vmem:[#allocation3 + $0x24] sm:$0xf] %vm799, %v744
          %810 = vst.msk [vmem:[#allocation3 + $0x28] sm:$0xf] %vm799, %v745
          %811 = vst.msk [vmem:[#allocation3 + $0x2c] sm:$0xf] %vm799, %v746
          %812 = vst.msk [vmem:[#allocation3 + $0x30] sm:$0xf] %vm799, %v747
          %813 = vst.msk [vmem:[#allocation3 + $0x34] sm:$0xf] %vm799, %v748
          %814 = vst.msk [vmem:[#allocation3 + $0x38] sm:$0xf] %vm799, %v749
          %815 = vst.msk [vmem:[#allocation3 + $0x3c] sm:$0xf] %vm799, %v750
          %816 = vst.msk [vmem:[#allocation3 + $0x40] sm:$0xf] %vm799, %v751
          %817 = vst.msk [vmem:[#allocation3 + $0x44] sm:$0xf] %vm799, %v752
          %818 = vst.msk [vmem:[#allocation3 + $0x48] sm:$0xf] %vm799, %v753
          %819 = vst.msk [vmem:[#allocation3 + $0x4c] sm:$0xf] %vm799, %v754
          %820 = vst.msk [vmem:[#allocation3 + $0x50] sm:$0xf] %vm799, %v755
          %821 = vst.msk [vmem:[#allocation3 + $0x54] sm:$0xf] %vm799, %v756
          %822 = vst.msk [vmem:[#allocation3 + $0x58] sm:$0xf] %vm799, %v757
          %823 = vst.msk [vmem:[#allocation3 + $0x5c] sm:$0xf] %vm799, %v758
          %824 = vst.msk [vmem:[#allocation3 + $0x60] sm:$0xf] %vm799, %v759
          %825 = vst.msk [vmem:[#allocation3 + $0x64] sm:$0xf] %vm799, %v760
          %826 = vst.msk [vmem:[#allocation3 + $0x68] sm:$0xf] %vm799, %v761
          %827 = vst.msk [vmem:[#allocation3 + $0x6c] sm:$0xf] %vm799, %v762
          %828 = vst.msk [vmem:[#allocation3 + $0x70] sm:$0xf] %vm799, %v763
          %829 = vst.msk [vmem:[#allocation3 + $0x74] sm:$0xf] %vm799, %v764
          %830 = vst.msk [vmem:[#allocation3 + $0x78] sm:$0xf] %vm799, %v765
          %831 = vst.msk [vmem:[#allocation3 + $0x7c] sm:$0xf] %vm799, %v766
          %832 = vst [vmem:[#allocation4] sm:$0xff] 0.0
          %833 = vst [vmem:[#allocation4 + $0x8] sm:$0xff] 0.0
          %834 = vst [vmem:[#allocation4 + $0x10] sm:$0xff] 0.0
          %835 = vst [vmem:[#allocation4 + $0x18] sm:$0xff] 0.0
          %836 = vst [vmem:[#allocation4 + $0x20] sm:$0xff] 0.0
          %837 = vst [vmem:[#allocation4 + $0x28] sm:$0xff] 0.0
          %838 = vst [vmem:[#allocation4 + $0x30] sm:$0xff] 0.0
          %839 = vst [vmem:[#allocation4 + $0x38] sm:$0xff] 0.0
          %840 = vst [vmem:[#allocation4 + $0x40] sm:$0xff] 0.0
          %841 = vst [vmem:[#allocation4 + $0x48] sm:$0xff] 0.0
          %842 = vst [vmem:[#allocation4 + $0x50] sm:$0xff] 0.0
          %843 = vst [vmem:[#allocation4 + $0x58] sm:$0xff] 0.0
          %844 = vst [vmem:[#allocation4 + $0x60] sm:$0xff] 0.0
          %845 = vst [vmem:[#allocation4 + $0x68] sm:$0xff] 0.0
          %846 = vst [vmem:[#allocation4 + $0x70] sm:$0xff] 0.0
          %847 = vst [vmem:[#allocation4 + $0x78] sm:$0xff] 0.0
          %848 = vst [vmem:[#allocation4 + $0x80] sm:$0xff] 0.0
          %849 = vst [vmem:[#allocation4 + $0x88] sm:$0xff] 0.0
          %850 = vst [vmem:[#allocation4 + $0x90] sm:$0xff] 0.0
          %851 = vst [vmem:[#allocation4 + $0x98] sm:$0xff] 0.0
          %852 = vst [vmem:[#allocation4 + $0xa0] sm:$0xff] 0.0
          %853 = vst [vmem:[#allocation4 + $0xa8] sm:$0xff] 0.0
          %854 = vst [vmem:[#allocation4 + $0xb0] sm:$0xff] 0.0
          %855 = vst [vmem:[#allocation4 + $0xb8] sm:$0xff] 0.0
          %856 = vst [vmem:[#allocation4 + $0xc0] sm:$0xff] 0.0
          %857 = vst [vmem:[#allocation4 + $0xc8] sm:$0xff] 0.0
          %858 = vst [vmem:[#allocation4 + $0xd0] sm:$0xff] 0.0
          %859 = vst [vmem:[#allocation4 + $0xd8] sm:$0xff] 0.0
          %860 = vst [vmem:[#allocation4 + $0xe0] sm:$0xff] 0.0
          %861 = vst [vmem:[#allocation4 + $0xe8] sm:$0xff] 0.0
          %862 = vst [vmem:[#allocation4 + $0xf0] sm:$0xff] 0.0
          %863 = vst [vmem:[#allocation4 + $0xf8] sm:$0xff] 0.0
          %vm864 = vcmask 7168
          %865 = vst.msk [vmem:[#allocation5] sm:$0xff] %vm864, 0.0
          %866 = vst.msk [vmem:[#allocation5 + $0x8] sm:$0xff] %vm864, 0.0
          %867 = vst.msk [vmem:[#allocation5 + $0x10] sm:$0xff] %vm864, 0.0
          %868 = vst.msk [vmem:[#allocation5 + $0x18] sm:$0xff] %vm864, 0.0
          %869 = vst.msk [vmem:[#allocation5 + $0x20] sm:$0xff] %vm864, 0.0
          %870 = vst.msk [vmem:[#allocation5 + $0x28] sm:$0xff] %vm864, 0.0
          %871 = vst.msk [vmem:[#allocation5 + $0x30] sm:$0xff] %vm864, 0.0
          %872 = vst.msk [vmem:[#allocation5 + $0x38] sm:$0xff] %vm864, 0.0
          %873 = vst.msk [vmem:[#allocation5 + $0x40] sm:$0xff] %vm864, 0.0
          %874 = vst.msk [vmem:[#allocation5 + $0x48] sm:$0xff] %vm864, 0.0
          %875 = vst.msk [vmem:[#allocation5 + $0x50] sm:$0xff] %vm864, 0.0
          %876 = vst.msk [vmem:[#allocation5 + $0x58] sm:$0xff] %vm864, 0.0
          %877 = vst.msk [vmem:[#allocation5 + $0x60] sm:$0xff] %vm864, 0.0
          %878 = vst.msk [vmem:[#allocation5 + $0x68] sm:$0xff] %vm864, 0.0
          %879 = vst.msk [vmem:[#allocation5 + $0x70] sm:$0xff] %vm864, 0.0
          %880 = vst.msk [vmem:[#allocation5 + $0x78] sm:$0xff] %vm864, 0.0
          %881 = vst.msk [vmem:[#allocation5 + $0x80] sm:$0xff] %vm864, 0.0
          %882 = vst.msk [vmem:[#allocation5 + $0x88] sm:$0xff] %vm864, 0.0
          %883 = vst.msk [vmem:[#allocation5 + $0x90] sm:$0xff] %vm864, 0.0
          %884 = vst.msk [vmem:[#allocation5 + $0x98] sm:$0xff] %vm864, 0.0
          %885 = vst.msk [vmem:[#allocation5 + $0xa0] sm:$0xff] %vm864, 0.0
          %886 = vst.msk [vmem:[#allocation5 + $0xa8] sm:$0xff] %vm864, 0.0
          %887 = vst.msk [vmem:[#allocation5 + $0xb0] sm:$0xff] %vm864, 0.0
          %888 = vst.msk [vmem:[#allocation5 + $0xb8] sm:$0xff] %vm864, 0.0
          %889 = vst.msk [vmem:[#allocation5 + $0xc0] sm:$0xff] %vm864, 0.0
          %890 = vst.msk [vmem:[#allocation5 + $0xc8] sm:$0xff] %vm864, 0.0
          %891 = vst.msk [vmem:[#allocation5 + $0xd0] sm:$0xff] %vm864, 0.0
          %892 = vst.msk [vmem:[#allocation5 + $0xd8] sm:$0xff] %vm864, 0.0
          %893 = vst.msk [vmem:[#allocation5 + $0xe0] sm:$0xff] %vm864, 0.0
          %894 = vst.msk [vmem:[#allocation5 + $0xe8] sm:$0xff] %vm864, 0.0
          %895 = vst.msk [vmem:[#allocation5 + $0xf0] sm:$0xff] %vm864, 0.0
          %896 = vst.msk [vmem:[#allocation5 + $0xf8] sm:$0xff] %vm864, 0.0
        $region56: #{oa_forward.1} parent=43 // pred_fallthru
          _
        %s897 = smul.u32 %s29, 128
        %s898 = sshra.s32 %s897, 3
        %s899 = sand.u32 %s897, 7
        %s900 = smul.addr %s898, 4
        %s901 = scalar_lea.vmem [#allocation3], %s900
        %v902 = vld [vmem:[%s901] sm:$0xf]
        %v903 = vld [vmem:[%s901 + $0x4] sm:$0xf]
        %v904 = vld [vmem:[%s901 + $0x8] sm:$0xf]
        %v905 = vld [vmem:[%s901 + $0xc] sm:$0xf]
        %v906 = vld [vmem:[%s901 + $0x10] sm:$0xf]
        %v907 = vld [vmem:[%s901 + $0x14] sm:$0xf]
        %v908 = vld [vmem:[%s901 + $0x18] sm:$0xf]
        %v909 = vld [vmem:[%s901 + $0x1c] sm:$0xf]
        %v910 = vld [vmem:[%s901 + $0x20] sm:$0xf]
        %v911 = vld [vmem:[%s901 + $0x24] sm:$0xf]
        %v912 = vld [vmem:[%s901 + $0x28] sm:$0xf]
        %v913 = vld [vmem:[%s901 + $0x2c] sm:$0xf]
        %v914 = vld [vmem:[%s901 + $0x30] sm:$0xf]
        %v915 = vld [vmem:[%s901 + $0x34] sm:$0xf]
        %v916 = vld [vmem:[%s901 + $0x38] sm:$0xf]
        %v917 = vld [vmem:[%s901 + $0x3c] sm:$0xf]
        %s918 = scalar_lea.vmem [#allocation2], %s897
        %v919 = vld [vmem:[%s918] sm:$0xff]
        %v920 = vld [vmem:[%s918 + $0x8] sm:$0xff]
        %v921 = vld [vmem:[%s918 + $0x10] sm:$0xff]
        %v922 = vld [vmem:[%s918 + $0x18] sm:$0xff]
        %v923 = vld [vmem:[%s918 + $0x20] sm:$0xff]
        %v924 = vld [vmem:[%s918 + $0x28] sm:$0xff]
        %v925 = vld [vmem:[%s918 + $0x30] sm:$0xff]
        %v926 = vld [vmem:[%s918 + $0x38] sm:$0xff]
        %v927 = vld [vmem:[%s918 + $0x40] sm:$0xff]
        %v928 = vld [vmem:[%s918 + $0x48] sm:$0xff]
        %v929 = vld [vmem:[%s918 + $0x50] sm:$0xff]
        %v930 = vld [vmem:[%s918 + $0x58] sm:$0xff]
        %v931 = vld [vmem:[%s918 + $0x60] sm:$0xff]
        %v932 = vld [vmem:[%s918 + $0x68] sm:$0xff]
        %v933 = vld [vmem:[%s918 + $0x70] sm:$0xff]
        %v934 = vld [vmem:[%s918 + $0x78] sm:$0xff]
        %v935 = vld [vmem:[#allocation3] sm:$0xf]
        %v936 = vld [vmem:[#allocation3 + $0x4] sm:$0xf]
        %v937 = vld [vmem:[#allocation3 + $0x8] sm:$0xf]
        %v938 = vld [vmem:[#allocation3 + $0xc] sm:$0xf]
        %v939 = vld [vmem:[#allocation3 + $0x10] sm:$0xf]
        %v940 = vld [vmem:[#allocation3 + $0x14] sm:$0xf]
        %v941 = vld [vmem:[#allocation3 + $0x18] sm:$0xf]
        %v942 = vld [vmem:[#allocation3 + $0x1c] sm:$0xf]
        %v943 = vld [vmem:[#allocation3 + $0x20] sm:$0xf]
        %v944 = vld [vmem:[#allocation3 + $0x24] sm:$0xf]
        %v945 = vld [vmem:[#allocation3 + $0x28] sm:$0xf]
        %v946 = vld [vmem:[#allocation3 + $0x2c] sm:$0xf]
        %v947 = vld [vmem:[#allocation3 + $0x30] sm:$0xf]
        %v948 = vld [vmem:[#allocation3 + $0x34] sm:$0xf]
        %v949 = vld [vmem:[#allocation3 + $0x38] sm:$0xf]
        %v950 = vld [vmem:[#allocation3 + $0x3c] sm:$0xf]
        %v951 = vld [vmem:[#allocation3 + $0x40] sm:$0xf]
        %v952 = vld [vmem:[#allocation3 + $0x44] sm:$0xf]
        %v953 = vld [vmem:[#allocation3 + $0x48] sm:$0xf]
        %v954 = vld [vmem:[#allocation3 + $0x4c] sm:$0xf]
        %v955 = vld [vmem:[#allocation3 + $0x50] sm:$0xf]
        %v956 = vld [vmem:[#allocation3 + $0x54] sm:$0xf]
        %v957 = vld [vmem:[#allocation3 + $0x58] sm:$0xf]
        %v958 = vld [vmem:[#allocation3 + $0x5c] sm:$0xf]
        %v959 = vld [vmem:[#allocation3 + $0x60] sm:$0xf]
        %v960 = vld [vmem:[#allocation3 + $0x64] sm:$0xf]
        %v961 = vld [vmem:[#allocation3 + $0x68] sm:$0xf]
        %v962 = vld [vmem:[#allocation3 + $0x6c] sm:$0xf]
        %v963 = vld [vmem:[#allocation3 + $0x70] sm:$0xf]
        %v964 = vld [vmem:[#allocation3 + $0x74] sm:$0xf]
        %v965 = vld [vmem:[#allocation3 + $0x78] sm:$0xf]
        %v966 = vld [vmem:[#allocation3 + $0x7c] sm:$0xf]
        %v983 = vunpack.c.l.b16 %v902
        %v984 = vunpack.c.l.b16 %v903
        %v985 = vunpack.c.l.b16 %v904
        %v986 = vunpack.c.l.b16 %v905
        %v987 = vunpack.c.l.b16 %v906
        %v988 = vunpack.c.l.b16 %v907
        %v989 = vunpack.c.l.b16 %v908
        %v990 = vunpack.c.l.b16 %v909
        %v991 = vunpack.c.l.b16 %v910
        %v992 = vunpack.c.l.b16 %v911
        %v993 = vunpack.c.l.b16 %v912
        %v994 = vunpack.c.l.b16 %v913
        %v995 = vunpack.c.l.b16 %v914
        %v996 = vunpack.c.l.b16 %v915
        %v997 = vunpack.c.l.b16 %v916
        %v998 = vunpack.c.l.b16 %v917
        %v999 = vpack.c.b16 %v984, %v983
        %v1000 = vpack.c.b16 %v986, %v985
        %v1001 = vpack.c.b16 %v988, %v987
        %v1002 = vpack.c.b16 %v990, %v989
        %v1003 = vpack.c.b16 %v992, %v991
        %v1004 = vpack.c.b16 %v994, %v993
        %v1005 = vpack.c.b16 %v996, %v995
        %v1006 = vpack.c.b16 %v998, %v997
        %v1039 = vunpack.c.l.b16 %v935
        %v1040 = vunpack.c.l.b16 %v936
        %v1041 = vunpack.c.l.b16 %v937
        %v1042 = vunpack.c.l.b16 %v938
        %v1043 = vunpack.c.l.b16 %v939
        %v1044 = vunpack.c.l.b16 %v940
        %v1045 = vunpack.c.l.b16 %v941
        %v1046 = vunpack.c.l.b16 %v942
        %v1047 = vunpack.c.l.b16 %v943
        %v1048 = vunpack.c.l.b16 %v944
        %v1049 = vunpack.c.l.b16 %v945
        %v1050 = vunpack.c.l.b16 %v946
        %v1051 = vunpack.c.l.b16 %v947
        %v1052 = vunpack.c.l.b16 %v948
        %v1053 = vunpack.c.l.b16 %v949
        %v1054 = vunpack.c.l.b16 %v950
        %v1055 = vunpack.c.l.b16 %v951
        %v1056 = vunpack.c.l.b16 %v952
        %v1057 = vunpack.c.l.b16 %v953
        %v1058 = vunpack.c.l.b16 %v954
        %v1059 = vunpack.c.l.b16 %v955
        %v1060 = vunpack.c.l.b16 %v956
        %v1061 = vunpack.c.l.b16 %v957
        %v1062 = vunpack.c.l.b16 %v958
        %v1063 = vunpack.c.l.b16 %v959
        %v1064 = vunpack.c.l.b16 %v960
        %v1065 = vunpack.c.l.b16 %v961
        %v1066 = vunpack.c.l.b16 %v962
        %v1067 = vunpack.c.l.b16 %v963
        %v1068 = vunpack.c.l.b16 %v964
        %v1069 = vunpack.c.l.b16 %v965
        %v1070 = vunpack.c.l.b16 %v966
        %v1071 = vpack.c.b16 %v1040, %v1039
        %v1072 = vpack.c.b16 %v1042, %v1041
        %v1073 = vpack.c.b16 %v1044, %v1043
        %v1074 = vpack.c.b16 %v1046, %v1045
        %v1075 = vpack.c.b16 %v1048, %v1047
        %v1076 = vpack.c.b16 %v1050, %v1049
        %v1077 = vpack.c.b16 %v1052, %v1051
        %v1078 = vpack.c.b16 %v1054, %v1053
        %v1079 = vpack.c.b16 %v1056, %v1055
        %v1080 = vpack.c.b16 %v1058, %v1057
        %v1081 = vpack.c.b16 %v1060, %v1059
        %v1082 = vpack.c.b16 %v1062, %v1061
        %v1083 = vpack.c.b16 %v1064, %v1063
        %v1084 = vpack.c.b16 %v1066, %v1065
        %v1085 = vpack.c.b16 %v1068, %v1067
        %v1086 = vpack.c.b16 %v1070, %v1069
        %vm1087 = vcmask 261120
        %v1089 = vsel %vm1087, %v999, 0
        %v1092 = vsel %vm1087, %v1000, 0
        %v1095 = vsel %vm1087, %v1001, 0
        %v1098 = vsel %vm1087, %v1002, 0
        %v1101 = vsel %vm1087, %v1003, 0
        %v1104 = vsel %vm1087, %v1004, 0
        %v1107 = vsel %vm1087, %v1005, 0
        %v1110 = vsel %vm1087, %v1006, 0
        %v1113 = vsel %vm1087, %v1071, 0
        %v1116 = vsel %vm1087, %v1072, 0
        %v1119 = vsel %vm1087, %v1073, 0
        %v1122 = vsel %vm1087, %v1074, 0
        %v1125 = vsel %vm1087, %v1075, 0
        %v1128 = vsel %vm1087, %v1076, 0
        %v1131 = vsel %vm1087, %v1077, 0
        %v1134 = vsel %vm1087, %v1078, 0
        %v1137 = vsel %vm1087, %v1079, 0
        %v1140 = vsel %vm1087, %v1080, 0
        %v1143 = vsel %vm1087, %v1081, 0
        %v1146 = vsel %vm1087, %v1082, 0
        %v1149 = vsel %vm1087, %v1083, 0
        %v1152 = vsel %vm1087, %v1084, 0
        %v1155 = vsel %vm1087, %v1085, 0
        %v1158 = vsel %vm1087, %v1086, 0
        %1160 = vmatprep.subr.bf16.mxu0 0
        %1161 = vmatpush1.bf16.xpose.msra.mxu0 %v1134
        %1162 = vmatprep.subr.bf16.mxu0 0
        %1163 = vmatpush1.bf16.xpose.msra.mxu0 %v1131
        %1164 = vmatprep.subr.bf16.mxu0 0
        %1165 = vmatpush1.bf16.xpose.msra.mxu0 %v1128
        %1166 = vmatprep.subr.bf16.mxu0 0
        %1167 = vmatpush1.bf16.xpose.msra.mxu0 %v1125
        %1168 = vmatprep.subr.bf16.mxu0 0
        %1169 = vmatpush1.bf16.xpose.msra.mxu0 %v1122
        %1170 = vmatprep.subr.bf16.mxu0 0
        %1171 = vmatpush1.bf16.xpose.msra.mxu0 %v1119
        %1172 = vmatprep.subr.bf16.mxu0 0
        %1173 = vmatpush1.bf16.xpose.msra.mxu0 %v1116
        %1174 = vmatprep.subr.bf16.mxu0 0
        %1175 = vmatpush1.bf16.xpose.msra.mxu0 %v1113
        %1176 = vmatprep.subr.bf16.mxu0 0
        %1177 = vmatpush2.bf16.xpose.msra.mxu0 %v1158
        %1178 = vmatprep.subr.bf16.mxu0 0
        %1179 = vmatpush2.bf16.xpose.msra.mxu0 %v1155
        %1180 = vmatprep.subr.bf16.mxu0 0
        %1181 = vmatpush2.bf16.xpose.msra.mxu0 %v1152
        %1182 = vmatprep.subr.bf16.mxu0 0
        %1183 = vmatpush2.bf16.xpose.msra.mxu0 %v1149
        %1184 = vmatprep.subr.bf16.mxu0 0
        %1185 = vmatpush2.bf16.xpose.msra.mxu0 %v1146
        %1186 = vmatprep.subr.bf16.mxu0 0
        %1187 = vmatpush2.bf16.xpose.msra.mxu0 %v1143
        %1188 = vmatprep.subr.bf16.mxu0 0
        %1189 = vmatpush2.bf16.xpose.msra.mxu0 %v1140
        %1190 = vmatprep.subr.bf16.mxu0 0
        %1191 = vmatpush2.bf16.xpose.msra.mxu0 %v1137
        %1192 = vmatprep.mubr.bf16.mxu0 0
        %1193 = vmatmul.mubr.bf16.gmra.mxu0 %v1089
        %v1194 = vpop.f32.mrf.mxu0
        %v1195 = vadd.f32 0.0, %v1194
        %v1196 = vpop.f32.mrf.mxu0
        %v1197 = vadd.f32 0.0, %v1196
        %v1198 = vpop.f32.mrf.mxu0
        %v1199 = vadd.f32 0.0, %v1198
        %v1200 = vpop.f32.mrf.mxu0
        %v1201 = vadd.f32 0.0, %v1200
        %1202 = vmatprep.mubr.bf16.mxu0 0
        %1203 = vmatmul.mubr.bf16.gmra.mxu0 %v1092
        %v1204 = vpop.f32.mrf.mxu0
        %v1205 = vadd.f32 0.0, %v1204
        %v1206 = vpop.f32.mrf.mxu0
        %v1207 = vadd.f32 0.0, %v1206
        %v1208 = vpop.f32.mrf.mxu0
        %v1209 = vadd.f32 0.0, %v1208
        %v1210 = vpop.f32.mrf.mxu0
        %v1211 = vadd.f32 0.0, %v1210
        %1212 = vmatprep.mubr.bf16.mxu0 0
        %1213 = vmatmul.mubr.bf16.gmra.mxu0 %v1095
        %v1214 = vpop.f32.mrf.mxu0
        %v1215 = vadd.f32 0.0, %v1214
        %v1216 = vpop.f32.mrf.mxu0
        %v1217 = vadd.f32 0.0, %v1216
        %v1218 = vpop.f32.mrf.mxu0
        %v1219 = vadd.f32 0.0, %v1218
        %v1220 = vpop.f32.mrf.mxu0
        %v1221 = vadd.f32 0.0, %v1220
        %1222 = vmatprep.mubr.bf16.mxu0 0
        %1223 = vmatmul.mubr.bf16.gmra.mxu0 %v1098
        %v1224 = vpop.f32.mrf.mxu0
        %v1225 = vadd.f32 0.0, %v1224
        %v1226 = vpop.f32.mrf.mxu0
        %v1227 = vadd.f32 0.0, %v1226
        %v1228 = vpop.f32.mrf.mxu0
        %v1229 = vadd.f32 0.0, %v1228
        %v1230 = vpop.f32.mrf.mxu0
        %v1231 = vadd.f32 0.0, %v1230
        %1232 = vmatprep.mubr.bf16.mxu0 0
        %1233 = vmatmul.mubr.bf16.gmra.mxu0 %v1101
        %v1234 = vpop.f32.mrf.mxu0
        %v1235 = vadd.f32 0.0, %v1234
        %v1236 = vpop.f32.mrf.mxu0
        %v1237 = vadd.f32 0.0, %v1236
        %v1238 = vpop.f32.mrf.mxu0
        %v1239 = vadd.f32 0.0, %v1238
        %v1240 = vpop.f32.mrf.mxu0
        %v1241 = vadd.f32 0.0, %v1240
        %1242 = vmatprep.mubr.bf16.mxu0 0
        %1243 = vmatmul.mubr.bf16.gmra.mxu0 %v1104
        %v1244 = vpop.f32.mrf.mxu0
        %v1245 = vadd.f32 0.0, %v1244
        %v1246 = vpop.f32.mrf.mxu0
        %v1247 = vadd.f32 0.0, %v1246
        %v1248 = vpop.f32.mrf.mxu0
        %v1249 = vadd.f32 0.0, %v1248
        %v1250 = vpop.f32.mrf.mxu0
        %v1251 = vadd.f32 0.0, %v1250
        %1252 = vmatprep.mubr.bf16.mxu0 0
        %1253 = vmatmul.mubr.bf16.gmra.mxu0 %v1107
        %v1254 = vpop.f32.mrf.mxu0
        %v1255 = vadd.f32 0.0, %v1254
        %v1256 = vpop.f32.mrf.mxu0
        %v1257 = vadd.f32 0.0, %v1256
        %v1258 = vpop.f32.mrf.mxu0
        %v1259 = vadd.f32 0.0, %v1258
        %v1260 = vpop.f32.mrf.mxu0
        %v1261 = vadd.f32 0.0, %v1260
        %1262 = vmatprep.mubr.bf16.mxu0 0
        %1263 = vmatmul.mubr.bf16.gmra.mxu0 %v1110
        %v1264 = vpop.f32.mrf.mxu0
        %v1265 = vadd.f32 0.0, %v1264
        %v1266 = vpop.f32.mrf.mxu0
        %v1267 = vadd.f32 0.0, %v1266
        %v1268 = vpop.f32.mrf.mxu0
        %v1269 = vadd.f32 0.0, %v1268
        %v1270 = vpop.f32.mrf.mxu0
        %v1271 = vadd.f32 0.0, %v1270
        %1272 = vdwg.mxu0
        %v1273 = vmax.f32 %v1195, %v1197
        %1274 = vmax.xlane.f32.xlu0 %v1273
        %v1275 = vpop.xlane.xlu0 %1274
        %v1276 = vmax.f32 %v1199, %v1201
        %1277 = vmax.xlane.f32.xlu0 %v1276
        %v1278 = vpop.xlane.xlu0 %1277
        %v1279 = vmax.f32 %v1205, %v1207
        %1280 = vmax.xlane.f32.xlu0 %v1279
        %v1281 = vpop.xlane.xlu0 %1280
        %v1282 = vmax.f32 %v1209, %v1211
        %1283 = vmax.xlane.f32.xlu0 %v1282
        %v1284 = vpop.xlane.xlu0 %1283
        %v1285 = vmax.f32 %v1215, %v1217
        %1286 = vmax.xlane.f32.xlu0 %v1285
        %v1287 = vpop.xlane.xlu0 %1286
        %v1288 = vmax.f32 %v1219, %v1221
        %1289 = vmax.xlane.f32.xlu0 %v1288
        %v1290 = vpop.xlane.xlu0 %1289
        %v1291 = vmax.f32 %v1225, %v1227
        %1292 = vmax.xlane.f32.xlu0 %v1291
        %v1293 = vpop.xlane.xlu0 %1292
        %v1294 = vmax.f32 %v1229, %v1231
        %1295 = vmax.xlane.f32.xlu0 %v1294
        %v1296 = vpop.xlane.xlu0 %1295
        %v1297 = vmax.f32 %v1235, %v1237
        %1298 = vmax.xlane.f32.xlu0 %v1297
        %v1299 = vpop.xlane.xlu0 %1298
        %v1300 = vmax.f32 %v1239, %v1241
        %1301 = vmax.xlane.f32.xlu0 %v1300
        %v1302 = vpop.xlane.xlu0 %1301
        %v1303 = vmax.f32 %v1245, %v1247
        %1304 = vmax.xlane.f32.xlu0 %v1303
        %v1305 = vpop.xlane.xlu0 %1304
        %v1306 = vmax.f32 %v1249, %v1251
        %1307 = vmax.xlane.f32.xlu0 %v1306
        %v1308 = vpop.xlane.xlu0 %1307
        %v1309 = vmax.f32 %v1255, %v1257
        %1310 = vmax.xlane.f32.xlu0 %v1309
        %v1311 = vpop.xlane.xlu0 %1310
        %v1312 = vmax.f32 %v1259, %v1261
        %1313 = vmax.xlane.f32.xlu0 %v1312
        %v1314 = vpop.xlane.xlu0 %1313
        %v1315 = vmax.f32 %v1265, %v1267
        %1316 = vmax.xlane.f32.xlu0 %v1315
        %v1317 = vpop.xlane.xlu0 %1316
        %v1318 = vmax.f32 %v1269, %v1271
        %1319 = vmax.xlane.f32.xlu0 %v1318
        %v1320 = vpop.xlane.xlu0 %1319
        %v1321 = vsub.f32 %v1195, %v1275
        %v1322 = vsub.f32 %v1197, %v1275
        %v1323 = vsub.f32 %v1199, %v1278
        %v1324 = vsub.f32 %v1201, %v1278
        %v1325 = vsub.f32 %v1205, %v1281
        %v1326 = vsub.f32 %v1207, %v1281
        %v1327 = vsub.f32 %v1209, %v1284
        %v1328 = vsub.f32 %v1211, %v1284
        %v1329 = vsub.f32 %v1215, %v1287
        %v1330 = vsub.f32 %v1217, %v1287
        %v1331 = vsub.f32 %v1219, %v1290
        %v1332 = vsub.f32 %v1221, %v1290
        %v1333 = vsub.f32 %v1225, %v1293
        %v1334 = vsub.f32 %v1227, %v1293
        %v1335 = vsub.f32 %v1229, %v1296
        %v1336 = vsub.f32 %v1231, %v1296
        %v1337 = vsub.f32 %v1235, %v1299
        %v1338 = vsub.f32 %v1237, %v1299
        %v1339 = vsub.f32 %v1239, %v1302
        %v1340 = vsub.f32 %v1241, %v1302
        %v1341 = vsub.f32 %v1245, %v1305
        %v1342 = vsub.f32 %v1247, %v1305
        %v1343 = vsub.f32 %v1249, %v1308
        %v1344 = vsub.f32 %v1251, %v1308
        %v1345 = vsub.f32 %v1255, %v1311
        %v1346 = vsub.f32 %v1257, %v1311
        %v1347 = vsub.f32 %v1259, %v1314
        %v1348 = vsub.f32 %v1261, %v1314
        %v1349 = vsub.f32 %v1265, %v1317
        %v1350 = vsub.f32 %v1267, %v1317
        %v1351 = vsub.f32 %v1269, %v1320
        %v1352 = vsub.f32 %v1271, %v1320
        %v1353 = vmul.f32 %v1321, 1.442695
        %v1354 = vpow.pop %v1353
        %v1355 = vmul.f32 %v1322, 1.442695
        %v1356 = vpow.pop %v1355
        %v1357 = vmul.f32 %v1323, 1.442695
        %v1358 = vpow.pop %v1357
        %v1359 = vmul.f32 %v1324, 1.442695
        %v1360 = vpow.pop %v1359
        %v1361 = vmul.f32 %v1325, 1.442695
        %v1362 = vpow.pop %v1361
        %v1363 = vmul.f32 %v1326, 1.442695
        %v1364 = vpow.pop %v1363
        %v1365 = vmul.f32 %v1327, 1.442695
        %v1366 = vpow.pop %v1365
        %v1367 = vmul.f32 %v1328, 1.442695
        %v1368 = vpow.pop %v1367
        %v1369 = vmul.f32 %v1329, 1.442695
        %v1370 = vpow.pop %v1369
        %v1371 = vmul.f32 %v1330, 1.442695
        %v1372 = vpow.pop %v1371
        %v1373 = vmul.f32 %v1331, 1.442695
        %v1374 = vpow.pop %v1373
        %v1375 = vmul.f32 %v1332, 1.442695
        %v1376 = vpow.pop %v1375
        %v1377 = vmul.f32 %v1333, 1.442695
        %v1378 = vpow.pop %v1377
        %v1379 = vmul.f32 %v1334, 1.442695
        %v1380 = vpow.pop %v1379
        %v1381 = vmul.f32 %v1335, 1.442695
        %v1382 = vpow.pop %v1381
        %v1383 = vmul.f32 %v1336, 1.442695
        %v1384 = vpow.pop %v1383
        %v1385 = vmul.f32 %v1337, 1.442695
        %v1386 = vpow.pop %v1385
        %v1387 = vmul.f32 %v1338, 1.442695
        %v1388 = vpow.pop %v1387
        %v1389 = vmul.f32 %v1339, 1.442695
        %v1390 = vpow.pop %v1389
        %v1391 = vmul.f32 %v1340, 1.442695
        %v1392 = vpow.pop %v1391
        %v1393 = vmul.f32 %v1341, 1.442695
        %v1394 = vpow.pop %v1393
        %v1395 = vmul.f32 %v1342, 1.442695
        %v1396 = vpow.pop %v1395
        %v1397 = vmul.f32 %v1343, 1.442695
        %v1398 = vpow.pop %v1397
        %v1399 = vmul.f32 %v1344, 1.442695
        %v1400 = vpow.pop %v1399
        %v1401 = vmul.f32 %v1345, 1.442695
        %v1402 = vpow.pop %v1401
        %v1403 = vmul.f32 %v1346, 1.442695
        %v1404 = vpow.pop %v1403
        %v1405 = vmul.f32 %v1347, 1.442695
        %v1406 = vpow.pop %v1405
        %v1407 = vmul.f32 %v1348, 1.442695
        %v1408 = vpow.pop %v1407
        %v1409 = vmul.f32 %v1349, 1.442695
        %v1410 = vpow.pop %v1409
        %v1411 = vmul.f32 %v1350, 1.442695
        %v1412 = vpow.pop %v1411
        %v1413 = vmul.f32 %v1351, 1.442695
        %v1414 = vpow.pop %v1413
        %v1415 = vmul.f32 %v1352, 1.442695
        %v1416 = vpow.pop %v1415
        %v1417 = vadd.f32 %v1354, %v1356
        %1418 = vadd.xlane.f32.xlu0 %v1417
        %v1419 = vpop.xlane.xlu0 %1418
        %v1420 = vadd.f32 %v1358, %v1360
        %1421 = vadd.xlane.f32.xlu0 %v1420
        %v1422 = vpop.xlane.xlu0 %1421
        %v1423 = vadd.f32 %v1362, %v1364
        %1424 = vadd.xlane.f32.xlu0 %v1423
        %v1425 = vpop.xlane.xlu0 %1424
        %v1426 = vadd.f32 %v1366, %v1368
        %1427 = vadd.xlane.f32.xlu0 %v1426
        %v1428 = vpop.xlane.xlu0 %1427
        %v1429 = vadd.f32 %v1370, %v1372
        %1430 = vadd.xlane.f32.xlu0 %v1429
        %v1431 = vpop.xlane.xlu0 %1430
        %v1432 = vadd.f32 %v1374, %v1376
        %1433 = vadd.xlane.f32.xlu0 %v1432
        %v1434 = vpop.xlane.xlu0 %1433
        %v1435 = vadd.f32 %v1378, %v1380
        %1436 = vadd.xlane.f32.xlu0 %v1435
        %v1437 = vpop.xlane.xlu0 %1436
        %v1438 = vadd.f32 %v1382, %v1384
        %1439 = vadd.xlane.f32.xlu0 %v1438
        %v1440 = vpop.xlane.xlu0 %1439
        %v1441 = vadd.f32 %v1386, %v1388
        %1442 = vadd.xlane.f32.xlu0 %v1441
        %v1443 = vpop.xlane.xlu0 %1442
        %v1444 = vadd.f32 %v1390, %v1392
        %1445 = vadd.xlane.f32.xlu0 %v1444
        %v1446 = vpop.xlane.xlu0 %1445
        %v1447 = vadd.f32 %v1394, %v1396
        %1448 = vadd.xlane.f32.xlu0 %v1447
        %v1449 = vpop.xlane.xlu0 %1448
        %v1450 = vadd.f32 %v1398, %v1400
        %1451 = vadd.xlane.f32.xlu0 %v1450
        %v1452 = vpop.xlane.xlu0 %1451
        %v1453 = vadd.f32 %v1402, %v1404
        %1454 = vadd.xlane.f32.xlu0 %v1453
        %v1455 = vpop.xlane.xlu0 %1454
        %v1456 = vadd.f32 %v1406, %v1408
        %1457 = vadd.xlane.f32.xlu0 %v1456
        %v1458 = vpop.xlane.xlu0 %1457
        %v1459 = vadd.f32 %v1410, %v1412
        %1460 = vadd.xlane.f32.xlu0 %v1459
        %v1461 = vpop.xlane.xlu0 %1460
        %v1462 = vadd.f32 %v1414, %v1416
        %1463 = vadd.xlane.f32.xlu0 %v1462
        %v1464 = vpop.xlane.xlu0 %1463
        %v1465 = vrcp.pop %v1419
        %v1466 = vrcp.pop %v1422
        %v1467 = vrcp.pop %v1425
        %v1468 = vrcp.pop %v1428
        %v1469 = vrcp.pop %v1431
        %v1470 = vrcp.pop %v1434
        %v1471 = vrcp.pop %v1437
        %v1472 = vrcp.pop %v1440
        %v1473 = vrcp.pop %v1443
        %v1474 = vrcp.pop %v1446
        %v1475 = vrcp.pop %v1449
        %v1476 = vrcp.pop %v1452
        %v1477 = vrcp.pop %v1455
        %v1478 = vrcp.pop %v1458
        %v1479 = vrcp.pop %v1461
        %v1480 = vrcp.pop %v1464
        %v1481 = vpack.c.bf16 %v1358, %v1354
        %v1482 = vpack.c.bf16 %v1360, %v1356
        %v1483 = vpack.c.bf16 %v1366, %v1362
        %v1484 = vpack.c.bf16 %v1368, %v1364
        %v1485 = vpack.c.bf16 %v1374, %v1370
        %v1486 = vpack.c.bf16 %v1376, %v1372
        %v1487 = vpack.c.bf16 %v1382, %v1378
        %v1488 = vpack.c.bf16 %v1384, %v1380
        %v1489 = vpack.c.bf16 %v1390, %v1386
        %v1490 = vpack.c.bf16 %v1392, %v1388
        %v1491 = vpack.c.bf16 %v1398, %v1394
        %v1492 = vpack.c.bf16 %v1400, %v1396
        %v1493 = vpack.c.bf16 %v1406, %v1402
        %v1494 = vpack.c.bf16 %v1408, %v1404
        %v1495 = vpack.c.bf16 %v1414, %v1410
        %v1496 = vpack.c.bf16 %v1416, %v1412
        %v1497 = vpack.c.bf16 %v920, %v919
        %v1498 = vpack.c.bf16 %v922, %v921
        %v1499 = vpack.c.bf16 %v924, %v923
        %v1500 = vpack.c.bf16 %v926, %v925
        %v1501 = vpack.c.bf16 %v928, %v927
        %v1502 = vpack.c.bf16 %v930, %v929
        %v1503 = vpack.c.bf16 %v932, %v931
        %v1504 = vpack.c.bf16 %v934, %v933
        %v1505 = vld [vmem:[%s2] sm:$0xf]
        %v1506 = vld [vmem:[%s2 + $0x4] sm:$0xf]
        %v1507 = vld [vmem:[%s2 + $0x8] sm:$0xf]
        %v1508 = vld [vmem:[%s2 + $0xc] sm:$0xf]
        %v1509 = vld [vmem:[%s2 + $0x10] sm:$0xf]
        %v1510 = vld [vmem:[%s2 + $0x14] sm:$0xf]
        %v1511 = vld [vmem:[%s2 + $0x18] sm:$0xf]
        %v1512 = vld [vmem:[%s2 + $0x1c] sm:$0xf]
        %v1513 = vld [vmem:[%s2 + $0x20] sm:$0xf]
        %v1514 = vld [vmem:[%s2 + $0x24] sm:$0xf]
        %v1515 = vld [vmem:[%s2 + $0x28] sm:$0xf]
        %v1516 = vld [vmem:[%s2 + $0x2c] sm:$0xf]
        %v1517 = vld [vmem:[%s2 + $0x30] sm:$0xf]
        %v1518 = vld [vmem:[%s2 + $0x34] sm:$0xf]
        %v1519 = vld [vmem:[%s2 + $0x38] sm:$0xf]
        %v1520 = vld [vmem:[%s2 + $0x3c] sm:$0xf]
        %v1521 = vld [vmem:[%s3] sm:$0x1]
        %v1523 = vlaneseq
        %v1524 = vshrl.u32 %v1523, 7
        %v1525 = vsub.s32 0, %v1524
        %v1526 = vrot.slane %v1521, %v1525
        %v1544 = vunpack.c.l.b16 %v1505
        %v1545 = vunpack.c.l.b16 %v1506
        %v1546 = vunpack.c.l.b16 %v1507
        %v1547 = vunpack.c.l.b16 %v1508
        %v1548 = vunpack.c.l.b16 %v1509
        %v1549 = vunpack.c.l.b16 %v1510
        %v1550 = vunpack.c.l.b16 %v1511
        %v1551 = vunpack.c.l.b16 %v1512
        %v1552 = vunpack.c.l.b16 %v1513
        %v1553 = vunpack.c.l.b16 %v1514
        %v1554 = vunpack.c.l.b16 %v1515
        %v1555 = vunpack.c.l.b16 %v1516
        %v1556 = vunpack.c.l.b16 %v1517
        %v1557 = vunpack.c.l.b16 %v1518
        %v1558 = vunpack.c.l.b16 %v1519
        %v1559 = vunpack.c.l.b16 %v1520
        %v1560 = vpack.c.b16 %v1545, %v1544
        %v1561 = vpack.c.b16 %v1547, %v1546
        %v1562 = vpack.c.b16 %v1549, %v1548
        %v1563 = vpack.c.b16 %v1551, %v1550
        %v1564 = vpack.c.b16 %v1553, %v1552
        %v1565 = vpack.c.b16 %v1555, %v1554
        %v1566 = vpack.c.b16 %v1557, %v1556
        %v1567 = vpack.c.b16 %v1559, %v1558
        %1576 = vmatprep.subr.bf16.mxu0 0
        %1577 = vmatpush1.bf16.msra.mxu0 %v1567
        %1578 = vmatprep.subr.bf16.mxu0 0
        %1579 = vmatpush1.bf16.msra.mxu0 %v1566
        %1580 = vmatprep.subr.bf16.mxu0 0
        %1581 = vmatpush1.bf16.msra.mxu0 %v1565
        %1582 = vmatprep.subr.bf16.mxu0 0
        %1583 = vmatpush1.bf16.msra.mxu0 %v1564
        %1584 = vmatprep.subr.bf16.mxu0 0
        %1585 = vmatpush1.bf16.msra.mxu0 %v1563
        %1586 = vmatprep.subr.bf16.mxu0 0
        %1587 = vmatpush1.bf16.msra.mxu0 %v1562
        %1588 = vmatprep.subr.bf16.mxu0 0
        %1589 = vmatpush1.bf16.msra.mxu0 %v1561
        %1590 = vmatprep.subr.bf16.mxu0 0
        %1591 = vmatpush1.bf16.msra.mxu0 %v1560
        %1592 = vmatprep.subr.bf16.mxu0 0
        %1593 = vmatpush2.bf16.msra.mxu0 0
        %1594 = vmatprep.subr.bf16.mxu0 0
        %1595 = vmatpush2.bf16.msra.mxu0 0
        %1596 = vmatprep.subr.bf16.mxu0 0
        %1597 = vmatpush2.bf16.msra.mxu0 0
        %1598 = vmatprep.subr.bf16.mxu0 0
        %1599 = vmatpush2.bf16.msra.mxu0 0
        %1600 = vmatprep.subr.bf16.mxu0 0
        %1601 = vmatpush2.bf16.msra.mxu0 0
        %1602 = vmatprep.subr.bf16.mxu0 0
        %1603 = vmatpush2.bf16.msra.mxu0 0
        %1604 = vmatprep.subr.bf16.mxu0 0
        %1605 = vmatpush2.bf16.msra.mxu0 0
        %1606 = vmatprep.subr.bf16.mxu0 0
        %1607 = vmatpush2.bf16.msra.mxu0 0
        %1608 = vmatprep.mubr.bf16.mxu0 0
        %1609 = vmatmul.mubr.bf16.gmra.mxu0 %v1497
        %v1610 = vpop.f32.mrf.mxu0
        %v1611 = vadd.f32 %v1526, %v1610
        %v1612 = vpop.f32.mrf.mxu0
        %v1613 = vpop.f32.mrf.mxu0
        %v1614 = vadd.f32 %v1526, %v1613
        %v1615 = vpop.f32.mrf.mxu0
        %1616 = vmatprep.mubr.bf16.mxu0 0
        %1617 = vmatmul.mubr.bf16.gmra.mxu0 %v1498
        %v1618 = vpop.f32.mrf.mxu0
        %v1619 = vadd.f32 %v1526, %v1618
        %v1620 = vpop.f32.mrf.mxu0
        %v1621 = vpop.f32.mrf.mxu0
        %v1622 = vadd.f32 %v1526, %v1621
        %v1623 = vpop.f32.mrf.mxu0
        %1624 = vmatprep.mubr.bf16.mxu0 0
        %1625 = vmatmul.mubr.bf16.gmra.mxu0 %v1499
        %v1626 = vpop.f32.mrf.mxu0
        %v1627 = vadd.f32 %v1526, %v1626
        %v1628 = vpop.f32.mrf.mxu0
        %v1629 = vpop.f32.mrf.mxu0
        %v1630 = vadd.f32 %v1526, %v1629
        %v1631 = vpop.f32.mrf.mxu0
        %1632 = vmatprep.mubr.bf16.mxu0 0
        %1633 = vmatmul.mubr.bf16.gmra.mxu0 %v1500
        %v1634 = vpop.f32.mrf.mxu0
        %v1635 = vadd.f32 %v1526, %v1634
        %v1636 = vpop.f32.mrf.mxu0
        %v1637 = vpop.f32.mrf.mxu0
        %v1638 = vadd.f32 %v1526, %v1637
        %v1639 = vpop.f32.mrf.mxu0
        %1640 = vmatprep.mubr.bf16.mxu0 0
        %1641 = vmatmul.mubr.bf16.gmra.mxu0 %v1501
        %v1642 = vpop.f32.mrf.mxu0
        %v1643 = vadd.f32 %v1526, %v1642
        %v1644 = vpop.f32.mrf.mxu0
        %v1645 = vpop.f32.mrf.mxu0
        %v1646 = vadd.f32 %v1526, %v1645
        %v1647 = vpop.f32.mrf.mxu0
        %1648 = vmatprep.mubr.bf16.mxu0 0
        %1649 = vmatmul.mubr.bf16.gmra.mxu0 %v1502
        %v1650 = vpop.f32.mrf.mxu0
        %v1651 = vadd.f32 %v1526, %v1650
        %v1652 = vpop.f32.mrf.mxu0
        %v1653 = vpop.f32.mrf.mxu0
        %v1654 = vadd.f32 %v1526, %v1653
        %v1655 = vpop.f32.mrf.mxu0
        %1656 = vmatprep.mubr.bf16.mxu0 0
        %1657 = vmatmul.mubr.bf16.gmra.mxu0 %v1503
        %v1658 = vpop.f32.mrf.mxu0
        %v1659 = vadd.f32 %v1526, %v1658
        %v1660 = vpop.f32.mrf.mxu0
        %v1661 = vpop.f32.mrf.mxu0
        %v1662 = vadd.f32 %v1526, %v1661
        %v1663 = vpop.f32.mrf.mxu0
        %1664 = vmatprep.mubr.bf16.mxu0 0
        %1665 = vmatmul.mubr.bf16.gmra.mxu0 %v1504
        %v1666 = vpop.f32.mrf.mxu0
        %v1667 = vadd.f32 %v1526, %v1666
        %v1668 = vpop.f32.mrf.mxu0
        %v1669 = vpop.f32.mrf.mxu0
        %v1670 = vadd.f32 %v1526, %v1669
        %v1671 = vpop.f32.mrf.mxu0
        %1672 = vdwg.mxu0
        %v1673 = vmul.f32 %v1611, %v1465
        %v1674 = vmul.f32 %v1614, %v1466
        %v1675 = vmul.f32 %v1619, %v1467
        %v1676 = vmul.f32 %v1622, %v1468
        %v1677 = vmul.f32 %v1627, %v1469
        %v1678 = vmul.f32 %v1630, %v1470
        %v1679 = vmul.f32 %v1635, %v1471
        %v1680 = vmul.f32 %v1638, %v1472
        %v1681 = vmul.f32 %v1643, %v1473
        %v1682 = vmul.f32 %v1646, %v1474
        %v1683 = vmul.f32 %v1651, %v1475
        %v1684 = vmul.f32 %v1654, %v1476
        %v1685 = vmul.f32 %v1659, %v1477
        %v1686 = vmul.f32 %v1662, %v1478
        %v1687 = vmul.f32 %v1667, %v1479
        %v1688 = vmul.f32 %v1670, %v1480
        %v1689 = vpack.c.bf16 %v1674, %v1673
        %v1690 = vpack.c.bf16 %v1676, %v1675
        %v1691 = vpack.c.bf16 %v1678, %v1677
        %v1692 = vpack.c.bf16 %v1680, %v1679
        %v1693 = vpack.c.bf16 %v1682, %v1681
        %v1694 = vpack.c.bf16 %v1684, %v1683
        %v1695 = vpack.c.bf16 %v1686, %v1685
        %v1696 = vpack.c.bf16 %v1688, %v1687
        %v1697 = vld [vmem:[#allocation4] sm:$0xff]
        %v1698 = vld [vmem:[#allocation4 + $0x8] sm:$0xff]
        %v1699 = vld [vmem:[#allocation4 + $0x10] sm:$0xff]
        %v1700 = vld [vmem:[#allocation4 + $0x18] sm:$0xff]
        %v1701 = vld [vmem:[#allocation4 + $0x20] sm:$0xff]
        %v1702 = vld [vmem:[#allocation4 + $0x28] sm:$0xff]
        %v1703 = vld [vmem:[#allocation4 + $0x30] sm:$0xff]
        %v1704 = vld [vmem:[#allocation4 + $0x38] sm:$0xff]
        %v1705 = vld [vmem:[#allocation4 + $0x40] sm:$0xff]
        %v1706 = vld [vmem:[#allocation4 + $0x48] sm:$0xff]
        %v1707 = vld [vmem:[#allocation4 + $0x50] sm:$0xff]
        %v1708 = vld [vmem:[#allocation4 + $0x58] sm:$0xff]
        %v1709 = vld [vmem:[#allocation4 + $0x60] sm:$0xff]
        %v1710 = vld [vmem:[#allocation4 + $0x68] sm:$0xff]
        %v1711 = vld [vmem:[#allocation4 + $0x70] sm:$0xff]
        %v1712 = vld [vmem:[#allocation4 + $0x78] sm:$0xff]
        %v1713 = vld [vmem:[#allocation4 + $0x80] sm:$0xff]
        %v1714 = vld [vmem:[#allocation4 + $0x88] sm:$0xff]
        %v1715 = vld [vmem:[#allocation4 + $0x90] sm:$0xff]
        %v1716 = vld [vmem:[#allocation4 + $0x98] sm:$0xff]
        %v1717 = vld [vmem:[#allocation4 + $0xa0] sm:$0xff]
        %v1718 = vld [vmem:[#allocation4 + $0xa8] sm:$0xff]
        %v1719 = vld [vmem:[#allocation4 + $0xb0] sm:$0xff]
        %v1720 = vld [vmem:[#allocation4 + $0xb8] sm:$0xff]
        %v1721 = vld [vmem:[#allocation4 + $0xc0] sm:$0xff]
        %v1722 = vld [vmem:[#allocation4 + $0xc8] sm:$0xff]
        %v1723 = vld [vmem:[#allocation4 + $0xd0] sm:$0xff]
        %v1724 = vld [vmem:[#allocation4 + $0xd8] sm:$0xff]
        %v1725 = vld [vmem:[#allocation4 + $0xe0] sm:$0xff]
        %v1726 = vld [vmem:[#allocation4 + $0xe8] sm:$0xff]
        %v1727 = vld [vmem:[#allocation4 + $0xf0] sm:$0xff]
        %v1728 = vld [vmem:[#allocation4 + $0xf8] sm:$0xff]
        %1729 = vxpose.xlu0.c.b16.start [1/8] %v1481, 128
        %1730 = vxpose.xlu0.c.b16.cont [2/8] %v1483, 128
        %1731 = vxpose.xlu0.c.b16.cont [3/8] %v1485, 128
        %1732 = vxpose.xlu0.c.b16.cont [4/8] %v1487, 128
        %1733 = vxpose.xlu0.c.b16.cont [5/8] %v1489, 128
        %1734 = vxpose.xlu0.c.b16.cont [6/8] %v1491, 128
        %1735 = vxpose.xlu0.c.b16.cont [7/8] %v1493, 128
        %1736 = vxpose.xlu0.c.b16.end [8/8] %v1495, 128
        %v1737 = vpop.trf.xlu0
        %v1738 = vpop.trf.xlu0
        %v1739 = vpop.trf.xlu0
        %v1740 = vpop.trf.xlu0
        %v1741 = vpop.trf.xlu0
        %v1742 = vpop.trf.xlu0
        %v1743 = vpop.trf.xlu0
        %v1744 = vpop.trf.xlu0
        %1745 = vxpose.xlu0.c.b16.start [1/8] %v1482, 128
        %1746 = vxpose.xlu0.c.b16.cont [2/8] %v1484, 128
        %1747 = vxpose.xlu0.c.b16.cont [3/8] %v1486, 128
        %1748 = vxpose.xlu0.c.b16.cont [4/8] %v1488, 128
        %1749 = vxpose.xlu0.c.b16.cont [5/8] %v1490, 128
        %1750 = vxpose.xlu0.c.b16.cont [6/8] %v1492, 128
        %1751 = vxpose.xlu0.c.b16.cont [7/8] %v1494, 128
        %1752 = vxpose.xlu0.c.b16.end [8/8] %v1496, 128
        %v1753 = vpop.trf.xlu0
        %v1754 = vpop.trf.xlu0
        %v1755 = vpop.trf.xlu0
        %v1756 = vpop.trf.xlu0
        %v1757 = vpop.trf.xlu0
        %v1758 = vpop.trf.xlu0
        %v1759 = vpop.trf.xlu0
        %v1760 = vpop.trf.xlu0
        %1761 = vmatprep.subr.bf16.mxu0 0
        %1762 = vmatpush1.bf16.msra.mxu0 %v1696
        %1763 = vmatprep.subr.bf16.mxu0 0
        %1764 = vmatpush1.bf16.msra.mxu0 %v1695
        %1765 = vmatprep.subr.bf16.mxu0 0
        %1766 = vmatpush1.bf16.msra.mxu0 %v1694
        %1767 = vmatprep.subr.bf16.mxu0 0
        %1768 = vmatpush1.bf16.msra.mxu0 %v1693
        %1769 = vmatprep.subr.bf16.mxu0 0
        %1770 = vmatpush1.bf16.msra.mxu0 %v1692
        %1771 = vmatprep.subr.bf16.mxu0 0
        %1772 = vmatpush1.bf16.msra.mxu0 %v1691
        %1773 = vmatprep.subr.bf16.mxu0 0
        %1774 = vmatpush1.bf16.msra.mxu0 %v1690
        %1775 = vmatprep.subr.bf16.mxu0 0
        %1776 = vmatpush1.bf16.msra.mxu0 %v1689
        %1777 = vmatprep.subr.bf16.mxu0 0
        %1778 = vmatpush2.bf16.msra.mxu0 0
        %1779 = vmatprep.subr.bf16.mxu0 0
        %1780 = vmatpush2.bf16.msra.mxu0 0
        %1781 = vmatprep.subr.bf16.mxu0 0
        %1782 = vmatpush2.bf16.msra.mxu0 0
        %1783 = vmatprep.subr.bf16.mxu0 0
        %1784 = vmatpush2.bf16.msra.mxu0 0
        %1785 = vmatprep.subr.bf16.mxu0 0
        %1786 = vmatpush2.bf16.msra.mxu0 0
        %1787 = vmatprep.subr.bf16.mxu0 0
        %1788 = vmatpush2.bf16.msra.mxu0 0
        %1789 = vmatprep.subr.bf16.mxu0 0
        %1790 = vmatpush2.bf16.msra.mxu0 0
        %1791 = vmatprep.subr.bf16.mxu0 0
        %1792 = vmatpush2.bf16.msra.mxu0 0
        %1793 = vmatprep.mubr.bf16.mxu0 0
        %1794 = vmatmul.mubr.bf16.gmra.mxu0 %v1737
        %v1795 = vpop.f32.mrf.mxu0
        %v1796 = vadd.f32 0.0, %v1795
        %v1797 = vpop.f32.mrf.mxu0
        %v1798 = vpop.f32.mrf.mxu0
        %v1799 = vadd.f32 0.0, %v1798
        %v1800 = vpop.f32.mrf.mxu0
        %1801 = vmatprep.mubr.bf16.mxu0 0
        %1802 = vmatmul.mubr.bf16.gmra.mxu0 %v1738
        %v1803 = vpop.f32.mrf.mxu0
        %v1804 = vadd.f32 0.0, %v1803
        %v1805 = vpop.f32.mrf.mxu0
        %v1806 = vpop.f32.mrf.mxu0
        %v1807 = vadd.f32 0.0, %v1806
        %v1808 = vpop.f32.mrf.mxu0
        %1809 = vmatprep.mubr.bf16.mxu0 0
        %1810 = vmatmul.mubr.bf16.gmra.mxu0 %v1739
        %v1811 = vpop.f32.mrf.mxu0
        %v1812 = vadd.f32 0.0, %v1811
        %v1813 = vpop.f32.mrf.mxu0
        %v1814 = vpop.f32.mrf.mxu0
        %v1815 = vadd.f32 0.0, %v1814
        %v1816 = vpop.f32.mrf.mxu0
        %1817 = vmatprep.mubr.bf16.mxu0 0
        %1818 = vmatmul.mubr.bf16.gmra.mxu0 %v1740
        %v1819 = vpop.f32.mrf.mxu0
        %v1820 = vadd.f32 0.0, %v1819
        %v1821 = vpop.f32.mrf.mxu0
        %v1822 = vpop.f32.mrf.mxu0
        %v1823 = vadd.f32 0.0, %v1822
        %v1824 = vpop.f32.mrf.mxu0
        %1825 = vmatprep.mubr.bf16.mxu0 0
        %1826 = vmatmul.mubr.bf16.gmra.mxu0 %v1741
        %v1827 = vpop.f32.mrf.mxu0
        %v1828 = vadd.f32 0.0, %v1827
        %v1829 = vpop.f32.mrf.mxu0
        %v1830 = vpop.f32.mrf.mxu0
        %v1831 = vadd.f32 0.0, %v1830
        %v1832 = vpop.f32.mrf.mxu0
        %1833 = vmatprep.mubr.bf16.mxu0 0
        %1834 = vmatmul.mubr.bf16.gmra.mxu0 %v1742
        %v1835 = vpop.f32.mrf.mxu0
        %v1836 = vadd.f32 0.0, %v1835
        %v1837 = vpop.f32.mrf.mxu0
        %v1838 = vpop.f32.mrf.mxu0
        %v1839 = vadd.f32 0.0, %v1838
        %v1840 = vpop.f32.mrf.mxu0
        %1841 = vmatprep.mubr.bf16.mxu0 0
        %1842 = vmatmul.mubr.bf16.gmra.mxu0 %v1743
        %v1843 = vpop.f32.mrf.mxu0
        %v1844 = vadd.f32 0.0, %v1843
        %v1845 = vpop.f32.mrf.mxu0
        %v1846 = vpop.f32.mrf.mxu0
        %v1847 = vadd.f32 0.0, %v1846
        %v1848 = vpop.f32.mrf.mxu0
        %1849 = vmatprep.mubr.bf16.mxu0 0
        %1850 = vmatmul.mubr.bf16.gmra.mxu0 %v1744
        %v1851 = vpop.f32.mrf.mxu0
        %v1852 = vadd.f32 0.0, %v1851
        %v1853 = vpop.f32.mrf.mxu0
        %v1854 = vpop.f32.mrf.mxu0
        %v1855 = vadd.f32 0.0, %v1854
        %v1856 = vpop.f32.mrf.mxu0
        %1857 = vmatprep.mubr.bf16.mxu0 0
        %1858 = vmatmul.mubr.bf16.gmra.mxu0 %v1753
        %v1859 = vpop.f32.mrf.mxu0
        %v1860 = vadd.f32 0.0, %v1859
        %v1861 = vpop.f32.mrf.mxu0
        %v1862 = vpop.f32.mrf.mxu0
        %v1863 = vadd.f32 0.0, %v1862
        %v1864 = vpop.f32.mrf.mxu0
        %1865 = vmatprep.mubr.bf16.mxu0 0
        %1866 = vmatmul.mubr.bf16.gmra.mxu0 %v1754
        %v1867 = vpop.f32.mrf.mxu0
        %v1868 = vadd.f32 0.0, %v1867
        %v1869 = vpop.f32.mrf.mxu0
        %v1870 = vpop.f32.mrf.mxu0
        %v1871 = vadd.f32 0.0, %v1870
        %v1872 = vpop.f32.mrf.mxu0
        %1873 = vmatprep.mubr.bf16.mxu0 0
        %1874 = vmatmul.mubr.bf16.gmra.mxu0 %v1755
        %v1875 = vpop.f32.mrf.mxu0
        %v1876 = vadd.f32 0.0, %v1875
        %v1877 = vpop.f32.mrf.mxu0
        %v1878 = vpop.f32.mrf.mxu0
        %v1879 = vadd.f32 0.0, %v1878
        %v1880 = vpop.f32.mrf.mxu0
        %1881 = vmatprep.mubr.bf16.mxu0 0
        %1882 = vmatmul.mubr.bf16.gmra.mxu0 %v1756
        %v1883 = vpop.f32.mrf.mxu0
        %v1884 = vadd.f32 0.0, %v1883
        %v1885 = vpop.f32.mrf.mxu0
        %v1886 = vpop.f32.mrf.mxu0
        %v1887 = vadd.f32 0.0, %v1886
        %v1888 = vpop.f32.mrf.mxu0
        %1889 = vmatprep.mubr.bf16.mxu0 0
        %1890 = vmatmul.mubr.bf16.gmra.mxu0 %v1757
        %v1891 = vpop.f32.mrf.mxu0
        %v1892 = vadd.f32 0.0, %v1891
        %v1893 = vpop.f32.mrf.mxu0
        %v1894 = vpop.f32.mrf.mxu0
        %v1895 = vadd.f32 0.0, %v1894
        %v1896 = vpop.f32.mrf.mxu0
        %1897 = vmatprep.mubr.bf16.mxu0 0
        %1898 = vmatmul.mubr.bf16.gmra.mxu0 %v1758
        %v1899 = vpop.f32.mrf.mxu0
        %v1900 = vadd.f32 0.0, %v1899
        %v1901 = vpop.f32.mrf.mxu0
        %v1902 = vpop.f32.mrf.mxu0
        %v1903 = vadd.f32 0.0, %v1902
        %v1904 = vpop.f32.mrf.mxu0
        %1905 = vmatprep.mubr.bf16.mxu0 0
        %1906 = vmatmul.mubr.bf16.gmra.mxu0 %v1759
        %v1907 = vpop.f32.mrf.mxu0
        %v1908 = vadd.f32 0.0, %v1907
        %v1909 = vpop.f32.mrf.mxu0
        %v1910 = vpop.f32.mrf.mxu0
        %v1911 = vadd.f32 0.0, %v1910
        %v1912 = vpop.f32.mrf.mxu0
        %1913 = vmatprep.mubr.bf16.mxu0 0
        %1914 = vmatmul.mubr.bf16.gmra.mxu0 %v1760
        %v1915 = vpop.f32.mrf.mxu0
        %v1916 = vadd.f32 0.0, %v1915
        %v1917 = vpop.f32.mrf.mxu0
        %v1918 = vpop.f32.mrf.mxu0
        %v1919 = vadd.f32 0.0, %v1918
        %v1920 = vpop.f32.mrf.mxu0
        %1921 = vdwg.mxu0
        %v1922 = vadd.f32 %v1697, %v1796
        %v1923 = vadd.f32 %v1698, %v1799
        %v1924 = vadd.f32 %v1699, %v1804
        %v1925 = vadd.f32 %v1700, %v1807
        %v1926 = vadd.f32 %v1701, %v1812
        %v1927 = vadd.f32 %v1702, %v1815
        %v1928 = vadd.f32 %v1703, %v1820
        %v1929 = vadd.f32 %v1704, %v1823
        %v1930 = vadd.f32 %v1705, %v1828
        %v1931 = vadd.f32 %v1706, %v1831
        %v1932 = vadd.f32 %v1707, %v1836
        %v1933 = vadd.f32 %v1708, %v1839
        %v1934 = vadd.f32 %v1709, %v1844
        %v1935 = vadd.f32 %v1710, %v1847
        %v1936 = vadd.f32 %v1711, %v1852
        %v1937 = vadd.f32 %v1712, %v1855
        %v1938 = vadd.f32 %v1713, %v1860
        %v1939 = vadd.f32 %v1714, %v1863
        %v1940 = vadd.f32 %v1715, %v1868
        %v1941 = vadd.f32 %v1716, %v1871
        %v1942 = vadd.f32 %v1717, %v1876
        %v1943 = vadd.f32 %v1718, %v1879
        %v1944 = vadd.f32 %v1719, %v1884
        %v1945 = vadd.f32 %v1720, %v1887
        %v1946 = vadd.f32 %v1721, %v1892
        %v1947 = vadd.f32 %v1722, %v1895
        %v1948 = vadd.f32 %v1723, %v1900
        %v1949 = vadd.f32 %v1724, %v1903
        %v1950 = vadd.f32 %v1725, %v1908
        %v1951 = vadd.f32 %v1726, %v1911
        %v1952 = vadd.f32 %v1727, %v1916
        %v1953 = vadd.f32 %v1728, %v1919
        %1954 = vst [vmem:[#allocation4] sm:$0xff] %v1922
        %1955 = vst [vmem:[#allocation4 + $0x8] sm:$0xff] %v1923
        %1956 = vst [vmem:[#allocation4 + $0x10] sm:$0xff] %v1924
        %1957 = vst [vmem:[#allocation4 + $0x18] sm:$0xff] %v1925
        %1958 = vst [vmem:[#allocation4 + $0x20] sm:$0xff] %v1926
        %1959 = vst [vmem:[#allocation4 + $0x28] sm:$0xff] %v1927
        %1960 = vst [vmem:[#allocation4 + $0x30] sm:$0xff] %v1928
        %1961 = vst [vmem:[#allocation4 + $0x38] sm:$0xff] %v1929
        %1962 = vst [vmem:[#allocation4 + $0x40] sm:$0xff] %v1930
        %1963 = vst [vmem:[#allocation4 + $0x48] sm:$0xff] %v1931
        %1964 = vst [vmem:[#allocation4 + $0x50] sm:$0xff] %v1932
        %1965 = vst [vmem:[#allocation4 + $0x58] sm:$0xff] %v1933
        %1966 = vst [vmem:[#allocation4 + $0x60] sm:$0xff] %v1934
        %1967 = vst [vmem:[#allocation4 + $0x68] sm:$0xff] %v1935
        %1968 = vst [vmem:[#allocation4 + $0x70] sm:$0xff] %v1936
        %1969 = vst [vmem:[#allocation4 + $0x78] sm:$0xff] %v1937
        %1970 = vst [vmem:[#allocation4 + $0x80] sm:$0xff] %v1938
        %1971 = vst [vmem:[#allocation4 + $0x88] sm:$0xff] %v1939
        %1972 = vst [vmem:[#allocation4 + $0x90] sm:$0xff] %v1940
        %1973 = vst [vmem:[#allocation4 + $0x98] sm:$0xff] %v1941
        %1974 = vst [vmem:[#allocation4 + $0xa0] sm:$0xff] %v1942
        %1975 = vst [vmem:[#allocation4 + $0xa8] sm:$0xff] %v1943
        %1976 = vst [vmem:[#allocation4 + $0xb0] sm:$0xff] %v1944
        %1977 = vst [vmem:[#allocation4 + $0xb8] sm:$0xff] %v1945
        %1978 = vst [vmem:[#allocation4 + $0xc0] sm:$0xff] %v1946
        %1979 = vst [vmem:[#allocation4 + $0xc8] sm:$0xff] %v1947
        %1980 = vst [vmem:[#allocation4 + $0xd0] sm:$0xff] %v1948
        %1981 = vst [vmem:[#allocation4 + $0xd8] sm:$0xff] %v1949
        %1982 = vst [vmem:[#allocation4 + $0xe0] sm:$0xff] %v1950
        %1983 = vst [vmem:[#allocation4 + $0xe8] sm:$0xff] %v1951
        %1984 = vst [vmem:[#allocation4 + $0xf0] sm:$0xff] %v1952
        %1985 = vst [vmem:[#allocation4 + $0xf8] sm:$0xff] %v1953
        %v1986 = vld [vmem:[#allocation5] sm:$0xff]
        %v1987 = vld [vmem:[#allocation5 + $0x8] sm:$0xff]
        %v1988 = vld [vmem:[#allocation5 + $0x10] sm:$0xff]
        %v1989 = vld [vmem:[#allocation5 + $0x18] sm:$0xff]
        %v1990 = vld [vmem:[#allocation5 + $0x20] sm:$0xff]
        %v1991 = vld [vmem:[#allocation5 + $0x28] sm:$0xff]
        %v1992 = vld [vmem:[#allocation5 + $0x30] sm:$0xff]
        %v1993 = vld [vmem:[#allocation5 + $0x38] sm:$0xff]
        %v1994 = vld [vmem:[#allocation5 + $0x40] sm:$0xff]
        %v1995 = vld [vmem:[#allocation5 + $0x48] sm:$0xff]
        %v1996 = vld [vmem:[#allocation5 + $0x50] sm:$0xff]
        %v1997 = vld [vmem:[#allocation5 + $0x58] sm:$0xff]
        %v1998 = vld [vmem:[#allocation5 + $0x60] sm:$0xff]
        %v1999 = vld [vmem:[#allocation5 + $0x68] sm:$0xff]
        %v2000 = vld [vmem:[#allocation5 + $0x70] sm:$0xff]
        %v2001 = vld [vmem:[#allocation5 + $0x78] sm:$0xff]
        %v2002 = vld [vmem:[#allocation5 + $0x80] sm:$0xff]
        %v2003 = vld [vmem:[#allocation5 + $0x88] sm:$0xff]
        %v2004 = vld [vmem:[#allocation5 + $0x90] sm:$0xff]
        %v2005 = vld [vmem:[#allocation5 + $0x98] sm:$0xff]
        %v2006 = vld [vmem:[#allocation5 + $0xa0] sm:$0xff]
        %v2007 = vld [vmem:[#allocation5 + $0xa8] sm:$0xff]
        %v2008 = vld [vmem:[#allocation5 + $0xb0] sm:$0xff]
        %v2009 = vld [vmem:[#allocation5 + $0xb8] sm:$0xff]
        %v2010 = vld [vmem:[#allocation5 + $0xc0] sm:$0xff]
        %v2011 = vld [vmem:[#allocation5 + $0xc8] sm:$0xff]
        %v2012 = vld [vmem:[#allocation5 + $0xd0] sm:$0xff]
        %v2013 = vld [vmem:[#allocation5 + $0xd8] sm:$0xff]
        %v2014 = vld [vmem:[#allocation5 + $0xe0] sm:$0xff]
        %v2015 = vld [vmem:[#allocation5 + $0xe8] sm:$0xff]
        %v2016 = vld [vmem:[#allocation5 + $0xf0] sm:$0xff]
        %v2017 = vld [vmem:[#allocation5 + $0xf8] sm:$0xff]
        %v2018 = vpack.c.bf16 %v1466, %v1465
        %v2019 = vpack.c.bf16 %v1468, %v1467
        %v2020 = vpack.c.bf16 %v1470, %v1469
        %v2021 = vpack.c.bf16 %v1472, %v1471
        %v2022 = vpack.c.bf16 %v1474, %v1473
        %v2023 = vpack.c.bf16 %v1476, %v1475
        %v2024 = vpack.c.bf16 %v1478, %v1477
        %v2025 = vpack.c.bf16 %v1480, %v1479
        %2026 = vmatprep.subr.bf16.mxu0 0
        %2027 = vmatpush1.bf16.msra.mxu0 %v2025
        %2028 = vmatprep.subr.bf16.mxu0 0
        %2029 = vmatpush1.bf16.msra.mxu0 %v2024
        %2030 = vmatprep.subr.bf16.mxu0 0
        %2031 = vmatpush1.bf16.msra.mxu0 %v2023
        %2032 = vmatprep.subr.bf16.mxu0 0
        %2033 = vmatpush1.bf16.msra.mxu0 %v2022
        %2034 = vmatprep.subr.bf16.mxu0 0
        %2035 = vmatpush1.bf16.msra.mxu0 %v2021
        %2036 = vmatprep.subr.bf16.mxu0 0
        %2037 = vmatpush1.bf16.msra.mxu0 %v2020
        %2038 = vmatprep.subr.bf16.mxu0 0
        %2039 = vmatpush1.bf16.msra.mxu0 %v2019
        %2040 = vmatprep.subr.bf16.mxu0 0
        %2041 = vmatpush1.bf16.msra.mxu0 %v2018
        %2042 = vmatprep.subr.bf16.mxu0 0
        %2043 = vmatpush2.bf16.msra.mxu0 0
        %2044 = vmatprep.subr.bf16.mxu0 0
        %2045 = vmatpush2.bf16.msra.mxu0 0
        %2046 = vmatprep.subr.bf16.mxu0 0
        %2047 = vmatpush2.bf16.msra.mxu0 0
        %2048 = vmatprep.subr.bf16.mxu0 0
        %2049 = vmatpush2.bf16.msra.mxu0 0
        %2050 = vmatprep.subr.bf16.mxu0 0
        %2051 = vmatpush2.bf16.msra.mxu0 0
        %2052 = vmatprep.subr.bf16.mxu0 0
        %2053 = vmatpush2.bf16.msra.mxu0 0
        %2054 = vmatprep.subr.bf16.mxu0 0
        %2055 = vmatpush2.bf16.msra.mxu0 0
        %2056 = vmatprep.subr.bf16.mxu0 0
        %2057 = vmatpush2.bf16.msra.mxu0 0
        %2058 = vmatprep.mubr.bf16.mxu0 0
        %2059 = vmatmul.mubr.bf16.gmra.mxu0 %v1737
        %v2060 = vpop.f32.mrf.mxu0
        %v2061 = vadd.f32 0.0, %v2060
        %v2062 = vpop.f32.mrf.mxu0
        %v2063 = vpop.f32.mrf.mxu0
        %v2064 = vadd.f32 0.0, %v2063
        %v2065 = vpop.f32.mrf.mxu0
        %2066 = vmatprep.mubr.bf16.mxu0 0
        %2067 = vmatmul.mubr.bf16.gmra.mxu0 %v1738
        %v2068 = vpop.f32.mrf.mxu0
        %v2069 = vadd.f32 0.0, %v2068
        %v2070 = vpop.f32.mrf.mxu0
        %v2071 = vpop.f32.mrf.mxu0
        %v2072 = vadd.f32 0.0, %v2071
        %v2073 = vpop.f32.mrf.mxu0
        %2074 = vmatprep.mubr.bf16.mxu0 0
        %2075 = vmatmul.mubr.bf16.gmra.mxu0 %v1739
        %v2076 = vpop.f32.mrf.mxu0
        %v2077 = vadd.f32 0.0, %v2076
        %v2078 = vpop.f32.mrf.mxu0
        %v2079 = vpop.f32.mrf.mxu0
        %v2080 = vadd.f32 0.0, %v2079
        %v2081 = vpop.f32.mrf.mxu0
        %2082 = vmatprep.mubr.bf16.mxu0 0
        %2083 = vmatmul.mubr.bf16.gmra.mxu0 %v1740
        %v2084 = vpop.f32.mrf.mxu0
        %v2085 = vadd.f32 0.0, %v2084
        %v2086 = vpop.f32.mrf.mxu0
        %v2087 = vpop.f32.mrf.mxu0
        %v2088 = vadd.f32 0.0, %v2087
        %v2089 = vpop.f32.mrf.mxu0
        %2090 = vmatprep.mubr.bf16.mxu0 0
        %2091 = vmatmul.mubr.bf16.gmra.mxu0 %v1741
        %v2092 = vpop.f32.mrf.mxu0
        %v2093 = vadd.f32 0.0, %v2092
        %v2094 = vpop.f32.mrf.mxu0
        %v2095 = vpop.f32.mrf.mxu0
        %v2096 = vadd.f32 0.0, %v2095
        %v2097 = vpop.f32.mrf.mxu0
        %2098 = vmatprep.mubr.bf16.mxu0 0
        %2099 = vmatmul.mubr.bf16.gmra.mxu0 %v1742
        %v2100 = vpop.f32.mrf.mxu0
        %v2101 = vadd.f32 0.0, %v2100
        %v2102 = vpop.f32.mrf.mxu0
        %v2103 = vpop.f32.mrf.mxu0
        %v2104 = vadd.f32 0.0, %v2103
        %v2105 = vpop.f32.mrf.mxu0
        %2106 = vmatprep.mubr.bf16.mxu0 0
        %2107 = vmatmul.mubr.bf16.gmra.mxu0 %v1743
        %v2108 = vpop.f32.mrf.mxu0
        %v2109 = vadd.f32 0.0, %v2108
        %v2110 = vpop.f32.mrf.mxu0
        %v2111 = vpop.f32.mrf.mxu0
        %v2112 = vadd.f32 0.0, %v2111
        %v2113 = vpop.f32.mrf.mxu0
        %2114 = vmatprep.mubr.bf16.mxu0 0
        %2115 = vmatmul.mubr.bf16.gmra.mxu0 %v1744
        %v2116 = vpop.f32.mrf.mxu0
        %v2117 = vadd.f32 0.0, %v2116
        %v2118 = vpop.f32.mrf.mxu0
        %v2119 = vpop.f32.mrf.mxu0
        %v2120 = vadd.f32 0.0, %v2119
        %v2121 = vpop.f32.mrf.mxu0
        %2122 = vmatprep.mubr.bf16.mxu0 0
        %2123 = vmatmul.mubr.bf16.gmra.mxu0 %v1753
        %v2124 = vpop.f32.mrf.mxu0
        %v2125 = vadd.f32 0.0, %v2124
        %v2126 = vpop.f32.mrf.mxu0
        %v2127 = vpop.f32.mrf.mxu0
        %v2128 = vadd.f32 0.0, %v2127
        %v2129 = vpop.f32.mrf.mxu0
        %2130 = vmatprep.mubr.bf16.mxu0 0
        %2131 = vmatmul.mubr.bf16.gmra.mxu0 %v1754
        %v2132 = vpop.f32.mrf.mxu0
        %v2133 = vadd.f32 0.0, %v2132
        %v2134 = vpop.f32.mrf.mxu0
        %v2135 = vpop.f32.mrf.mxu0
        %v2136 = vadd.f32 0.0, %v2135
        %v2137 = vpop.f32.mrf.mxu0
        %2138 = vmatprep.mubr.bf16.mxu0 0
        %2139 = vmatmul.mubr.bf16.gmra.mxu0 %v1755
        %v2140 = vpop.f32.mrf.mxu0
        %v2141 = vadd.f32 0.0, %v2140
        %v2142 = vpop.f32.mrf.mxu0
        %v2143 = vpop.f32.mrf.mxu0
        %v2144 = vadd.f32 0.0, %v2143
        %v2145 = vpop.f32.mrf.mxu0
        %2146 = vmatprep.mubr.bf16.mxu0 0
        %2147 = vmatmul.mubr.bf16.gmra.mxu0 %v1756
        %v2148 = vpop.f32.mrf.mxu0
        %v2149 = vadd.f32 0.0, %v2148
        %v2150 = vpop.f32.mrf.mxu0
        %v2151 = vpop.f32.mrf.mxu0
        %v2152 = vadd.f32 0.0, %v2151
        %v2153 = vpop.f32.mrf.mxu0
        %2154 = vmatprep.mubr.bf16.mxu0 0
        %2155 = vmatmul.mubr.bf16.gmra.mxu0 %v1757
        %v2156 = vpop.f32.mrf.mxu0
        %v2157 = vadd.f32 0.0, %v2156
        %v2158 = vpop.f32.mrf.mxu0
        %v2159 = vpop.f32.mrf.mxu0
        %v2160 = vadd.f32 0.0, %v2159
        %v2161 = vpop.f32.mrf.mxu0
        %2162 = vmatprep.mubr.bf16.mxu0 0
        %2163 = vmatmul.mubr.bf16.gmra.mxu0 %v1758
        %v2164 = vpop.f32.mrf.mxu0
        %v2165 = vadd.f32 0.0, %v2164
        %v2166 = vpop.f32.mrf.mxu0
        %v2167 = vpop.f32.mrf.mxu0
        %v2168 = vadd.f32 0.0, %v2167
        %v2169 = vpop.f32.mrf.mxu0
        %2170 = vmatprep.mubr.bf16.mxu0 0
        %2171 = vmatmul.mubr.bf16.gmra.mxu0 %v1759
        %v2172 = vpop.f32.mrf.mxu0
        %v2173 = vadd.f32 0.0, %v2172
        %v2174 = vpop.f32.mrf.mxu0
        %v2175 = vpop.f32.mrf.mxu0
        %v2176 = vadd.f32 0.0, %v2175
        %v2177 = vpop.f32.mrf.mxu0
        %2178 = vmatprep.mubr.bf16.mxu0 0
        %2179 = vmatmul.mubr.bf16.gmra.mxu0 %v1760
        %v2180 = vpop.f32.mrf.mxu0
        %v2181 = vadd.f32 0.0, %v2180
        %v2182 = vpop.f32.mrf.mxu0
        %v2183 = vpop.f32.mrf.mxu0
        %v2184 = vadd.f32 0.0, %v2183
        %v2185 = vpop.f32.mrf.mxu0
        %2186 = vdwg.mxu0
        %v2187 = vadd.f32 %v1986, %v2061
        %v2188 = vadd.f32 %v1987, %v2064
        %v2189 = vadd.f32 %v1988, %v2069
        %v2190 = vadd.f32 %v1989, %v2072
        %v2191 = vadd.f32 %v1990, %v2077
        %v2192 = vadd.f32 %v1991, %v2080
        %v2193 = vadd.f32 %v1992, %v2085
        %v2194 = vadd.f32 %v1993, %v2088
        %v2195 = vadd.f32 %v1994, %v2093
        %v2196 = vadd.f32 %v1995, %v2096
        %v2197 = vadd.f32 %v1996, %v2101
        %v2198 = vadd.f32 %v1997, %v2104
        %v2199 = vadd.f32 %v1998, %v2109
        %v2200 = vadd.f32 %v1999, %v2112
        %v2201 = vadd.f32 %v2000, %v2117
        %v2202 = vadd.f32 %v2001, %v2120
        %v2203 = vadd.f32 %v2002, %v2125
        %v2204 = vadd.f32 %v2003, %v2128
        %v2205 = vadd.f32 %v2004, %v2133
        %v2206 = vadd.f32 %v2005, %v2136
        %v2207 = vadd.f32 %v2006, %v2141
        %v2208 = vadd.f32 %v2007, %v2144
        %v2209 = vadd.f32 %v2008, %v2149
        %v2210 = vadd.f32 %v2009, %v2152
        %v2211 = vadd.f32 %v2010, %v2157
        %v2212 = vadd.f32 %v2011, %v2160
        %v2213 = vadd.f32 %v2012, %v2165
        %v2214 = vadd.f32 %v2013, %v2168
        %v2215 = vadd.f32 %v2014, %v2173
        %v2216 = vadd.f32 %v2015, %v2176
        %v2217 = vadd.f32 %v2016, %v2181
        %v2218 = vadd.f32 %v2017, %v2184
        %vm2219 = vcmask 7168
        %2220 = vst.msk [vmem:[#allocation5] sm:$0xff] %vm2219, %v2187
        %2221 = vst.msk [vmem:[#allocation5 + $0x8] sm:$0xff] %vm2219, %v2188
        %2222 = vst.msk [vmem:[#allocation5 + $0x10] sm:$0xff] %vm2219, %v2189
        %2223 = vst.msk [vmem:[#allocation5 + $0x18] sm:$0xff] %vm2219, %v2190
        %2224 = vst.msk [vmem:[#allocation5 + $0x20] sm:$0xff] %vm2219, %v2191
        %2225 = vst.msk [vmem:[#allocation5 + $0x28] sm:$0xff] %vm2219, %v2192
        %2226 = vst.msk [vmem:[#allocation5 + $0x30] sm:$0xff] %vm2219, %v2193
        %2227 = vst.msk [vmem:[#allocation5 + $0x38] sm:$0xff] %vm2219, %v2194
        %2228 = vst.msk [vmem:[#allocation5 + $0x40] sm:$0xff] %vm2219, %v2195
        %2229 = vst.msk [vmem:[#allocation5 + $0x48] sm:$0xff] %vm2219, %v2196
        %2230 = vst.msk [vmem:[#allocation5 + $0x50] sm:$0xff] %vm2219, %v2197
        %2231 = vst.msk [vmem:[#allocation5 + $0x58] sm:$0xff] %vm2219, %v2198
        %2232 = vst.msk [vmem:[#allocation5 + $0x60] sm:$0xff] %vm2219, %v2199
        %2233 = vst.msk [vmem:[#allocation5 + $0x68] sm:$0xff] %vm2219, %v2200
        %2234 = vst.msk [vmem:[#allocation5 + $0x70] sm:$0xff] %vm2219, %v2201
        %2235 = vst.msk [vmem:[#allocation5 + $0x78] sm:$0xff] %vm2219, %v2202
        %2236 = vst.msk [vmem:[#allocation5 + $0x80] sm:$0xff] %vm2219, %v2203
        %2237 = vst.msk [vmem:[#allocation5 + $0x88] sm:$0xff] %vm2219, %v2204
        %2238 = vst.msk [vmem:[#allocation5 + $0x90] sm:$0xff] %vm2219, %v2205
        %2239 = vst.msk [vmem:[#allocation5 + $0x98] sm:$0xff] %vm2219, %v2206
        %2240 = vst.msk [vmem:[#allocation5 + $0xa0] sm:$0xff] %vm2219, %v2207
        %2241 = vst.msk [vmem:[#allocation5 + $0xa8] sm:$0xff] %vm2219, %v2208
        %2242 = vst.msk [vmem:[#allocation5 + $0xb0] sm:$0xff] %vm2219, %v2209
        %2243 = vst.msk [vmem:[#allocation5 + $0xb8] sm:$0xff] %vm2219, %v2210
        %2244 = vst.msk [vmem:[#allocation5 + $0xc0] sm:$0xff] %vm2219, %v2211
        %2245 = vst.msk [vmem:[#allocation5 + $0xc8] sm:$0xff] %vm2219, %v2212
        %2246 = vst.msk [vmem:[#allocation5 + $0xd0] sm:$0xff] %vm2219, %v2213
        %2247 = vst.msk [vmem:[#allocation5 + $0xd8] sm:$0xff] %vm2219, %v2214
        %2248 = vst.msk [vmem:[#allocation5 + $0xe0] sm:$0xff] %vm2219, %v2215
        %2249 = vst.msk [vmem:[#allocation5 + $0xe8] sm:$0xff] %vm2219, %v2216
        %2250 = vst.msk [vmem:[#allocation5 + $0xf0] sm:$0xff] %vm2219, %v2217
        %2251 = vst.msk [vmem:[#allocation5 + $0xf8] sm:$0xff] %vm2219, %v2218
        %p2252 = scmp.eq.s32.totalorder %s29, 1
        // Predicated region
        $region57: #{oa_forward.1} parent=43 // pred_check
          %p2253 = pneg %p2252
        $region58: #{oa_forward.1} parent=43 // pred_check_branch
          %2255 = sbr.rel (%p2253) target = $region60
        $region59: #{oa_forward.1} parent=43 // pred_region
          %v2256 = vld [vmem:[#allocation2] sm:$0xff]
          %v2257 = vld [vmem:[#allocation2 + $0x8] sm:$0xff]
          %v2258 = vld [vmem:[#allocation2 + $0x10] sm:$0xff]
          %v2259 = vld [vmem:[#allocation2 + $0x18] sm:$0xff]
          %v2260 = vld [vmem:[#allocation2 + $0x20] sm:$0xff]
          %v2261 = vld [vmem:[#allocation2 + $0x28] sm:$0xff]
          %v2262 = vld [vmem:[#allocation2 + $0x30] sm:$0xff]
          %v2263 = vld [vmem:[#allocation2 + $0x38] sm:$0xff]
          %v2264 = vld [vmem:[#allocation2 + $0x40] sm:$0xff]
          %v2265 = vld [vmem:[#allocation2 + $0x48] sm:$0xff]
          %v2266 = vld [vmem:[#allocation2 + $0x50] sm:$0xff]
          %v2267 = vld [vmem:[#allocation2 + $0x58] sm:$0xff]
          %v2268 = vld [vmem:[#allocation2 + $0x60] sm:$0xff]
          %v2269 = vld [vmem:[#allocation2 + $0x68] sm:$0xff]
          %v2270 = vld [vmem:[#allocation2 + $0x70] sm:$0xff]
          %v2271 = vld [vmem:[#allocation2 + $0x78] sm:$0xff]
          %v2272 = vld [vmem:[#allocation2 + $0x80] sm:$0xff]
          %v2273 = vld [vmem:[#allocation2 + $0x88] sm:$0xff]
          %v2274 = vld [vmem:[#allocation2 + $0x90] sm:$0xff]
          %v2275 = vld [vmem:[#allocation2 + $0x98] sm:$0xff]
          %v2276 = vld [vmem:[#allocation2 + $0xa0] sm:$0xff]
          %v2277 = vld [vmem:[#allocation2 + $0xa8] sm:$0xff]
          %v2278 = vld [vmem:[#allocation2 + $0xb0] sm:$0xff]
          %v2279 = vld [vmem:[#allocation2 + $0xb8] sm:$0xff]
          %v2280 = vld [vmem:[#allocation2 + $0xc0] sm:$0xff]
          %v2281 = vld [vmem:[#allocation2 + $0xc8] sm:$0xff]
          %v2282 = vld [vmem:[#allocation2 + $0xd0] sm:$0xff]
          %v2283 = vld [vmem:[#allocation2 + $0xd8] sm:$0xff]
          %v2284 = vld [vmem:[#allocation2 + $0xe0] sm:$0xff]
          %v2285 = vld [vmem:[#allocation2 + $0xe8] sm:$0xff]
          %v2286 = vld [vmem:[#allocation2 + $0xf0] sm:$0xff]
          %v2287 = vld [vmem:[#allocation2 + $0xf8] sm:$0xff]
          %v2288 = vld [vmem:[#allocation4] sm:$0xff]
          %v2289 = vld [vmem:[#allocation4 + $0x8] sm:$0xff]
          %v2290 = vld [vmem:[#allocation4 + $0x10] sm:$0xff]
          %v2291 = vld [vmem:[#allocation4 + $0x18] sm:$0xff]
          %v2292 = vld [vmem:[#allocation4 + $0x20] sm:$0xff]
          %v2293 = vld [vmem:[#allocation4 + $0x28] sm:$0xff]
          %v2294 = vld [vmem:[#allocation4 + $0x30] sm:$0xff]
          %v2295 = vld [vmem:[#allocation4 + $0x38] sm:$0xff]
          %v2296 = vld [vmem:[#allocation4 + $0x40] sm:$0xff]
          %v2297 = vld [vmem:[#allocation4 + $0x48] sm:$0xff]
          %v2298 = vld [vmem:[#allocation4 + $0x50] sm:$0xff]
          %v2299 = vld [vmem:[#allocation4 + $0x58] sm:$0xff]
          %v2300 = vld [vmem:[#allocation4 + $0x60] sm:$0xff]
          %v2301 = vld [vmem:[#allocation4 + $0x68] sm:$0xff]
          %v2302 = vld [vmem:[#allocation4 + $0x70] sm:$0xff]
          %v2303 = vld [vmem:[#allocation4 + $0x78] sm:$0xff]
          %v2304 = vld [vmem:[#allocation4 + $0x80] sm:$0xff]
          %v2305 = vld [vmem:[#allocation4 + $0x88] sm:$0xff]
          %v2306 = vld [vmem:[#allocation4 + $0x90] sm:$0xff]
          %v2307 = vld [vmem:[#allocation4 + $0x98] sm:$0xff]
          %v2308 = vld [vmem:[#allocation4 + $0xa0] sm:$0xff]
          %v2309 = vld [vmem:[#allocation4 + $0xa8] sm:$0xff]
          %v2310 = vld [vmem:[#allocation4 + $0xb0] sm:$0xff]
          %v2311 = vld [vmem:[#allocation4 + $0xb8] sm:$0xff]
          %v2312 = vld [vmem:[#allocation4 + $0xc0] sm:$0xff]
          %v2313 = vld [vmem:[#allocation4 + $0xc8] sm:$0xff]
          %v2314 = vld [vmem:[#allocation4 + $0xd0] sm:$0xff]
          %v2315 = vld [vmem:[#allocation4 + $0xd8] sm:$0xff]
          %v2316 = vld [vmem:[#allocation4 + $0xe0] sm:$0xff]
          %v2317 = vld [vmem:[#allocation4 + $0xe8] sm:$0xff]
          %v2318 = vld [vmem:[#allocation4 + $0xf0] sm:$0xff]
          %v2319 = vld [vmem:[#allocation4 + $0xf8] sm:$0xff]
          %v2320 = vld [vmem:[#allocation5] sm:$0xff]
          %v2321 = vld [vmem:[#allocation5 + $0x8] sm:$0xff]
          %v2322 = vld [vmem:[#allocation5 + $0x10] sm:$0xff]
          %v2323 = vld [vmem:[#allocation5 + $0x18] sm:$0xff]
          %v2324 = vld [vmem:[#allocation5 + $0x20] sm:$0xff]
          %v2325 = vld [vmem:[#allocation5 + $0x28] sm:$0xff]
          %v2326 = vld [vmem:[#allocation5 + $0x30] sm:$0xff]
          %v2327 = vld [vmem:[#allocation5 + $0x38] sm:$0xff]
          %v2328 = vld [vmem:[#allocation5 + $0x40] sm:$0xff]
          %v2329 = vld [vmem:[#allocation5 + $0x48] sm:$0xff]
          %v2330 = vld [vmem:[#allocation5 + $0x50] sm:$0xff]
          %v2331 = vld [vmem:[#allocation5 + $0x58] sm:$0xff]
          %v2332 = vld [vmem:[#allocation5 + $0x60] sm:$0xff]
          %v2333 = vld [vmem:[#allocation5 + $0x68] sm:$0xff]
          %v2334 = vld [vmem:[#allocation5 + $0x70] sm:$0xff]
          %v2335 = vld [vmem:[#allocation5 + $0x78] sm:$0xff]
          %v2336 = vld [vmem:[#allocation5 + $0x80] sm:$0xff]
          %v2337 = vld [vmem:[#allocation5 + $0x88] sm:$0xff]
          %v2338 = vld [vmem:[#allocation5 + $0x90] sm:$0xff]
          %v2339 = vld [vmem:[#allocation5 + $0x98] sm:$0xff]
          %v2340 = vld [vmem:[#allocation5 + $0xa0] sm:$0xff]
          %v2341 = vld [vmem:[#allocation5 + $0xa8] sm:$0xff]
          %v2342 = vld [vmem:[#allocation5 + $0xb0] sm:$0xff]
          %v2343 = vld [vmem:[#allocation5 + $0xb8] sm:$0xff]
          %v2344 = vld [vmem:[#allocation5 + $0xc0] sm:$0xff]
          %v2345 = vld [vmem:[#allocation5 + $0xc8] sm:$0xff]
          %v2346 = vld [vmem:[#allocation5 + $0xd0] sm:$0xff]
          %v2347 = vld [vmem:[#allocation5 + $0xd8] sm:$0xff]
          %v2348 = vld [vmem:[#allocation5 + $0xe0] sm:$0xff]
          %v2349 = vld [vmem:[#allocation5 + $0xe8] sm:$0xff]
          %v2350 = vld [vmem:[#allocation5 + $0xf0] sm:$0xff]
          %v2351 = vld [vmem:[#allocation5 + $0xf8] sm:$0xff]
          %v2352 = vadd.f32 %v2320, 1e-09
          %v2353 = vadd.f32 %v2321, 1e-09
          %v2354 = vadd.f32 %v2322, 1e-09
          %v2355 = vadd.f32 %v2323, 1e-09
          %v2356 = vadd.f32 %v2324, 1e-09
          %v2357 = vadd.f32 %v2325, 1e-09
          %v2358 = vadd.f32 %v2326, 1e-09
          %v2359 = vadd.f32 %v2327, 1e-09
          %v2360 = vadd.f32 %v2328, 1e-09
          %v2361 = vadd.f32 %v2329, 1e-09
          %v2362 = vadd.f32 %v2330, 1e-09
          %v2363 = vadd.f32 %v2331, 1e-09
          %v2364 = vadd.f32 %v2332, 1e-09
          %v2365 = vadd.f32 %v2333, 1e-09
          %v2366 = vadd.f32 %v2334, 1e-09
          %v2367 = vadd.f32 %v2335, 1e-09
          %v2368 = vadd.f32 %v2336, 1e-09
          %v2369 = vadd.f32 %v2337, 1e-09
          %v2370 = vadd.f32 %v2338, 1e-09
          %v2371 = vadd.f32 %v2339, 1e-09
          %v2372 = vadd.f32 %v2340, 1e-09
          %v2373 = vadd.f32 %v2341, 1e-09
          %v2374 = vadd.f32 %v2342, 1e-09
          %v2375 = vadd.f32 %v2343, 1e-09
          %v2376 = vadd.f32 %v2344, 1e-09
          %v2377 = vadd.f32 %v2345, 1e-09
          %v2378 = vadd.f32 %v2346, 1e-09
          %v2379 = vadd.f32 %v2347, 1e-09
          %v2380 = vadd.f32 %v2348, 1e-09
          %v2381 = vadd.f32 %v2349, 1e-09
          %v2382 = vadd.f32 %v2350, 1e-09
          %v2383 = vadd.f32 %v2351, 1e-09
          %2385 = vset.pattern.permute.xlu0 0
          %2386 = vperm.xlu0 %2385, %v2352
          %v2387 = vpop.permute.xlu0 %2386
          %2390 = vset.pattern.permute.xlu0 0
          %2391 = vperm.xlu0 %2390, %v2353
          %v2392 = vpop.permute.xlu0 %2391
          %2395 = vset.pattern.permute.xlu0 0
          %2396 = vperm.xlu0 %2395, %v2354
          %v2397 = vpop.permute.xlu0 %2396
          %2400 = vset.pattern.permute.xlu0 0
          %2401 = vperm.xlu0 %2400, %v2355
          %v2402 = vpop.permute.xlu0 %2401
          %2405 = vset.pattern.permute.xlu0 0
          %2406 = vperm.xlu0 %2405, %v2356
          %v2407 = vpop.permute.xlu0 %2406
          %2410 = vset.pattern.permute.xlu0 0
          %2411 = vperm.xlu0 %2410, %v2357
          %v2412 = vpop.permute.xlu0 %2411
          %2415 = vset.pattern.permute.xlu0 0
          %2416 = vperm.xlu0 %2415, %v2358
          %v2417 = vpop.permute.xlu0 %2416
          %2420 = vset.pattern.permute.xlu0 0
          %2421 = vperm.xlu0 %2420, %v2359
          %v2422 = vpop.permute.xlu0 %2421
          %2425 = vset.pattern.permute.xlu0 0
          %2426 = vperm.xlu0 %2425, %v2360
          %v2427 = vpop.permute.xlu0 %2426
          %2430 = vset.pattern.permute.xlu0 0
          %2431 = vperm.xlu0 %2430, %v2361
          %v2432 = vpop.permute.xlu0 %2431
          %2435 = vset.pattern.permute.xlu0 0
          %2436 = vperm.xlu0 %2435, %v2362
          %v2437 = vpop.permute.xlu0 %2436
          %2440 = vset.pattern.permute.xlu0 0
          %2441 = vperm.xlu0 %2440, %v2363
          %v2442 = vpop.permute.xlu0 %2441
          %2445 = vset.pattern.permute.xlu0 0
          %2446 = vperm.xlu0 %2445, %v2364
          %v2447 = vpop.permute.xlu0 %2446
          %2450 = vset.pattern.permute.xlu0 0
          %2451 = vperm.xlu0 %2450, %v2365
          %v2452 = vpop.permute.xlu0 %2451
          %2455 = vset.pattern.permute.xlu0 0
          %2456 = vperm.xlu0 %2455, %v2366
          %v2457 = vpop.permute.xlu0 %2456
          %2460 = vset.pattern.permute.xlu0 0
          %2461 = vperm.xlu0 %2460, %v2367
          %v2462 = vpop.permute.xlu0 %2461
          %2465 = vset.pattern.permute.xlu0 0
          %2466 = vperm.xlu0 %2465, %v2368
          %v2467 = vpop.permute.xlu0 %2466
          %2470 = vset.pattern.permute.xlu0 0
          %2471 = vperm.xlu0 %2470, %v2369
          %v2472 = vpop.permute.xlu0 %2471
          %2475 = vset.pattern.permute.xlu0 0
          %2476 = vperm.xlu0 %2475, %v2370
          %v2477 = vpop.permute.xlu0 %2476
          %2480 = vset.pattern.permute.xlu0 0
          %2481 = vperm.xlu0 %2480, %v2371
          %v2482 = vpop.permute.xlu0 %2481
          %2485 = vset.pattern.permute.xlu0 0
          %2486 = vperm.xlu0 %2485, %v2372
          %v2487 = vpop.permute.xlu0 %2486
          %2490 = vset.pattern.permute.xlu0 0
          %2491 = vperm.xlu0 %2490, %v2373
          %v2492 = vpop.permute.xlu0 %2491
          %2495 = vset.pattern.permute.xlu0 0
          %2496 = vperm.xlu0 %2495, %v2374
          %v2497 = vpop.permute.xlu0 %2496
          %2500 = vset.pattern.permute.xlu0 0
          %2501 = vperm.xlu0 %2500, %v2375
          %v2502 = vpop.permute.xlu0 %2501
          %2505 = vset.pattern.permute.xlu0 0
          %2506 = vperm.xlu0 %2505, %v2376
          %v2507 = vpop.permute.xlu0 %2506
          %2510 = vset.pattern.permute.xlu0 0
          %2511 = vperm.xlu0 %2510, %v2377
          %v2512 = vpop.permute.xlu0 %2511
          %2515 = vset.pattern.permute.xlu0 0
          %2516 = vperm.xlu0 %2515, %v2378
          %v2517 = vpop.permute.xlu0 %2516
          %2520 = vset.pattern.permute.xlu0 0
          %2521 = vperm.xlu0 %2520, %v2379
          %v2522 = vpop.permute.xlu0 %2521
          %2525 = vset.pattern.permute.xlu0 0
          %2526 = vperm.xlu0 %2525, %v2380
          %v2527 = vpop.permute.xlu0 %2526
          %2530 = vset.pattern.permute.xlu0 0
          %2531 = vperm.xlu0 %2530, %v2381
          %v2532 = vpop.permute.xlu0 %2531
          %2535 = vset.pattern.permute.xlu0 0
          %2536 = vperm.xlu0 %2535, %v2382
          %v2537 = vpop.permute.xlu0 %2536
          %2540 = vset.pattern.permute.xlu0 0
          %2541 = vperm.xlu0 %2540, %v2383
          %v2542 = vpop.permute.xlu0 %2541
          %v2544 = vrcp.pop %v2387
          %v2545 = vmul.f32 %v2288, %v2544
          %v2546 = vrcp.pop %v2392
          %v2547 = vmul.f32 %v2289, %v2546
          %v2548 = vrcp.pop %v2397
          %v2549 = vmul.f32 %v2290, %v2548
          %v2550 = vrcp.pop %v2402
          %v2551 = vmul.f32 %v2291, %v2550
          %v2552 = vrcp.pop %v2407
          %v2553 = vmul.f32 %v2292, %v2552
          %v2554 = vrcp.pop %v2412
          %v2555 = vmul.f32 %v2293, %v2554
          %v2556 = vrcp.pop %v2417
          %v2557 = vmul.f32 %v2294, %v2556
          %v2558 = vrcp.pop %v2422
          %v2559 = vmul.f32 %v2295, %v2558
          %v2560 = vrcp.pop %v2427
          %v2561 = vmul.f32 %v2296, %v2560
          %v2562 = vrcp.pop %v2432
          %v2563 = vmul.f32 %v2297, %v2562
          %v2564 = vrcp.pop %v2437
          %v2565 = vmul.f32 %v2298, %v2564
          %v2566 = vrcp.pop %v2442
          %v2567 = vmul.f32 %v2299, %v2566
          %v2568 = vrcp.pop %v2447
          %v2569 = vmul.f32 %v2300, %v2568
          %v2570 = vrcp.pop %v2452
          %v2571 = vmul.f32 %v2301, %v2570
          %v2572 = vrcp.pop %v2457
          %v2573 = vmul.f32 %v2302, %v2572
          %v2574 = vrcp.pop %v2462
          %v2575 = vmul.f32 %v2303, %v2574
          %v2576 = vrcp.pop %v2467
          %v2577 = vmul.f32 %v2304, %v2576
          %v2578 = vrcp.pop %v2472
          %v2579 = vmul.f32 %v2305, %v2578
          %v2580 = vrcp.pop %v2477
          %v2581 = vmul.f32 %v2306, %v2580
          %v2582 = vrcp.pop %v2482
          %v2583 = vmul.f32 %v2307, %v2582
          %v2584 = vrcp.pop %v2487
          %v2585 = vmul.f32 %v2308, %v2584
          %v2586 = vrcp.pop %v2492
          %v2587 = vmul.f32 %v2309, %v2586
          %v2588 = vrcp.pop %v2497
          %v2589 = vmul.f32 %v2310, %v2588
          %v2590 = vrcp.pop %v2502
          %v2591 = vmul.f32 %v2311, %v2590
          %v2592 = vrcp.pop %v2507
          %v2593 = vmul.f32 %v2312, %v2592
          %v2594 = vrcp.pop %v2512
          %v2595 = vmul.f32 %v2313, %v2594
          %v2596 = vrcp.pop %v2517
          %v2597 = vmul.f32 %v2314, %v2596
          %v2598 = vrcp.pop %v2522
          %v2599 = vmul.f32 %v2315, %v2598
          %v2600 = vrcp.pop %v2527
          %v2601 = vmul.f32 %v2316, %v2600
          %v2602 = vrcp.pop %v2532
          %v2603 = vmul.f32 %v2317, %v2602
          %v2604 = vrcp.pop %v2537
          %v2605 = vmul.f32 %v2318, %v2604
          %v2606 = vrcp.pop %v2542
          %v2607 = vmul.f32 %v2319, %v2606
          %v2608 = vsub.f32 %v2256, %v2545
          %v2609 = vsub.f32 %v2257, %v2547
          %v2610 = vsub.f32 %v2258, %v2549
          %v2611 = vsub.f32 %v2259, %v2551
          %v2612 = vsub.f32 %v2260, %v2553
          %v2613 = vsub.f32 %v2261, %v2555
          %v2614 = vsub.f32 %v2262, %v2557
          %v2615 = vsub.f32 %v2263, %v2559
          %v2616 = vsub.f32 %v2264, %v2561
          %v2617 = vsub.f32 %v2265, %v2563
          %v2618 = vsub.f32 %v2266, %v2565
          %v2619 = vsub.f32 %v2267, %v2567
          %v2620 = vsub.f32 %v2268, %v2569
          %v2621 = vsub.f32 %v2269, %v2571
          %v2622 = vsub.f32 %v2270, %v2573
          %v2623 = vsub.f32 %v2271, %v2575
          %v2624 = vsub.f32 %v2272, %v2577
          %v2625 = vsub.f32 %v2273, %v2579
          %v2626 = vsub.f32 %v2274, %v2581
          %v2627 = vsub.f32 %v2275, %v2583
          %v2628 = vsub.f32 %v2276, %v2585
          %v2629 = vsub.f32 %v2277, %v2587
          %v2630 = vsub.f32 %v2278, %v2589
          %v2631 = vsub.f32 %v2279, %v2591
          %v2632 = vsub.f32 %v2280, %v2593
          %v2633 = vsub.f32 %v2281, %v2595
          %v2634 = vsub.f32 %v2282, %v2597
          %v2635 = vsub.f32 %v2283, %v2599
          %v2636 = vsub.f32 %v2284, %v2601
          %v2637 = vsub.f32 %v2285, %v2603
          %v2638 = vsub.f32 %v2286, %v2605
          %v2639 = vsub.f32 %v2287, %v2607
          %v2640 = vpack.c.bf16 %v2609, %v2608
          %v2641 = vpack.c.bf16 %v2611, %v2610
          %v2642 = vpack.c.bf16 %v2613, %v2612
          %v2643 = vpack.c.bf16 %v2615, %v2614
          %v2644 = vpack.c.bf16 %v2617, %v2616
          %v2645 = vpack.c.bf16 %v2619, %v2618
          %v2646 = vpack.c.bf16 %v2621, %v2620
          %v2647 = vpack.c.bf16 %v2623, %v2622
          %v2648 = vpack.c.bf16 %v2625, %v2624
          %v2649 = vpack.c.bf16 %v2627, %v2626
          %v2650 = vpack.c.bf16 %v2629, %v2628
          %v2651 = vpack.c.bf16 %v2631, %v2630
          %v2652 = vpack.c.bf16 %v2633, %v2632
          %v2653 = vpack.c.bf16 %v2635, %v2634
          %v2654 = vpack.c.bf16 %v2637, %v2636
          %v2655 = vpack.c.bf16 %v2639, %v2638
          %v2656 = vld [vmem:[#allocation9] sm:$0xf]
          %v2657 = vld [vmem:[#allocation9 + $0x4] sm:$0xf]
          %v2658 = vld [vmem:[#allocation9 + $0x8] sm:$0xf]
          %v2659 = vld [vmem:[#allocation9 + $0xc] sm:$0xf]
          %v2660 = vld [vmem:[#allocation9 + $0x10] sm:$0xf]
          %v2661 = vld [vmem:[#allocation9 + $0x14] sm:$0xf]
          %v2662 = vld [vmem:[#allocation9 + $0x18] sm:$0xf]
          %v2663 = vld [vmem:[#allocation9 + $0x1c] sm:$0xf]
          %v2664 = vld [vmem:[#allocation9 + $0x20] sm:$0xf]
          %v2665 = vld [vmem:[#allocation9 + $0x24] sm:$0xf]
          %v2666 = vld [vmem:[#allocation9 + $0x28] sm:$0xf]
          %v2667 = vld [vmem:[#allocation9 + $0x2c] sm:$0xf]
          %v2668 = vld [vmem:[#allocation9 + $0x30] sm:$0xf]
          %v2669 = vld [vmem:[#allocation9 + $0x34] sm:$0xf]
          %v2670 = vld [vmem:[#allocation9 + $0x38] sm:$0xf]
          %v2671 = vld [vmem:[#allocation9 + $0x3c] sm:$0xf]
          %v2672 = vld [vmem:[%s5] sm:$0x1]
          %v2674 = vlaneseq
          %v2675 = vshrl.u32 %v2674, 7
          %v2676 = vsub.s32 0, %v2675
          %v2677 = vrot.slane %v2672, %v2676
          %v2695 = vunpack.c.l.b16 %v2656
          %v2696 = vunpack.c.l.b16 %v2657
          %v2697 = vunpack.c.l.b16 %v2658
          %v2698 = vunpack.c.l.b16 %v2659
          %v2699 = vunpack.c.l.b16 %v2660
          %v2700 = vunpack.c.l.b16 %v2661
          %v2701 = vunpack.c.l.b16 %v2662
          %v2702 = vunpack.c.l.b16 %v2663
          %v2703 = vunpack.c.l.b16 %v2664
          %v2704 = vunpack.c.l.b16 %v2665
          %v2705 = vunpack.c.l.b16 %v2666
          %v2706 = vunpack.c.l.b16 %v2667
          %v2707 = vunpack.c.l.b16 %v2668
          %v2708 = vunpack.c.l.b16 %v2669
          %v2709 = vunpack.c.l.b16 %v2670
          %v2710 = vunpack.c.l.b16 %v2671
          %v2711 = vpack.c.b16 %v2696, %v2695
          %v2712 = vpack.c.b16 %v2698, %v2697
          %v2713 = vpack.c.b16 %v2700, %v2699
          %v2714 = vpack.c.b16 %v2702, %v2701
          %v2715 = vpack.c.b16 %v2704, %v2703
          %v2716 = vpack.c.b16 %v2706, %v2705
          %v2717 = vpack.c.b16 %v2708, %v2707
          %v2718 = vpack.c.b16 %v2710, %v2709
          %2727 = vmatprep.subr.bf16.mxu0 0
          %2728 = vmatpush1.bf16.msra.mxu0 %v2718
          %2729 = vmatprep.subr.bf16.mxu0 0
          %2730 = vmatpush1.bf16.msra.mxu0 %v2717
          %2731 = vmatprep.subr.bf16.mxu0 0
          %2732 = vmatpush1.bf16.msra.mxu0 %v2716
          %2733 = vmatprep.subr.bf16.mxu0 0
          %2734 = vmatpush1.bf16.msra.mxu0 %v2715
          %2735 = vmatprep.subr.bf16.mxu0 0
          %2736 = vmatpush1.bf16.msra.mxu0 %v2714
          %2737 = vmatprep.subr.bf16.mxu0 0
          %2738 = vmatpush1.bf16.msra.mxu0 %v2713
          %2739 = vmatprep.subr.bf16.mxu0 0
          %2740 = vmatpush1.bf16.msra.mxu0 %v2712
          %2741 = vmatprep.subr.bf16.mxu0 0
          %2742 = vmatpush1.bf16.msra.mxu0 %v2711
          %2743 = vmatprep.subr.bf16.mxu0 0
          %2744 = vmatpush2.bf16.msra.mxu0 0
          %2745 = vmatprep.subr.bf16.mxu0 0
          %2746 = vmatpush2.bf16.msra.mxu0 0
          %2747 = vmatprep.subr.bf16.mxu0 0
          %2748 = vmatpush2.bf16.msra.mxu0 0
          %2749 = vmatprep.subr.bf16.mxu0 0
          %2750 = vmatpush2.bf16.msra.mxu0 0
          %2751 = vmatprep.subr.bf16.mxu0 0
          %2752 = vmatpush2.bf16.msra.mxu0 0
          %2753 = vmatprep.subr.bf16.mxu0 0
          %2754 = vmatpush2.bf16.msra.mxu0 0
          %2755 = vmatprep.subr.bf16.mxu0 0
          %2756 = vmatpush2.bf16.msra.mxu0 0
          %2757 = vmatprep.subr.bf16.mxu0 0
          %2758 = vmatpush2.bf16.msra.mxu0 0
          %2759 = vmatprep.mubr.bf16.mxu0 0
          %2760 = vmatmul.mubr.bf16.gmra.mxu0 %v2640
          %v2761 = vpop.f32.mrf.mxu0
          %v2762 = vadd.f32 %v2677, %v2761
          %v2763 = vpop.f32.mrf.mxu0
          %v2764 = vpop.f32.mrf.mxu0
          %v2765 = vadd.f32 %v2677, %v2764
          %v2766 = vpop.f32.mrf.mxu0
          %2767 = vmatprep.mubr.bf16.mxu0 0
          %2768 = vmatmul.mubr.bf16.gmra.mxu0 %v2641
          %v2769 = vpop.f32.mrf.mxu0
          %v2770 = vadd.f32 %v2677, %v2769
          %v2771 = vpop.f32.mrf.mxu0
          %v2772 = vpop.f32.mrf.mxu0
          %v2773 = vadd.f32 %v2677, %v2772
          %v2774 = vpop.f32.mrf.mxu0
          %2775 = vmatprep.mubr.bf16.mxu0 0
          %2776 = vmatmul.mubr.bf16.gmra.mxu0 %v2642
          %v2777 = vpop.f32.mrf.mxu0
          %v2778 = vadd.f32 %v2677, %v2777
          %v2779 = vpop.f32.mrf.mxu0
          %v2780 = vpop.f32.mrf.mxu0
          %v2781 = vadd.f32 %v2677, %v2780
          %v2782 = vpop.f32.mrf.mxu0
          %2783 = vmatprep.mubr.bf16.mxu0 0
          %2784 = vmatmul.mubr.bf16.gmra.mxu0 %v2643
          %v2785 = vpop.f32.mrf.mxu0
          %v2786 = vadd.f32 %v2677, %v2785
          %v2787 = vpop.f32.mrf.mxu0
          %v2788 = vpop.f32.mrf.mxu0
          %v2789 = vadd.f32 %v2677, %v2788
          %v2790 = vpop.f32.mrf.mxu0
          %2791 = vmatprep.mubr.bf16.mxu0 0
          %2792 = vmatmul.mubr.bf16.gmra.mxu0 %v2644
          %v2793 = vpop.f32.mrf.mxu0
          %v2794 = vadd.f32 %v2677, %v2793
          %v2795 = vpop.f32.mrf.mxu0
          %v2796 = vpop.f32.mrf.mxu0
          %v2797 = vadd.f32 %v2677, %v2796
          %v2798 = vpop.f32.mrf.mxu0
          %2799 = vmatprep.mubr.bf16.mxu0 0
          %2800 = vmatmul.mubr.bf16.gmra.mxu0 %v2645
          %v2801 = vpop.f32.mrf.mxu0
          %v2802 = vadd.f32 %v2677, %v2801
          %v2803 = vpop.f32.mrf.mxu0
          %v2804 = vpop.f32.mrf.mxu0
          %v2805 = vadd.f32 %v2677, %v2804
          %v2806 = vpop.f32.mrf.mxu0
          %2807 = vmatprep.mubr.bf16.mxu0 0
          %2808 = vmatmul.mubr.bf16.gmra.mxu0 %v2646
          %v2809 = vpop.f32.mrf.mxu0
          %v2810 = vadd.f32 %v2677, %v2809
          %v2811 = vpop.f32.mrf.mxu0
          %v2812 = vpop.f32.mrf.mxu0
          %v2813 = vadd.f32 %v2677, %v2812
          %v2814 = vpop.f32.mrf.mxu0
          %2815 = vmatprep.mubr.bf16.mxu0 0
          %2816 = vmatmul.mubr.bf16.gmra.mxu0 %v2647
          %v2817 = vpop.f32.mrf.mxu0
          %v2818 = vadd.f32 %v2677, %v2817
          %v2819 = vpop.f32.mrf.mxu0
          %v2820 = vpop.f32.mrf.mxu0
          %v2821 = vadd.f32 %v2677, %v2820
          %v2822 = vpop.f32.mrf.mxu0
          %2823 = vmatprep.mubr.bf16.mxu0 0
          %2824 = vmatmul.mubr.bf16.gmra.mxu0 %v2648
          %v2825 = vpop.f32.mrf.mxu0
          %v2826 = vadd.f32 %v2677, %v2825
          %v2827 = vpop.f32.mrf.mxu0
          %v2828 = vpop.f32.mrf.mxu0
          %v2829 = vadd.f32 %v2677, %v2828
          %v2830 = vpop.f32.mrf.mxu0
          %2831 = vmatprep.mubr.bf16.mxu0 0
          %2832 = vmatmul.mubr.bf16.gmra.mxu0 %v2649
          %v2833 = vpop.f32.mrf.mxu0
          %v2834 = vadd.f32 %v2677, %v2833
          %v2835 = vpop.f32.mrf.mxu0
          %v2836 = vpop.f32.mrf.mxu0
          %v2837 = vadd.f32 %v2677, %v2836
          %v2838 = vpop.f32.mrf.mxu0
          %2839 = vmatprep.mubr.bf16.mxu0 0
          %2840 = vmatmul.mubr.bf16.gmra.mxu0 %v2650
          %v2841 = vpop.f32.mrf.mxu0
          %v2842 = vadd.f32 %v2677, %v2841
          %v2843 = vpop.f32.mrf.mxu0
          %v2844 = vpop.f32.mrf.mxu0
          %v2845 = vadd.f32 %v2677, %v2844
          %v2846 = vpop.f32.mrf.mxu0
          %2847 = vmatprep.mubr.bf16.mxu0 0
          %2848 = vmatmul.mubr.bf16.gmra.mxu0 %v2651
          %v2849 = vpop.f32.mrf.mxu0
          %v2850 = vadd.f32 %v2677, %v2849
          %v2851 = vpop.f32.mrf.mxu0
          %v2852 = vpop.f32.mrf.mxu0
          %v2853 = vadd.f32 %v2677, %v2852
          %v2854 = vpop.f32.mrf.mxu0
          %2855 = vmatprep.mubr.bf16.mxu0 0
          %2856 = vmatmul.mubr.bf16.gmra.mxu0 %v2652
          %v2857 = vpop.f32.mrf.mxu0
          %v2858 = vadd.f32 %v2677, %v2857
          %v2859 = vpop.f32.mrf.mxu0
          %v2860 = vpop.f32.mrf.mxu0
          %v2861 = vadd.f32 %v2677, %v2860
          %v2862 = vpop.f32.mrf.mxu0
          %2863 = vmatprep.mubr.bf16.mxu0 0
          %2864 = vmatmul.mubr.bf16.gmra.mxu0 %v2653
          %v2865 = vpop.f32.mrf.mxu0
          %v2866 = vadd.f32 %v2677, %v2865
          %v2867 = vpop.f32.mrf.mxu0
          %v2868 = vpop.f32.mrf.mxu0
          %v2869 = vadd.f32 %v2677, %v2868
          %v2870 = vpop.f32.mrf.mxu0
          %2871 = vmatprep.mubr.bf16.mxu0 0
          %2872 = vmatmul.mubr.bf16.gmra.mxu0 %v2654
          %v2873 = vpop.f32.mrf.mxu0
          %v2874 = vadd.f32 %v2677, %v2873
          %v2875 = vpop.f32.mrf.mxu0
          %v2876 = vpop.f32.mrf.mxu0
          %v2877 = vadd.f32 %v2677, %v2876
          %v2878 = vpop.f32.mrf.mxu0
          %2879 = vmatprep.mubr.bf16.mxu0 0
          %2880 = vmatmul.mubr.bf16.gmra.mxu0 %v2655
          %v2881 = vpop.f32.mrf.mxu0
          %v2882 = vadd.f32 %v2677, %v2881
          %v2883 = vpop.f32.mrf.mxu0
          %v2884 = vpop.f32.mrf.mxu0
          %v2885 = vadd.f32 %v2677, %v2884
          %v2886 = vpop.f32.mrf.mxu0
          %2887 = vdwg.mxu0
          %v2888 = vmax.f32 %v2762, 0.0
          %v2889 = vmax.f32 %v2765, 0.0
          %v2890 = vmax.f32 %v2770, 0.0
          %v2891 = vmax.f32 %v2773, 0.0
          %v2892 = vmax.f32 %v2778, 0.0
          %v2893 = vmax.f32 %v2781, 0.0
          %v2894 = vmax.f32 %v2786, 0.0
          %v2895 = vmax.f32 %v2789, 0.0
          %v2896 = vmax.f32 %v2794, 0.0
          %v2897 = vmax.f32 %v2797, 0.0
          %v2898 = vmax.f32 %v2802, 0.0
          %v2899 = vmax.f32 %v2805, 0.0
          %v2900 = vmax.f32 %v2810, 0.0
          %v2901 = vmax.f32 %v2813, 0.0
          %v2902 = vmax.f32 %v2818, 0.0
          %v2903 = vmax.f32 %v2821, 0.0
          %v2904 = vmax.f32 %v2826, 0.0
          %v2905 = vmax.f32 %v2829, 0.0
          %v2906 = vmax.f32 %v2834, 0.0
          %v2907 = vmax.f32 %v2837, 0.0
          %v2908 = vmax.f32 %v2842, 0.0
          %v2909 = vmax.f32 %v2845, 0.0
          %v2910 = vmax.f32 %v2850, 0.0
          %v2911 = vmax.f32 %v2853, 0.0
          %v2912 = vmax.f32 %v2858, 0.0
          %v2913 = vmax.f32 %v2861, 0.0
          %v2914 = vmax.f32 %v2866, 0.0
          %v2915 = vmax.f32 %v2869, 0.0
          %v2916 = vmax.f32 %v2874, 0.0
          %v2917 = vmax.f32 %v2877, 0.0
          %v2918 = vmax.f32 %v2882, 0.0
          %v2919 = vmax.f32 %v2885, 0.0
          %v2920 = vadd.f32 %v2256, %v2888
          %v2921 = vadd.f32 %v2257, %v2889
          %v2922 = vadd.f32 %v2258, %v2890
          %v2923 = vadd.f32 %v2259, %v2891
          %v2924 = vadd.f32 %v2260, %v2892
          %v2925 = vadd.f32 %v2261, %v2893
          %v2926 = vadd.f32 %v2262, %v2894
          %v2927 = vadd.f32 %v2263, %v2895
          %v2928 = vadd.f32 %v2264, %v2896
          %v2929 = vadd.f32 %v2265, %v2897
          %v2930 = vadd.f32 %v2266, %v2898
          %v2931 = vadd.f32 %v2267, %v2899
          %v2932 = vadd.f32 %v2268, %v2900
          %v2933 = vadd.f32 %v2269, %v2901
          %v2934 = vadd.f32 %v2270, %v2902
          %v2935 = vadd.f32 %v2271, %v2903
          %v2936 = vadd.f32 %v2272, %v2904
          %v2937 = vadd.f32 %v2273, %v2905
          %v2938 = vadd.f32 %v2274, %v2906
          %v2939 = vadd.f32 %v2275, %v2907
          %v2940 = vadd.f32 %v2276, %v2908
          %v2941 = vadd.f32 %v2277, %v2909
          %v2942 = vadd.f32 %v2278, %v2910
          %v2943 = vadd.f32 %v2279, %v2911
          %v2944 = vadd.f32 %v2280, %v2912
          %v2945 = vadd.f32 %v2281, %v2913
          %v2946 = vadd.f32 %v2282, %v2914
          %v2947 = vadd.f32 %v2283, %v2915
          %v2948 = vadd.f32 %v2284, %v2916
          %v2949 = vadd.f32 %v2285, %v2917
          %v2950 = vadd.f32 %v2286, %v2918
          %v2951 = vadd.f32 %v2287, %v2919
          %2952 = vxpose.xlu0.b32.start [1/16] %v2920, 128
          %2953 = vxpose.xlu0.b32.cont [2/16] %v2921, 128
          %2954 = vxpose.xlu0.b32.cont [3/16] %v2922, 128
          %2955 = vxpose.xlu0.b32.cont [4/16] %v2923, 128
          %2956 = vxpose.xlu0.b32.cont [5/16] %v2924, 128
          %2957 = vxpose.xlu0.b32.cont [6/16] %v2925, 128
          %2958 = vxpose.xlu0.b32.cont [7/16] %v2926, 128
          %2959 = vxpose.xlu0.b32.cont [8/16] %v2927, 128
          %2960 = vxpose.xlu0.b32.cont [9/16] %v2928, 128
          %2961 = vxpose.xlu0.b32.cont [10/16] %v2929, 128
          %2962 = vxpose.xlu0.b32.cont [11/16] %v2930, 128
          %2963 = vxpose.xlu0.b32.cont [12/16] %v2931, 128
          %2964 = vxpose.xlu0.b32.cont [13/16] %v2932, 128
          %2965 = vxpose.xlu0.b32.cont [14/16] %v2933, 128
          %2966 = vxpose.xlu0.b32.cont [15/16] %v2934, 128
          %2967 = vxpose.xlu0.b32.end [16/16] %v2935, 128
          %v2968 = vpop.trf.xlu0
          %v2969 = vpop.trf.xlu0
          %v2970 = vpop.trf.xlu0
          %v2971 = vpop.trf.xlu0
          %v2972 = vpop.trf.xlu0
          %v2973 = vpop.trf.xlu0
          %v2974 = vpop.trf.xlu0
          %v2975 = vpop.trf.xlu0
          %v2976 = vpop.trf.xlu0
          %v2977 = vpop.trf.xlu0
          %v2978 = vpop.trf.xlu0
          %v2979 = vpop.trf.xlu0
          %v2980 = vpop.trf.xlu0
          %v2981 = vpop.trf.xlu0
          %v2982 = vpop.trf.xlu0
          %v2983 = vpop.trf.xlu0
          %2984 = vxpose.xlu0.b32.start [1/16] %v2936, 128
          %2985 = vxpose.xlu0.b32.cont [2/16] %v2937, 128
          %2986 = vxpose.xlu0.b32.cont [3/16] %v2938, 128
          %2987 = vxpose.xlu0.b32.cont [4/16] %v2939, 128
          %2988 = vxpose.xlu0.b32.cont [5/16] %v2940, 128
          %2989 = vxpose.xlu0.b32.cont [6/16] %v2941, 128
          %2990 = vxpose.xlu0.b32.cont [7/16] %v2942, 128
          %2991 = vxpose.xlu0.b32.cont [8/16] %v2943, 128
          %2992 = vxpose.xlu0.b32.cont [9/16] %v2944, 128
          %2993 = vxpose.xlu0.b32.cont [10/16] %v2945, 128
          %2994 = vxpose.xlu0.b32.cont [11/16] %v2946, 128
          %2995 = vxpose.xlu0.b32.cont [12/16] %v2947, 128
          %2996 = vxpose.xlu0.b32.cont [13/16] %v2948, 128
          %2997 = vxpose.xlu0.b32.cont [14/16] %v2949, 128
          %2998 = vxpose.xlu0.b32.cont [15/16] %v2950, 128
          %2999 = vxpose.xlu0.b32.end [16/16] %v2951, 128
          %v3000 = vpop.trf.xlu0
          %v3001 = vpop.trf.xlu0
          %v3002 = vpop.trf.xlu0
          %v3003 = vpop.trf.xlu0
          %v3004 = vpop.trf.xlu0
          %v3005 = vpop.trf.xlu0
          %v3006 = vpop.trf.xlu0
          %v3007 = vpop.trf.xlu0
          %v3008 = vpop.trf.xlu0
          %v3009 = vpop.trf.xlu0
          %v3010 = vpop.trf.xlu0
          %v3011 = vpop.trf.xlu0
          %v3012 = vpop.trf.xlu0
          %v3013 = vpop.trf.xlu0
          %v3014 = vpop.trf.xlu0
          %v3015 = vpop.trf.xlu0
          %3016 = vst [vmem:[%s296] sm:$0xff] %v2968
          %3017 = vst [vmem:[%s296 + $0x8] sm:$0xff] %v3000
          %3018 = vst [vmem:[%s296 + $0x10] sm:$0xff] %v2969
          %3019 = vst [vmem:[%s296 + $0x18] sm:$0xff] %v3001
          %3020 = vst [vmem:[%s296 + $0x20] sm:$0xff] %v2970
          %3021 = vst [vmem:[%s296 + $0x28] sm:$0xff] %v3002
          %3022 = vst [vmem:[%s296 + $0x30] sm:$0xff] %v2971
          %3023 = vst [vmem:[%s296 + $0x38] sm:$0xff] %v3003
          %3024 = vst [vmem:[%s296 + $0x40] sm:$0xff] %v2972
          %3025 = vst [vmem:[%s296 + $0x48] sm:$0xff] %v3004
          %3026 = vst [vmem:[%s296 + $0x50] sm:$0xff] %v2973
          %3027 = vst [vmem:[%s296 + $0x58] sm:$0xff] %v3005
          %3028 = vst [vmem:[%s296 + $0x60] sm:$0xff] %v2974
          %3029 = vst [vmem:[%s296 + $0x68] sm:$0xff] %v3006
          %3030 = vst [vmem:[%s296 + $0x70] sm:$0xff] %v2975
          %3031 = vst [vmem:[%s296 + $0x78] sm:$0xff] %v3007
          %3032 = vst [vmem:[%s296 + $0x80] sm:$0xff] %v2976
          %3033 = vst [vmem:[%s296 + $0x88] sm:$0xff] %v3008
          %3034 = vst [vmem:[%s296 + $0x90] sm:$0xff] %v2977
          %3035 = vst [vmem:[%s296 + $0x98] sm:$0xff] %v3009
          %3036 = vst [vmem:[%s296 + $0xa0] sm:$0xff] %v2978
          %3037 = vst [vmem:[%s296 + $0xa8] sm:$0xff] %v3010
          %3038 = vst [vmem:[%s296 + $0xb0] sm:$0xff] %v2979
          %3039 = vst [vmem:[%s296 + $0xb8] sm:$0xff] %v3011
          %3040 = vst [vmem:[%s296 + $0xc0] sm:$0xff] %v2980
          %3041 = vst [vmem:[%s296 + $0xc8] sm:$0xff] %v3012
          %3042 = vst [vmem:[%s296 + $0xd0] sm:$0xff] %v2981
          %3043 = vst [vmem:[%s296 + $0xd8] sm:$0xff] %v3013
          %3044 = vst [vmem:[%s296 + $0xe0] sm:$0xff] %v2982
          %3045 = vst [vmem:[%s296 + $0xe8] sm:$0xff] %v3014
          %3046 = vst [vmem:[%s296 + $0xf0] sm:$0xff] %v2983
          %3047 = vst [vmem:[%s296 + $0xf8] sm:$0xff] %v3015
        $region60: #{oa_forward.1} parent=43 // pred_fallthru
          _
        %s3048 = sand.u32 %s175, 1
        %s3049 = scalar_lea.sflag [#allocation8], %s3048
        %s3050 = sand.u32 %s175, 1
        %s3051 = smul.addr %s3050, 256
        %s3052 = scalar_lea.vmem [#allocation11], %s3051
        // Predicated region
        $region61: #{oa_forward.1} parent=43 // pred_check
          %p3053 = pneg %p185
        $region62: #{oa_forward.1} parent=43 // pred_check_branch
          %3055 = sbr.rel (%p3053) target = $region64
        $region63: #{oa_forward.1} parent=43 // pred_region
          %s3057 = ssub.s32 4096, 4096
          %3058 = vsyncadd %s3049, %s3057
          %s3059 = smul.addr %s28, 32
          %s3060 = smul.addr %s3059, 128
          %s3061 = scalar_lea.hbm %s6, %s3060
          %s3062 = sshll.u32 %s3052, 4
          %s3063 = int_to_ptr.vmem [resolvable:$true] %s3062
          %3068 = dma.vmem_to_hbm [thread:$0]  %s3063, 4096, %s3061, %s3049, 256, 256, 16
        $region64: #{oa_forward.1} parent=43 // pred_fallthru
          _
      $region44: #{oa_forward.1} parent=5 // pred_fallthru
        _
      %p3069 = scmp.le.s32.totalorder 2, %s19
      // Predicated region
      $region65: #{oa_forward.1} parent=5 // pred_check
        %p3070 = pneg %p3069
      $region66: #{oa_forward.1} parent=5 // pred_check_branch
        %3072 = sbr.rel (%p3070) target = $region68
      $region67: #{oa_forward.1} parent=5 // pred_region
        %s3073 = ssub.s32 %s19, 2
        // Predicated region
        $region69: #{oa_forward.1} parent=67 // pred_check
          %p3074 = pneg %p191
        $region70: #{oa_forward.1} parent=67 // pred_check_branch
          %3076 = sbr.rel (%p3074) target = $region72
        $region71: #{oa_forward.1} parent=67 // pred_region
          %s3077 = sand.u32 %s176, 1
          %s3078 = scalar_lea.sflag [#allocation8], %s3077
          %s3079 = sand.u32 %s176, 1
          %s3080 = smul.addr %s3079, 256
          %s3081 = scalar_lea.vmem [#allocation11], %s3080
          %3082 = dma.done %s3078, 4096
        $region72: #{oa_forward.1} parent=67 // pred_fallthru
          _
      $region68: #{oa_forward.1} parent=5 // pred_fallthru
        _
    $region6: #{oa_forward.1} parent=1 // loop_footer
      %s23 = sadd.s32 1, %s19
    $region7: #{oa_forward.1} parent=1 // loop_footer_branch
      %18 = sbr.rel target = $region3
    $region8: #{oa_forward.1} parent=1 // loop_exit
      _
    %3083 = vsyncpa [#allocation7], 1
    %s3084 = scalar_lea.sflag [#allocation7], 1
    %3085 = vsyncpa %s3084, 1
    %3086 = vsyncpa [#allocation10], 1
    %3087 = vsyncpa [#allocation8], 1
    %s3088 = scalar_lea.sflag [#allocation8], 1
    %3089 = vsyncpa %s3088, 1

</llo_original>
